<compile_context>
chip_gen: v6e
topology: v6e:2x2x1
jax: 0.10.0
libtpu: 0.0.40
codegen_flags: <defaults>
</compile_context>

<pallas_src>
import functools

import jax
import jax.numpy as jnp
from jax.experimental import pallas as pl
from jax.experimental.pallas import tpu as pltpu  # noqa: F401  (TPU backend)

# ----------------------------- configuration --------------------------------
EMBED_DIM = 32
VOCAB_SIZE = 16
PADDING_IDX = 0
N_TRANSFORMERS = 2
N_HEADS = 2
INTER_FEAT = 64
N_MELS = 16          # also used as duration-predictor filter size
ALPHA = 1.0
MAX_LEN_PE = 64

B = 2                # batch
T_TOK = 8            # token sequence length (multiple of 8)
MAX_MEL = 24         # mel_spec_length used in the demo (multiple of 8)


# ----------------------------- in-kernel helpers -----------------------------
def _layernorm(x, g, b, eps=1e-5):
    mu = jnp.mean(x, axis=-1, keepdims=True)
    var = jnp.mean((x - mu) ** 2, axis=-1, keepdims=True)
    return (x - mu) * jax.lax.rsqrt(var + eps) * g + b


def _shift_cat(a, Bb, T):
    """(B, T, C) -> (B, T, 3C): [x_{t-1} | x_t | x_{t+1}] with zero 'same' pad."""
    C = a.shape[-1]
    z = jnp.zeros((Bb, 1, C), jnp.float32)
    prev = jnp.concatenate([z, a[:, : T - 1, :]], axis=1)
    nxt = jnp.concatenate([a[:, 1:, :], z], axis=1)
    return jnp.concatenate([prev, a, nxt], axis=-1)


# ----------------------------- Pallas kernels --------------------------------
def _fft_block_kernel(x_ref, m_ref,
                      wqkv_ref, bqkv_ref, wo_ref, bo_ref,
                      ln1g_ref, ln1b_ref,
                      w1_ref, b1_ref, w2_ref, b2_ref,
                      ln2g_ref, ln2b_ref,
                      o_ref, *, n_heads):
    """One whole FeedForwardTransformer block, fully VMEM-resident."""
    Bb, T, D = x_ref.shape
    H = n_heads
    Dh = D // H
    scale = 1.0 / float(Dh) ** 0.5

    x = x_ref[...]                              # (B, T, D)
    m = m_ref[...]                              # (B, T) float, 1.0 = keep
    x2 = x.reshape(Bb * T, D)

    # ---- fused QKV projection: one (D, 3D) MXU pass ----
    qkv = jnp.dot(x2, wqkv_ref[...], preferred_element_type=jnp.float32) \
        + bqkv_ref[...]
    qkv = qkv.reshape(Bb, T, 3 * D)

    # ---- multi-head masked attention (heads = static lane slices) ----
    keep = m[:, None, :] > 0.5                  # (B, 1, T) key mask
    heads = []
    for h in range(H):
        q = qkv[:, :, h * Dh:(h + 1) * Dh]
        k = qkv[:, :, D + h * Dh:D + (h + 1) * Dh]
        v = qkv[:, :, 2 * D + h * Dh:2 * D + (h + 1) * Dh]
        s = jnp.einsum('bqd,bkd->bqk', q, k,
                       preferred_element_type=jnp.float32) * scale   # (B, T, T)
        s = jnp.where(keep, s, -1e9)
        s = s - jnp.max(s, axis=-1, keepdims=True)
        p = jnp.exp(s)
        p = p / jnp.sum(p, axis=-1, keepdims=True)
        heads.append(jnp.einsum('bqk,bkd->bqd', p, v,
                                preferred_element_type=jnp.float32))
    attn = jnp.concatenate(heads, axis=-1).reshape(Bb * T, D)

    # ---- output projection + residual + LN1 + time mask ----
    attn = jnp.dot(attn, wo_ref[...], preferred_element_type=jnp.float32) \
        + bo_ref[...]
    h1 = _layernorm(x2 + attn, ln1g_ref[...], ln1b_ref[...])        # (B*T, D)
    h1_3 = h1.reshape(Bb, T, D) * m[:, :, None]                      # masked
    h1_2 = h1_3.reshape(Bb * T, D)

    # ---- conv FFN: kernel-size-3 'same' conv as one wide im2col matmul ----
    F = w1_ref.shape[-1]
    im1 = _shift_cat(h1_3, Bb, T).reshape(Bb * T, 3 * D)             # (B*T, 3D)
    ff = jnp.dot(im1, w1_ref[...], preferred_element_type=jnp.float32) \
        + b1_ref[...]
    ff = jnp.maximum(ff, 0.0)
    im2 = _shift_cat(ff.reshape(Bb, T, F), Bb, T).reshape(Bb * T, 3 * F)
    ff2 = jnp.dot(im2, w2_ref[...], preferred_element_type=jnp.float32) \
        + b2_ref[...]

    # ---- residual + LN2 + time mask ----
    out = _layernorm(h1_2 + ff2, ln2g_ref[...], ln2b_ref[...])
    o_ref[...] = out.reshape(Bb, T, D) * m[:, :, None]


def fused_fft_block(x, mask, p):
    """x: (B, T, D); mask: (B, T) float.  One pallas_call per block."""
    Bx, T, D = x.shape
    kern = functools.partial(_fft_block_kernel, n_heads=N_HEADS)
    return pl.pallas_call(
        kern,
        out_shape=jax.ShapeDtypeStruct((Bx, T, D), jnp.float32),
    )(x, mask,
      p["wqkv"], p["bqkv"], p["wo"], p["bo"],
      p["ln1_g"], p["ln1_b"],
      p["w1"], p["b1"], p["w2"], p["b2"],
      p["ln2_g"], p["ln2_b"])


def _duration_kernel(x_ref, m_ref,
                     w1_ref, b1_ref, g1_ref, be1_ref,
                     w2_ref, b2_ref, g2_ref, be2_ref,
                     wl_ref, bl_ref, o_ref):
    """Fused duration predictor: conv+ReLU+LN -> conv+ReLU+LN -> linear."""
    Bb, T, D = x_ref.shape
    F = w1_ref.shape[-1]
    x = x_ref[...]
    m = m_ref[...]

    im1 = _shift_cat(x, Bb, T).reshape(Bb * T, 3 * D)
    h = jnp.dot(im1, w1_ref[...], preferred_element_type=jnp.float32) \
        + b1_ref[...]
    h = jnp.maximum(h, 0.0)
    h = _layernorm(h, g1_ref[...], be1_ref[...])

    im2 = _shift_cat(h.reshape(Bb, T, F), Bb, T).reshape(Bb * T, 3 * F)
    h = jnp.dot(im2, w2_ref[...], preferred_element_type=jnp.float32) \
        + b2_ref[...]
    h = jnp.maximum(h, 0.0)
    h = _layernorm(h, g2_ref[...], be2_ref[...])

    # final (F -> 1) linear done as a lane reduction -> (B, T)
    logd = jnp.sum(h.reshape(Bb, T, F) * wl_ref[...], axis=-1) + bl_ref[...]
    o_ref[...] = logd * m


def duration_predict(x, mask, p):
    Bx, T, D = x.shape
    return pl.pallas_call(
        _duration_kernel,
        out_shape=jax.ShapeDtypeStruct((Bx, T), jnp.float32),
    )(x, mask,
      p["dw1"], p["db1"], p["dln1_g"], p["dln1_b"],
      p["dw2"], p["db2"], p["dln2_g"], p["dln2_b"],
      p["dwl"], p["dbl"])


def _linear_kernel(x_ref, w_ref, b_ref, o_ref):
    o_ref[...] = (
        jnp.dot(x_ref[...], w_ref[...], preferred_element_type=jnp.float32)
        + b_ref[...]
    )


def linear2d(x2d, w, b2d):
    M, K = x2d.shape
    N = w.shape[1]
    return pl.pallas_call(
        _linear_kernel,
        out_shape=jax.ShapeDtypeStruct((M, N), jnp.float32),
    )(x2d, w, b2d)


# --------------------------- model glue (plain JAX) --------------------------
def expand_by_duration(hidden, durations, max_mel):
    """Length-regulator expansion (dynamic gather done in plain JAX glue)."""
    Bx, T, D = hidden.shape
    ends = jnp.cumsum(durations, axis=1)                       # (B, T)
    total = ends[:, -1]
    frames = jnp.arange(max_mel, dtype=durations.dtype)
    idx = jnp.sum((ends[:, None, :] <= frames[None, :, None]).astype(jnp.int32),
                  axis=-1)
    idx = jnp.clip(idx, 0, T - 1).astype(jnp.int32)
    valid = (frames[None, :] < total[:, None]).astype(hidden.dtype)   # (B, max_mel)
    gathered = jnp.take_along_axis(hidden, idx[:, :, None], axis=1)
    return gathered * valid[:, :, None], valid


def fastspeech_forward(params, tokens, teacher_durations=None, mel_spec_length=None):
    Bx, T = tokens.shape
    D = EMBED_DIM

    # mask1 = get_mask(x)
    mask1 = (tokens != PADDING_IDX).astype(jnp.float32)        # (B, T)

    # token embedding + positional encoding (dropout omitted: eval mode)
    emb = params["embedding"][tokens]                          # (B, T, D)
    x = emb + params["pos_enc"][:T][None, :, :]

    for lp in params["fft1"]:
        x = fused_fft_block(x, mask1, lp)
    first_hidden = x

    # length regulator
    logd = duration_predict(first_hidden, mask1, params["dur"])
    if teacher_durations is not None:
        durations = teacher_durations.astype(jnp.float32)
    else:
        durations = jnp.clip(jnp.round(jnp.exp(logd) - 1.0), 0.0, None)
    durations = jnp.round(durations * ALPHA) * mask1
    max_mel = int(mel_spec_length) if mel_spec_length is not None else MAX_MEL
    aligned, valid = expand_by_duration(first_hidden, durations, max_mel)

    # mask2: structural frame-validity mask (equivalent to the original
    # get_mask(aligned_hidden).all(dim=2) for zero-padded expanded frames,
    # but robust to hidden values that happen to be exactly zero).
    mask2 = valid                                              # (B, max_mel)

    y = aligned + params["pos_enc"][:max_mel][None, :, :]
    for lp in params["fft2"]:
        y = fused_fft_block(y, mask2, lp)

    mel = linear2d(y.reshape(Bx * max_mel, D), params["proj_w"], params["proj_b"])
    mel = mel.reshape(Bx, max_mel, N_MELS)
    return mel, logd


# ----------------------------- parameter init -------------------------------
def sinusoidal_pe(max_len, d):
    pos = jnp.arange(max_len, dtype=jnp.float32)[:, None]
    i = jnp.arange(d // 2, dtype=jnp.float32)[None, :]
    angles = pos / jnp.power(10000.0, 2.0 * i / d)
    pe = jnp.zeros((max_len, d), jnp.float32)
    pe = pe.at[:, 0::2].set(jnp.sin(angles))
    pe = pe.at[:, 1::2].set(jnp.cos(angles))
    return pe


def init_params(key):
    keys = iter(jax.random.split(key, 512))

    def w(shape):
        return jax.random.normal(next(keys), shape, jnp.float32) * 0.1

    def fft_layer_params():
        D, F = EMBED_DIM, INTER_FEAT
        return {
            # fused QKV weight (D, 3D) and conv weights in im2col layout (3*Cin, Cout)
            "wqkv": w((D, 3 * D)), "bqkv": jnp.zeros((1, 3 * D), jnp.float32),
            "wo": w((D, D)), "bo": jnp.zeros((1, D), jnp.float32),
            "ln1_g": jnp.ones((1, D), jnp.float32), "ln1_b": jnp.zeros((1, D), jnp.float32),
            "w1": w((3 * D, F)), "b1": jnp.zeros((1, F), jnp.float32),
            "w2": w((3 * F, D)), "b2": jnp.zeros((1, D), jnp.float32),
            "ln2_g": jnp.ones((1, D), jnp.float32), "ln2_b": jnp.zeros((1, D), jnp.float32),
        }

    D, Fd = EMBED_DIM, N_MELS
    emb = w((VOCAB_SIZE, D))
    emb = emb.at[PADDING_IDX].set(0.0)

    params = {
        "embedding": emb,
        "pos_enc": sinusoidal_pe(MAX_LEN_PE, D),
        "fft1": [fft_layer_params() for _ in range(N_TRANSFORMERS)],
        "fft2": [fft_layer_params() for _ in range(N_TRANSFORMERS)],
        "dur": {
            "dw1": w((3 * D, Fd)), "db1": jnp.zeros((1, Fd), jnp.float32),
            "dln1_g": jnp.ones((1, Fd), jnp.float32), "dln1_b": jnp.zeros((1, Fd), jnp.float32),
            "dw2": w((3 * Fd, Fd)), "db2": jnp.zeros((1, Fd), jnp.float32),
            "dln2_g": jnp.ones((1, Fd), jnp.float32), "dln2_b": jnp.zeros((1, Fd), jnp.float32),
            "dwl": w((1, 1, Fd)), "dbl": jnp.zeros((1, 1), jnp.float32),
        },
        "proj_w": w((D, N_MELS)),
        "proj_b": jnp.zeros((1, N_MELS), jnp.float32),
    }
    return params


# --------------------------------- main --------------------------------------
if __name__ == "__main__":
    key = jax.random.PRNGKey(0)
    pkey, tkey, dkey = jax.random.split(key, 3)

    params = init_params(pkey)

    tokens = jax.random.randint(tkey, (B, T_TOK), 1, VOCAB_SIZE, dtype=jnp.int32)
    tokens = tokens.at[1, 6:].set(PADDING_IDX)                 # some padding

    teacher_durations = jax.random.randint(dkey, (B, T_TOK), 1, 4, dtype=jnp.int32)
    teacher_durations = jnp.where(tokens != PADDING_IDX, teacher_durations, 0)

    fwd = jax.jit(functools.partial(fastspeech_forward, mel_spec_length=MAX_MEL))
    mel, log_dur = fwd(params, tokens, teacher_durations)
    jax.block_until_ready((mel, log_dur))

    assert mel.shape == (B, MAX_MEL, N_MELS)
    assert log_dur.shape == (B, T_TOK)
    print("KERNEL_OK")
</pallas_src>

<mosaic_0001>
module attributes {stable_mosaic.version = 11 : i64} {
  func.func @_fft_block_kernel(%arg0: memref<2x24x32xf32, #tpu.memory_space<vmem>>, %arg1: memref<2x24xf32, #tpu.memory_space<vmem>>, %arg2: memref<32x96xf32, #tpu.memory_space<vmem>>, %arg3: memref<1x96xf32, #tpu.memory_space<vmem>>, %arg4: memref<32x32xf32, #tpu.memory_space<vmem>>, %arg5: memref<1x32xf32, #tpu.memory_space<vmem>>, %arg6: memref<1x32xf32, #tpu.memory_space<vmem>>, %arg7: memref<1x32xf32, #tpu.memory_space<vmem>>, %arg8: memref<96x64xf32, #tpu.memory_space<vmem>>, %arg9: memref<1x64xf32, #tpu.memory_space<vmem>>, %arg10: memref<192x32xf32, #tpu.memory_space<vmem>>, %arg11: memref<1x32xf32, #tpu.memory_space<vmem>>, %arg12: memref<1x32xf32, #tpu.memory_space<vmem>>, %arg13: memref<1x32xf32, #tpu.memory_space<vmem>>, %arg14: memref<2x24x32xf32, #tpu.memory_space<vmem>>) attributes {dimension_semantics = [], scalar_prefetch = 0 : i64, scratch_operands = 0 : i64, tpu.core_type = #tpu.core_type<tc>} {
    %c0 = arith.constant 0 : index
    %c0_0 = arith.constant 0 : index
    %c0_1 = arith.constant 0 : index
    %0 = vector.load %arg0[%c0, %c0_0, %c0_1] : memref<2x24x32xf32, #tpu.memory_space<vmem>>, vector<2x24x32xf32>
    %c0_2 = arith.constant 0 : index
    %c0_3 = arith.constant 0 : index
    %1 = vector.load %arg1[%c0_2, %c0_3] : memref<2x24xf32, #tpu.memory_space<vmem>>, vector<2x24xf32>
    %2 = vector.shape_cast %0 : vector<2x24x32xf32> to vector<48x32xf32>
    %c0_4 = arith.constant 0 : index
    %c0_5 = arith.constant 0 : index
    %3 = vector.load %arg2[%c0_4, %c0_5] : memref<32x96xf32, #tpu.memory_space<vmem>>, vector<32x96xf32>
    %cst = arith.constant dense<0.000000e+00> : vector<48x96xf32>
    %4 = tpu.matmul %2, %3, %cst {dimension_numbers = #tpu.dot_dimension_numbers<[1], [0], [0], [1], [0, 0, 1, 1], [], []>} : vector<48x32xf32>, vector<32x96xf32>, vector<48x96xf32> -> vector<48x96xf32>
    %c0_6 = arith.constant 0 : index
    %c0_7 = arith.constant 0 : index
    %5 = vector.load %arg3[%c0_6, %c0_7] : memref<1x96xf32, #tpu.memory_space<vmem>>, vector<1x96xf32>
    %6 = vector.broadcast %5 : vector<1x96xf32> to vector<48x96xf32>
    %7 = arith.addf %4, %6 : vector<48x96xf32>
    %8 = vector.shape_cast %7 : vector<48x96xf32> to vector<2x24x96xf32>
    %9 = vector.shape_cast %1 : vector<2x24xf32> to vector<2x1x24xf32>
    %cst_8 = arith.constant 5.000000e-01 : f32
    %10 = vector.broadcast %cst_8 : f32 to vector<2x1x24xf32>
    %11 = arith.cmpf ogt, %9, %10 : vector<2x1x24xf32>
    %12 = vector.extract_strided_slice %8 {offsets = [0, 0, 0], sizes = [2, 24, 16], strides = [1, 1, 1]} : vector<2x24x96xf32> to vector<2x24x16xf32>
    %13 = vector.extract_strided_slice %8 {offsets = [0, 0, 32], sizes = [2, 24, 16], strides = [1, 1, 1]} : vector<2x24x96xf32> to vector<2x24x16xf32>
    %14 = vector.extract_strided_slice %8 {offsets = [0, 0, 64], sizes = [2, 24, 16], strides = [1, 1, 1]} : vector<2x24x96xf32> to vector<2x24x16xf32>
    "tpu.trace_start"() <{level = 10 : i32, message = "bqd,bkd->bqk"}> : () -> ()
    %cst_9 = arith.constant dense<0.000000e+00> : vector<2x24x24xf32>
    %15 = tpu.matmul %12, %13, %cst_9 {dimension_numbers = #tpu.dot_dimension_numbers<[2], [2], [1], [1], [0, 0, 0, 1, 1, 1], [0], [0]>} : vector<2x24x16xf32>, vector<2x24x16xf32>, vector<2x24x24xf32> -> vector<2x24x24xf32>
    "tpu.trace_stop"() : () -> ()
    %cst_10 = arith.constant 2.500000e-01 : f32
    %16 = vector.broadcast %cst_10 : f32 to vector<2x24x24xf32>
    %17 = arith.mulf %15, %16 : vector<2x24x24xf32>
    %cst_11 = arith.constant -1.000000e+09 : f32
    %18 = vector.shape_cast %11 : vector<2x1x24xi1> to vector<2x1x24xi1>
    %19 = vector.broadcast %18 : vector<2x1x24xi1> to vector<2x24x24xi1>
    %20 = vector.broadcast %cst_11 : f32 to vector<2x24x24xf32>
    %21 = arith.select %19, %17, %20 : vector<2x24x24xi1>, vector<2x24x24xf32>
    %cst_12 = arith.constant dense<0xFF800000> : vector<2x24xf32>
    %22 = vector.multi_reduction <maximumf>, %21, %cst_12 [2] : vector<2x24x24xf32> to vector<2x24xf32>
    %23 = vector.shape_cast %22 : vector<2x24xf32> to vector<2x24x1xf32>
    %24 = vector.broadcast %23 : vector<2x24x1xf32> to vector<2x24x24xf32>
    %25 = arith.subf %21, %24 : vector<2x24x24xf32>
    %26 = math.exp %25 : vector<2x24x24xf32>
    %cst_13 = arith.constant dense<0.000000e+00> : vector<2x24xf32>
    %27 = vector.multi_reduction <add>, %26, %cst_13 [2] : vector<2x24x24xf32> to vector<2x24xf32>
    %28 = vector.shape_cast %27 : vector<2x24xf32> to vector<2x24x1xf32>
    %29 = vector.broadcast %28 : vector<2x24x1xf32> to vector<2x24x24xf32>
    %30 = arith.divf %26, %29 : vector<2x24x24xf32>
    "tpu.trace_start"() <{level = 10 : i32, message = "bqk,bkd->bqd"}> : () -> ()
    %cst_14 = arith.constant dense<0.000000e+00> : vector<2x24x16xf32>
    %31 = tpu.matmul %30, %14, %cst_14 {dimension_numbers = #tpu.dot_dimension_numbers<[2], [1], [1], [2], [0, 0, 0, 1, 1, 2], [0], [0]>} : vector<2x24x24xf32>, vector<2x24x16xf32>, vector<2x24x16xf32> -> vector<2x24x16xf32>
    "tpu.trace_stop"() : () -> ()
    %32 = vector.extract_strided_slice %8 {offsets = [0, 0, 16], sizes = [2, 24, 16], strides = [1, 1, 1]} : vector<2x24x96xf32> to vector<2x24x16xf32>
    %33 = vector.extract_strided_slice %8 {offsets = [0, 0, 48], sizes = [2, 24, 16], strides = [1, 1, 1]} : vector<2x24x96xf32> to vector<2x24x16xf32>
    %34 = vector.extract_strided_slice %8 {offsets = [0, 0, 80], sizes = [2, 24, 16], strides = [1, 1, 1]} : vector<2x24x96xf32> to vector<2x24x16xf32>
    "tpu.trace_start"() <{level = 10 : i32, message = "bqd,bkd->bqk"}> : () -> ()
    %cst_15 = arith.constant dense<0.000000e+00> : vector<2x24x24xf32>
    %35 = tpu.matmul %32, %33, %cst_15 {dimension_numbers = #tpu.dot_dimension_numbers<[2], [2], [1], [1], [0, 0, 0, 1, 1, 1], [0], [0]>} : vector<2x24x16xf32>, vector<2x24x16xf32>, vector<2x24x24xf32> -> vector<2x24x24xf32>
    "tpu.trace_stop"() : () -> ()
    %cst_16 = arith.constant 2.500000e-01 : f32
    %36 = vector.broadcast %cst_16 : f32 to vector<2x24x24xf32>
    %37 = arith.mulf %35, %36 : vector<2x24x24xf32>
    %cst_17 = arith.constant -1.000000e+09 : f32
    %38 = vector.shape_cast %11 : vector<2x1x24xi1> to vector<2x1x24xi1>
    %39 = vector.broadcast %38 : vector<2x1x24xi1> to vector<2x24x24xi1>
    %40 = vector.broadcast %cst_17 : f32 to vector<2x24x24xf32>
    %41 = arith.select %39, %37, %40 : vector<2x24x24xi1>, vector<2x24x24xf32>
    %cst_18 = arith.constant dense<0xFF800000> : vector<2x24xf32>
    %42 = vector.multi_reduction <maximumf>, %41, %cst_18 [2] : vector<2x24x24xf32> to vector<2x24xf32>
    %43 = vector.shape_cast %42 : vector<2x24xf32> to vector<2x24x1xf32>
    %44 = vector.broadcast %43 : vector<2x24x1xf32> to vector<2x24x24xf32>
    %45 = arith.subf %41, %44 : vector<2x24x24xf32>
    %46 = math.exp %45 : vector<2x24x24xf32>
    %cst_19 = arith.constant dense<0.000000e+00> : vector<2x24xf32>
    %47 = vector.multi_reduction <add>, %46, %cst_19 [2] : vector<2x24x24xf32> to vector<2x24xf32>
    %48 = vector.shape_cast %47 : vector<2x24xf32> to vector<2x24x1xf32>
    %49 = vector.broadcast %48 : vector<2x24x1xf32> to vector<2x24x24xf32>
    %50 = arith.divf %46, %49 : vector<2x24x24xf32>
    "tpu.trace_start"() <{level = 10 : i32, message = "bqk,bkd->bqd"}> : () -> ()
    %cst_20 = arith.constant dense<0.000000e+00> : vector<2x24x16xf32>
    %51 = tpu.matmul %50, %34, %cst_20 {dimension_numbers = #tpu.dot_dimension_numbers<[2], [1], [1], [2], [0, 0, 0, 1, 1, 2], [0], [0]>} : vector<2x24x24xf32>, vector<2x24x16xf32>, vector<2x24x16xf32> -> vector<2x24x16xf32>
    "tpu.trace_stop"() : () -> ()
    %52 = tpu.concatenate %31, %51 in 2 : vector<2x24x16xf32>, vector<2x24x16xf32> -> vector<2x24x32xf32>
    %53 = vector.shape_cast %52 : vector<2x24x32xf32> to vector<48x32xf32>
    %c0_21 = arith.constant 0 : index
    %c0_22 = arith.constant 0 : index
    %54 = vector.load %arg4[%c0_21, %c0_22] : memref<32x32xf32, #tpu.memory_space<vmem>>, vector<32x32xf32>
    %cst_23 = arith.constant dense<0.000000e+00> : vector<48x32xf32>
    %55 = tpu.matmul %53, %54, %cst_23 {dimension_numbers = #tpu.dot_dimension_numbers<[1], [0], [0], [1], [0, 0, 1, 1], [], []>} : vector<48x32xf32>, vector<32x32xf32>, vector<48x32xf32> -> vector<48x32xf32>
    %c0_24 = arith.constant 0 : index
    %c0_25 = arith.constant 0 : index
    %56 = vector.load %arg5[%c0_24, %c0_25] : memref<1x32xf32, #tpu.memory_space<vmem>>, vector<1x32xf32>
    %57 = vector.broadcast %56 : vector<1x32xf32> to vector<48x32xf32>
    %58 = arith.addf %55, %57 : vector<48x32xf32>
    %59 = arith.addf %2, %58 : vector<48x32xf32>
    %c0_26 = arith.constant 0 : index
    %c0_27 = arith.constant 0 : index
    %60 = vector.load %arg6[%c0_26, %c0_27] : memref<1x32xf32, #tpu.memory_space<vmem>>, vector<1x32xf32>
    %c0_28 = arith.constant 0 : index
    %c0_29 = arith.constant 0 : index
    %61 = vector.load %arg7[%c0_28, %c0_29] : memref<1x32xf32, #tpu.memory_space<vmem>>, vector<1x32xf32>
    %cst_30 = arith.constant dense<0.000000e+00> : vector<48xf32>
    %62 = vector.multi_reduction <add>, %59, %cst_30 [1] : vector<48x32xf32> to vector<48xf32>
    %63 = vector.shape_cast %62 : vector<48xf32> to vector<48x1xf32>
    %cst_31 = arith.constant 3.200000e+01 : f32
    %64 = vector.broadcast %cst_31 : f32 to vector<48x1xf32>
    %65 = arith.divf %63, %64 : vector<48x1xf32>
    %66 = vector.broadcast %65 : vector<48x1xf32> to vector<48x32xf32>
    %67 = arith.subf %59, %66 : vector<48x32xf32>
    %68 = arith.mulf %67, %67 : vector<48x32xf32>
    %cst_32 = arith.constant dense<0.000000e+00> : vector<48xf32>
    %69 = vector.multi_reduction <add>, %68, %cst_32 [1] : vector<48x32xf32> to vector<48xf32>
    %70 = vector.shape_cast %69 : vector<48xf32> to vector<48x1xf32>
    %cst_33 = arith.constant 3.200000e+01 : f32
    %71 = vector.broadcast %cst_33 : f32 to vector<48x1xf32>
    %72 = arith.divf %70, %71 : vector<48x1xf32>
    %73 = vector.broadcast %65 : vector<48x1xf32> to vector<48x32xf32>
    %74 = arith.subf %59, %73 : vector<48x32xf32>
    %cst_34 = arith.constant 9.99999974E-6 : f32
    %75 = vector.broadcast %cst_34 : f32 to vector<48x1xf32>
    %76 = arith.addf %72, %75 : vector<48x1xf32>
    %77 = math.rsqrt %76 : vector<48x1xf32>
    %78 = vector.broadcast %77 : vector<48x1xf32> to vector<48x32xf32>
    %79 = arith.mulf %74, %78 : vector<48x32xf32>
    %80 = vector.broadcast %60 : vector<1x32xf32> to vector<48x32xf32>
    %81 = arith.mulf %79, %80 : vector<48x32xf32>
    %82 = vector.broadcast %61 : vector<1x32xf32> to vector<48x32xf32>
    %83 = arith.addf %81, %82 : vector<48x32xf32>
    %84 = vector.shape_cast %83 : vector<48x32xf32> to vector<2x24x32xf32>
    %85 = vector.shape_cast %1 : vector<2x24xf32> to vector<2x24x1xf32>
    %86 = vector.broadcast %85 : vector<2x24x1xf32> to vector<2x24x32xf32>
    %87 = arith.mulf %84, %86 : vector<2x24x32xf32>
    %88 = vector.shape_cast %87 : vector<2x24x32xf32> to vector<48x32xf32>
    %cst_35 = arith.constant 0.000000e+00 : f32
    %89 = vector.broadcast %cst_35 : f32 to vector<2x1x32xf32>
    %90 = vector.extract_strided_slice %87 {offsets = [0, 0, 0], sizes = [2, 23, 32], strides = [1, 1, 1]} : vector<2x24x32xf32> to vector<2x23x32xf32>
    %91 = tpu.concatenate %89, %90 in 1 : vector<2x1x32xf32>, vector<2x23x32xf32> -> vector<2x24x32xf32>
    %92 = vector.extract_strided_slice %87 {offsets = [0, 1, 0], sizes = [2, 23, 32], strides = [1, 1, 1]} : vector<2x24x32xf32> to vector<2x23x32xf32>
    %93 = tpu.concatenate %92, %89 in 1 : vector<2x23x32xf32>, vector<2x1x32xf32> -> vector<2x24x32xf32>
    %94 = tpu.concatenate %91, %87, %93 in 2 : vector<2x24x32xf32>, vector<2x24x32xf32>, vector<2x24x32xf32> -> vector<2x24x96xf32>
    %95 = vector.shape_cast %94 : vector<2x24x96xf32> to vector<48x96xf32>
    %c0_36 = arith.constant 0 : index
    %c0_37 = arith.constant 0 : index
    %96 = vector.load %arg8[%c0_36, %c0_37] : memref<96x64xf32, #tpu.memory_space<vmem>>, vector<96x64xf32>
    %cst_38 = arith.constant dense<0.000000e+00> : vector<48x64xf32>
    %97 = tpu.matmul %95, %96, %cst_38 {dimension_numbers = #tpu.dot_dimension_numbers<[1], [0], [0], [1], [0, 0, 1, 1], [], []>} : vector<48x96xf32>, vector<96x64xf32>, vector<48x64xf32> -> vector<48x64xf32>
    %c0_39 = arith.constant 0 : index
    %c0_40 = arith.constant 0 : index
    %98 = vector.load %arg9[%c0_39, %c0_40] : memref<1x64xf32, #tpu.memory_space<vmem>>, vector<1x64xf32>
    %99 = vector.broadcast %98 : vector<1x64xf32> to vector<48x64xf32>
    %100 = arith.addf %97, %99 : vector<48x64xf32>
    %cst_41 = arith.constant 0.000000e+00 : f32
    %101 = vector.broadcast %cst_41 : f32 to vector<48x64xf32>
    %102 = arith.maximumf %100, %101 : vector<48x64xf32>
    %103 = vector.shape_cast %102 : vector<48x64xf32> to vector<2x24x64xf32>
    %cst_42 = arith.constant 0.000000e+00 : f32
    %104 = vector.broadcast %cst_42 : f32 to vector<2x1x64xf32>
    %105 = vector.extract_strided_slice %103 {offsets = [0, 0, 0], sizes = [2, 23, 64], strides = [1, 1, 1]} : vector<2x24x64xf32> to vector<2x23x64xf32>
    %106 = tpu.concatenate %104, %105 in 1 : vector<2x1x64xf32>, vector<2x23x64xf32> -> vector<2x24x64xf32>
    %107 = vector.extract_strided_slice %103 {offsets = [0, 1, 0], sizes = [2, 23, 64], strides = [1, 1, 1]} : vector<2x24x64xf32> to vector<2x23x64xf32>
    %108 = tpu.concatenate %107, %104 in 1 : vector<2x23x64xf32>, vector<2x1x64xf32> -> vector<2x24x64xf32>
    %109 = tpu.concatenate %106, %103, %108 in 2 : vector<2x24x64xf32>, vector<2x24x64xf32>, vector<2x24x64xf32> -> vector<2x24x192xf32>
    %110 = vector.shape_cast %109 : vector<2x24x192xf32> to vector<48x192xf32>
    %c0_43 = arith.constant 0 : index
    %c0_44 = arith.constant 0 : index
    %111 = vector.load %arg10[%c0_43, %c0_44] : memref<192x32xf32, #tpu.memory_space<vmem>>, vector<192x32xf32>
    %cst_45 = arith.constant dense<0.000000e+00> : vector<48x32xf32>
    %112 = tpu.matmul %110, %111, %cst_45 {dimension_numbers = #tpu.dot_dimension_numbers<[1], [0], [0], [1], [0, 0, 1, 1], [], []>} : vector<48x192xf32>, vector<192x32xf32>, vector<48x32xf32> -> vector<48x32xf32>
    %c0_46 = arith.constant 0 : index
    %c0_47 = arith.constant 0 : index
    %113 = vector.load %arg11[%c0_46, %c0_47] : memref<1x32xf32, #tpu.memory_space<vmem>>, vector<1x32xf32>
    %114 = vector.broadcast %113 : vector<1x32xf32> to vector<48x32xf32>
    %115 = arith.addf %112, %114 : vector<48x32xf32>
    %116 = arith.addf %88, %115 : vector<48x32xf32>
    %c0_48 = arith.constant 0 : index
    %c0_49 = arith.constant 0 : index
    %117 = vector.load %arg12[%c0_48, %c0_49] : memref<1x32xf32, #tpu.memory_space<vmem>>, vector<1x32xf32>
    %c0_50 = arith.constant 0 : index
    %c0_51 = arith.constant 0 : index
    %118 = vector.load %arg13[%c0_50, %c0_51] : memref<1x32xf32, #tpu.memory_space<vmem>>, vector<1x32xf32>
    %cst_52 = arith.constant dense<0.000000e+00> : vector<48xf32>
    %119 = vector.multi_reduction <add>, %116, %cst_52 [1] : vector<48x32xf32> to vector<48xf32>
    %120 = vector.shape_cast %119 : vector<48xf32> to vector<48x1xf32>
    %cst_53 = arith.constant 3.200000e+01 : f32
    %121 = vector.broadcast %cst_53 : f32 to vector<48x1xf32>
    %122 = arith.divf %120, %121 : vector<48x1xf32>
    %123 = vector.broadcast %122 : vector<48x1xf32> to vector<48x32xf32>
    %124 = arith.subf %116, %123 : vector<48x32xf32>
    %125 = arith.mulf %124, %124 : vector<48x32xf32>
    %cst_54 = arith.constant dense<0.000000e+00> : vector<48xf32>
    %126 = vector.multi_reduction <add>, %125, %cst_54 [1] : vector<48x32xf32> to vector<48xf32>
    %127 = vector.shape_cast %126 : vector<48xf32> to vector<48x1xf32>
    %cst_55 = arith.constant 3.200000e+01 : f32
    %128 = vector.broadcast %cst_55 : f32 to vector<48x1xf32>
    %129 = arith.divf %127, %128 : vector<48x1xf32>
    %130 = vector.broadcast %122 : vector<48x1xf32> to vector<48x32xf32>
    %131 = arith.subf %116, %130 : vector<48x32xf32>
    %cst_56 = arith.constant 9.99999974E-6 : f32
    %132 = vector.broadcast %cst_56 : f32 to vector<48x1xf32>
    %133 = arith.addf %129, %132 : vector<48x1xf32>
    %134 = math.rsqrt %133 : vector<48x1xf32>
    %135 = vector.broadcast %134 : vector<48x1xf32> to vector<48x32xf32>
    %136 = arith.mulf %131, %135 : vector<48x32xf32>
    %137 = vector.broadcast %117 : vector<1x32xf32> to vector<48x32xf32>
    %138 = arith.mulf %136, %137 : vector<48x32xf32>
    %139 = vector.broadcast %118 : vector<1x32xf32> to vector<48x32xf32>
    %140 = arith.addf %138, %139 : vector<48x32xf32>
    %141 = vector.shape_cast %140 : vector<48x32xf32> to vector<2x24x32xf32>
    %142 = vector.shape_cast %1 : vector<2x24xf32> to vector<2x24x1xf32>
    %143 = vector.broadcast %142 : vector<2x24x1xf32> to vector<2x24x32xf32>
    %144 = arith.mulf %141, %143 : vector<2x24x32xf32>
    %c0_57 = arith.constant 0 : index
    %c0_58 = arith.constant 0 : index
    %c0_59 = arith.constant 0 : index
    %145 = vector.load %arg14[%c0_57, %c0_58, %c0_59] : memref<2x24x32xf32, #tpu.memory_space<vmem>>, vector<2x24x32xf32>
    tpu.vector_store %arg14[%c0_57, %c0_58, %c0_59], %144 {strides = array<i32>} : memref<2x24x32xf32, #tpu.memory_space<vmem>>, vector<2x24x32xf32>,
    return
  }
}

module attributes {stable_mosaic.version = 11 : i64} {
  func.func @_fft_block_kernel(%arg0: memref<2x8x32xf32, #tpu.memory_space<vmem>>, %arg1: memref<2x8xf32, #tpu.memory_space<vmem>>, %arg2: memref<32x96xf32, #tpu.memory_space<vmem>>, %arg3: memref<1x96xf32, #tpu.memory_space<vmem>>, %arg4: memref<32x32xf32, #tpu.memory_space<vmem>>, %arg5: memref<1x32xf32, #tpu.memory_space<vmem>>, %arg6: memref<1x32xf32, #tpu.memory_space<vmem>>, %arg7: memref<1x32xf32, #tpu.memory_space<vmem>>, %arg8: memref<96x64xf32, #tpu.memory_space<vmem>>, %arg9: memref<1x64xf32, #tpu.memory_space<vmem>>, %arg10: memref<192x32xf32, #tpu.memory_space<vmem>>, %arg11: memref<1x32xf32, #tpu.memory_space<vmem>>, %arg12: memref<1x32xf32, #tpu.memory_space<vmem>>, %arg13: memref<1x32xf32, #tpu.memory_space<vmem>>, %arg14: memref<2x8x32xf32, #tpu.memory_space<vmem>>) attributes {dimension_semantics = [], scalar_prefetch = 0 : i64, scratch_operands = 0 : i64, tpu.core_type = #tpu.core_type<tc>} {
    %c0 = arith.constant 0 : index
    %c0_0 = arith.constant 0 : index
    %c0_1 = arith.constant 0 : index
    %0 = vector.load %arg0[%c0, %c0_0, %c0_1] : memref<2x8x32xf32, #tpu.memory_space<vmem>>, vector<2x8x32xf32>
    %c0_2 = arith.constant 0 : index
    %c0_3 = arith.constant 0 : index
    %1 = vector.load %arg1[%c0_2, %c0_3] : memref<2x8xf32, #tpu.memory_space<vmem>>, vector<2x8xf32>
    %2 = vector.shape_cast %0 : vector<2x8x32xf32> to vector<16x32xf32>
    %c0_4 = arith.constant 0 : index
    %c0_5 = arith.constant 0 : index
    %3 = vector.load %arg2[%c0_4, %c0_5] : memref<32x96xf32, #tpu.memory_space<vmem>>, vector<32x96xf32>
    %cst = arith.constant dense<0.000000e+00> : vector<16x96xf32>
    %4 = tpu.matmul %2, %3, %cst {dimension_numbers = #tpu.dot_dimension_numbers<[1], [0], [0], [1], [0, 0, 1, 1], [], []>} : vector<16x32xf32>, vector<32x96xf32>, vector<16x96xf32> -> vector<16x96xf32>
    %c0_6 = arith.constant 0 : index
    %c0_7 = arith.constant 0 : index
    %5 = vector.load %arg3[%c0_6, %c0_7] : memref<1x96xf32, #tpu.memory_space<vmem>>, vector<1x96xf32>
    %6 = vector.broadcast %5 : vector<1x96xf32> to vector<16x96xf32>
    %7 = arith.addf %4, %6 : vector<16x96xf32>
    %8 = vector.shape_cast %7 : vector<16x96xf32> to vector<2x8x96xf32>
    %9 = vector.shape_cast %1 : vector<2x8xf32> to vector<2x1x8xf32>
    %cst_8 = arith.constant 5.000000e-01 : f32
    %10 = vector.broadcast %cst_8 : f32 to vector<2x1x8xf32>
    %11 = arith.cmpf ogt, %9, %10 : vector<2x1x8xf32>
    %12 = vector.extract_strided_slice %8 {offsets = [0, 0, 0], sizes = [2, 8, 16], strides = [1, 1, 1]} : vector<2x8x96xf32> to vector<2x8x16xf32>
    %13 = vector.extract_strided_slice %8 {offsets = [0, 0, 32], sizes = [2, 8, 16], strides = [1, 1, 1]} : vector<2x8x96xf32> to vector<2x8x16xf32>
    %14 = vector.extract_strided_slice %8 {offsets = [0, 0, 64], sizes = [2, 8, 16], strides = [1, 1, 1]} : vector<2x8x96xf32> to vector<2x8x16xf32>
    "tpu.trace_start"() <{level = 10 : i32, message = "bqd,bkd->bqk"}> : () -> ()
    %cst_9 = arith.constant dense<0.000000e+00> : vector<2x8x8xf32>
    %15 = tpu.matmul %12, %13, %cst_9 {dimension_numbers = #tpu.dot_dimension_numbers<[2], [2], [1], [1], [0, 0, 0, 1, 1, 1], [0], [0]>} : vector<2x8x16xf32>, vector<2x8x16xf32>, vector<2x8x8xf32> -> vector<2x8x8xf32>
    "tpu.trace_stop"() : () -> ()
    %cst_10 = arith.constant 2.500000e-01 : f32
    %16 = vector.broadcast %cst_10 : f32 to vector<2x8x8xf32>
    %17 = arith.mulf %15, %16 : vector<2x8x8xf32>
    %cst_11 = arith.constant -1.000000e+09 : f32
    %18 = vector.shape_cast %11 : vector<2x1x8xi1> to vector<2x1x8xi1>
    %19 = vector.broadcast %18 : vector<2x1x8xi1> to vector<2x8x8xi1>
    %20 = vector.broadcast %cst_11 : f32 to vector<2x8x8xf32>
    %21 = arith.select %19, %17, %20 : vector<2x8x8xi1>, vector<2x8x8xf32>
    %cst_12 = arith.constant dense<0xFF800000> : vector<2x8xf32>
    %22 = vector.multi_reduction <maximumf>, %21, %cst_12 [2] : vector<2x8x8xf32> to vector<2x8xf32>
    %23 = vector.shape_cast %22 : vector<2x8xf32> to vector<2x8x1xf32>
    %24 = vector.broadcast %23 : vector<2x8x1xf32> to vector<2x8x8xf32>
    %25 = arith.subf %21, %24 : vector<2x8x8xf32>
    %26 = math.exp %25 : vector<2x8x8xf32>
    %cst_13 = arith.constant dense<0.000000e+00> : vector<2x8xf32>
    %27 = vector.multi_reduction <add>, %26, %cst_13 [2] : vector<2x8x8xf32> to vector<2x8xf32>
    %28 = vector.shape_cast %27 : vector<2x8xf32> to vector<2x8x1xf32>
    %29 = vector.broadcast %28 : vector<2x8x1xf32> to vector<2x8x8xf32>
    %30 = arith.divf %26, %29 : vector<2x8x8xf32>
    "tpu.trace_start"() <{level = 10 : i32, message = "bqk,bkd->bqd"}> : () -> ()
    %cst_14 = arith.constant dense<0.000000e+00> : vector<2x8x16xf32>
    %31 = tpu.matmul %30, %14, %cst_14 {dimension_numbers = #tpu.dot_dimension_numbers<[2], [1], [1], [2], [0, 0, 0, 1, 1, 2], [0], [0]>} : vector<2x8x8xf32>, vector<2x8x16xf32>, vector<2x8x16xf32> -> vector<2x8x16xf32>
    "tpu.trace_stop"() : () -> ()
    %32 = vector.extract_strided_slice %8 {offsets = [0, 0, 16], sizes = [2, 8, 16], strides = [1, 1, 1]} : vector<2x8x96xf32> to vector<2x8x16xf32>
    %33 = vector.extract_strided_slice %8 {offsets = [0, 0, 48], sizes = [2, 8, 16], strides = [1, 1, 1]} : vector<2x8x96xf32> to vector<2x8x16xf32>
    %34 = vector.extract_strided_slice %8 {offsets = [0, 0, 80], sizes = [2, 8, 16], strides = [1, 1, 1]} : vector<2x8x96xf32> to vector<2x8x16xf32>
    "tpu.trace_start"() <{level = 10 : i32, message = "bqd,bkd->bqk"}> : () -> ()
    %cst_15 = arith.constant dense<0.000000e+00> : vector<2x8x8xf32>
    %35 = tpu.matmul %32, %33, %cst_15 {dimension_numbers = #tpu.dot_dimension_numbers<[2], [2], [1], [1], [0, 0, 0, 1, 1, 1], [0], [0]>} : vector<2x8x16xf32>, vector<2x8x16xf32>, vector<2x8x8xf32> -> vector<2x8x8xf32>
    "tpu.trace_stop"() : () -> ()
    %cst_16 = arith.constant 2.500000e-01 : f32
    %36 = vector.broadcast %cst_16 : f32 to vector<2x8x8xf32>
    %37 = arith.mulf %35, %36 : vector<2x8x8xf32>
    %cst_17 = arith.constant -1.000000e+09 : f32
    %38 = vector.shape_cast %11 : vector<2x1x8xi1> to vector<2x1x8xi1>
    %39 = vector.broadcast %38 : vector<2x1x8xi1> to vector<2x8x8xi1>
    %40 = vector.broadcast %cst_17 : f32 to vector<2x8x8xf32>
    %41 = arith.select %39, %37, %40 : vector<2x8x8xi1>, vector<2x8x8xf32>
    %cst_18 = arith.constant dense<0xFF800000> : vector<2x8xf32>
    %42 = vector.multi_reduction <maximumf>, %41, %cst_18 [2] : vector<2x8x8xf32> to vector<2x8xf32>
    %43 = vector.shape_cast %42 : vector<2x8xf32> to vector<2x8x1xf32>
    %44 = vector.broadcast %43 : vector<2x8x1xf32> to vector<2x8x8xf32>
    %45 = arith.subf %41, %44 : vector<2x8x8xf32>
    %46 = math.exp %45 : vector<2x8x8xf32>
    %cst_19 = arith.constant dense<0.000000e+00> : vector<2x8xf32>
    %47 = vector.multi_reduction <add>, %46, %cst_19 [2] : vector<2x8x8xf32> to vector<2x8xf32>
    %48 = vector.shape_cast %47 : vector<2x8xf32> to vector<2x8x1xf32>
    %49 = vector.broadcast %48 : vector<2x8x1xf32> to vector<2x8x8xf32>
    %50 = arith.divf %46, %49 : vector<2x8x8xf32>
    "tpu.trace_start"() <{level = 10 : i32, message = "bqk,bkd->bqd"}> : () -> ()
    %cst_20 = arith.constant dense<0.000000e+00> : vector<2x8x16xf32>
    %51 = tpu.matmul %50, %34, %cst_20 {dimension_numbers = #tpu.dot_dimension_numbers<[2], [1], [1], [2], [0, 0, 0, 1, 1, 2], [0], [0]>} : vector<2x8x8xf32>, vector<2x8x16xf32>, vector<2x8x16xf32> -> vector<2x8x16xf32>
    "tpu.trace_stop"() : () -> ()
    %52 = tpu.concatenate %31, %51 in 2 : vector<2x8x16xf32>, vector<2x8x16xf32> -> vector<2x8x32xf32>
    %53 = vector.shape_cast %52 : vector<2x8x32xf32> to vector<16x32xf32>
    %c0_21 = arith.constant 0 : index
    %c0_22 = arith.constant 0 : index
    %54 = vector.load %arg4[%c0_21, %c0_22] : memref<32x32xf32, #tpu.memory_space<vmem>>, vector<32x32xf32>
    %cst_23 = arith.constant dense<0.000000e+00> : vector<16x32xf32>
    %55 = tpu.matmul %53, %54, %cst_23 {dimension_numbers = #tpu.dot_dimension_numbers<[1], [0], [0], [1], [0, 0, 1, 1], [], []>} : vector<16x32xf32>, vector<32x32xf32>, vector<16x32xf32> -> vector<16x32xf32>
    %c0_24 = arith.constant 0 : index
    %c0_25 = arith.constant 0 : index
    %56 = vector.load %arg5[%c0_24, %c0_25] : memref<1x32xf32, #tpu.memory_space<vmem>>, vector<1x32xf32>
    %57 = vector.broadcast %56 : vector<1x32xf32> to vector<16x32xf32>
    %58 = arith.addf %55, %57 : vector<16x32xf32>
    %59 = arith.addf %2, %58 : vector<16x32xf32>
    %c0_26 = arith.constant 0 : index
    %c0_27 = arith.constant 0 : index
    %60 = vector.load %arg6[%c0_26, %c0_27] : memref<1x32xf32, #tpu.memory_space<vmem>>, vector<1x32xf32>
    %c0_28 = arith.constant 0 : index
    %c0_29 = arith.constant 0 : index
    %61 = vector.load %arg7[%c0_28, %c0_29] : memref<1x32xf32, #tpu.memory_space<vmem>>, vector<1x32xf32>
    %cst_30 = arith.constant dense<0.000000e+00> : vector<16xf32>
    %62 = vector.multi_reduction <add>, %59, %cst_30 [1] : vector<16x32xf32> to vector<16xf32>
    %63 = vector.shape_cast %62 : vector<16xf32> to vector<16x1xf32>
    %cst_31 = arith.constant 3.200000e+01 : f32
    %64 = vector.broadcast %cst_31 : f32 to vector<16x1xf32>
    %65 = arith.divf %63, %64 : vector<16x1xf32>
    %66 = vector.broadcast %65 : vector<16x1xf32> to vector<16x32xf32>
    %67 = arith.subf %59, %66 : vector<16x32xf32>
    %68 = arith.mulf %67, %67 : vector<16x32xf32>
    %cst_32 = arith.constant dense<0.000000e+00> : vector<16xf32>
    %69 = vector.multi_reduction <add>, %68, %cst_32 [1] : vector<16x32xf32> to vector<16xf32>
    %70 = vector.shape_cast %69 : vector<16xf32> to vector<16x1xf32>
    %cst_33 = arith.constant 3.200000e+01 : f32
    %71 = vector.broadcast %cst_33 : f32 to vector<16x1xf32>
    %72 = arith.divf %70, %71 : vector<16x1xf32>
    %73 = vector.broadcast %65 : vector<16x1xf32> to vector<16x32xf32>
    %74 = arith.subf %59, %73 : vector<16x32xf32>
    %cst_34 = arith.constant 9.99999974E-6 : f32
    %75 = vector.broadcast %cst_34 : f32 to vector<16x1xf32>
    %76 = arith.addf %72, %75 : vector<16x1xf32>
    %77 = math.rsqrt %76 : vector<16x1xf32>
    %78 = vector.broadcast %77 : vector<16x1xf32> to vector<16x32xf32>
    %79 = arith.mulf %74, %78 : vector<16x32xf32>
    %80 = vector.broadcast %60 : vector<1x32xf32> to vector<16x32xf32>
    %81 = arith.mulf %79, %80 : vector<16x32xf32>
    %82 = vector.broadcast %61 : vector<1x32xf32> to vector<16x32xf32>
    %83 = arith.addf %81, %82 : vector<16x32xf32>
    %84 = vector.shape_cast %83 : vector<16x32xf32> to vector<2x8x32xf32>
    %85 = vector.shape_cast %1 : vector<2x8xf32> to vector<2x8x1xf32>
    %86 = vector.broadcast %85 : vector<2x8x1xf32> to vector<2x8x32xf32>
    %87 = arith.mulf %84, %86 : vector<2x8x32xf32>
    %88 = vector.shape_cast %87 : vector<2x8x32xf32> to vector<16x32xf32>
    %cst_35 = arith.constant 0.000000e+00 : f32
    %89 = vector.broadcast %cst_35 : f32 to vector<2x1x32xf32>
    %90 = vector.extract_strided_slice %87 {offsets = [0, 0, 0], sizes = [2, 7, 32], strides = [1, 1, 1]} : vector<2x8x32xf32> to vector<2x7x32xf32>
    %91 = tpu.concatenate %89, %90 in 1 : vector<2x1x32xf32>, vector<2x7x32xf32> -> vector<2x8x32xf32>
    %92 = vector.extract_strided_slice %87 {offsets = [0, 1, 0], sizes = [2, 7, 32], strides = [1, 1, 1]} : vector<2x8x32xf32> to vector<2x7x32xf32>
    %93 = tpu.concatenate %92, %89 in 1 : vector<2x7x32xf32>, vector<2x1x32xf32> -> vector<2x8x32xf32>
    %94 = tpu.concatenate %91, %87, %93 in 2 : vector<2x8x32xf32>, vector<2x8x32xf32>, vector<2x8x32xf32> -> vector<2x8x96xf32>
    %95 = vector.shape_cast %94 : vector<2x8x96xf32> to vector<16x96xf32>
    %c0_36 = arith.constant 0 : index
    %c0_37 = arith.constant 0 : index
    %96 = vector.load %arg8[%c0_36, %c0_37] : memref<96x64xf32, #tpu.memory_space<vmem>>, vector<96x64xf32>
    %cst_38 = arith.constant dense<0.000000e+00> : vector<16x64xf32>
    %97 = tpu.matmul %95, %96, %cst_38 {dimension_numbers = #tpu.dot_dimension_numbers<[1], [0], [0], [1], [0, 0, 1, 1], [], []>} : vector<16x96xf32>, vector<96x64xf32>, vector<16x64xf32> -> vector<16x64xf32>
    %c0_39 = arith.constant 0 : index
    %c0_40 = arith.constant 0 : index
    %98 = vector.load %arg9[%c0_39, %c0_40] : memref<1x64xf32, #tpu.memory_space<vmem>>, vector<1x64xf32>
    %99 = vector.broadcast %98 : vector<1x64xf32> to vector<16x64xf32>
    %100 = arith.addf %97, %99 : vector<16x64xf32>
    %cst_41 = arith.constant 0.000000e+00 : f32
    %101 = vector.broadcast %cst_41 : f32 to vector<16x64xf32>
    %102 = arith.maximumf %100, %101 : vector<16x64xf32>
    %103 = vector.shape_cast %102 : vector<16x64xf32> to vector<2x8x64xf32>
    %cst_42 = arith.constant 0.000000e+00 : f32
    %104 = vector.broadcast %cst_42 : f32 to vector<2x1x64xf32>
    %105 = vector.extract_strided_slice %103 {offsets = [0, 0, 0], sizes = [2, 7, 64], strides = [1, 1, 1]} : vector<2x8x64xf32> to vector<2x7x64xf32>
    %106 = tpu.concatenate %104, %105 in 1 : vector<2x1x64xf32>, vector<2x7x64xf32> -> vector<2x8x64xf32>
    %107 = vector.extract_strided_slice %103 {offsets = [0, 1, 0], sizes = [2, 7, 64], strides = [1, 1, 1]} : vector<2x8x64xf32> to vector<2x7x64xf32>
    %108 = tpu.concatenate %107, %104 in 1 : vector<2x7x64xf32>, vector<2x1x64xf32> -> vector<2x8x64xf32>
    %109 = tpu.concatenate %106, %103, %108 in 2 : vector<2x8x64xf32>, vector<2x8x64xf32>, vector<2x8x64xf32> -> vector<2x8x192xf32>
    %110 = vector.shape_cast %109 : vector<2x8x192xf32> to vector<16x192xf32>
    %c0_43 = arith.constant 0 : index
    %c0_44 = arith.constant 0 : index
    %111 = vector.load %arg10[%c0_43, %c0_44] : memref<192x32xf32, #tpu.memory_space<vmem>>, vector<192x32xf32>
    %cst_45 = arith.constant dense<0.000000e+00> : vector<16x32xf32>
    %112 = tpu.matmul %110, %111, %cst_45 {dimension_numbers = #tpu.dot_dimension_numbers<[1], [0], [0], [1], [0, 0, 1, 1], [], []>} : vector<16x192xf32>, vector<192x32xf32>, vector<16x32xf32> -> vector<16x32xf32>
    %c0_46 = arith.constant 0 : index
    %c0_47 = arith.constant 0 : index
    %113 = vector.load %arg11[%c0_46, %c0_47] : memref<1x32xf32, #tpu.memory_space<vmem>>, vector<1x32xf32>
    %114 = vector.broadcast %113 : vector<1x32xf32> to vector<16x32xf32>
    %115 = arith.addf %112, %114 : vector<16x32xf32>
    %116 = arith.addf %88, %115 : vector<16x32xf32>
    %c0_48 = arith.constant 0 : index
    %c0_49 = arith.constant 0 : index
    %117 = vector.load %arg12[%c0_48, %c0_49] : memref<1x32xf32, #tpu.memory_space<vmem>>, vector<1x32xf32>
    %c0_50 = arith.constant 0 : index
    %c0_51 = arith.constant 0 : index
    %118 = vector.load %arg13[%c0_50, %c0_51] : memref<1x32xf32, #tpu.memory_space<vmem>>, vector<1x32xf32>
    %cst_52 = arith.constant dense<0.000000e+00> : vector<16xf32>
    %119 = vector.multi_reduction <add>, %116, %cst_52 [1] : vector<16x32xf32> to vector<16xf32>
    %120 = vector.shape_cast %119 : vector<16xf32> to vector<16x1xf32>
    %cst_53 = arith.constant 3.200000e+01 : f32
    %121 = vector.broadcast %cst_53 : f32 to vector<16x1xf32>
    %122 = arith.divf %120, %121 : vector<16x1xf32>
    %123 = vector.broadcast %122 : vector<16x1xf32> to vector<16x32xf32>
    %124 = arith.subf %116, %123 : vector<16x32xf32>
    %125 = arith.mulf %124, %124 : vector<16x32xf32>
    %cst_54 = arith.constant dense<0.000000e+00> : vector<16xf32>
    %126 = vector.multi_reduction <add>, %125, %cst_54 [1] : vector<16x32xf32> to vector<16xf32>
    %127 = vector.shape_cast %126 : vector<16xf32> to vector<16x1xf32>
    %cst_55 = arith.constant 3.200000e+01 : f32
    %128 = vector.broadcast %cst_55 : f32 to vector<16x1xf32>
    %129 = arith.divf %127, %128 : vector<16x1xf32>
    %130 = vector.broadcast %122 : vector<16x1xf32> to vector<16x32xf32>
    %131 = arith.subf %116, %130 : vector<16x32xf32>
    %cst_56 = arith.constant 9.99999974E-6 : f32
    %132 = vector.broadcast %cst_56 : f32 to vector<16x1xf32>
    %133 = arith.addf %129, %132 : vector<16x1xf32>
    %134 = math.rsqrt %133 : vector<16x1xf32>
    %135 = vector.broadcast %134 : vector<16x1xf32> to vector<16x32xf32>
    %136 = arith.mulf %131, %135 : vector<16x32xf32>
    %137 = vector.broadcast %117 : vector<1x32xf32> to vector<16x32xf32>
    %138 = arith.mulf %136, %137 : vector<16x32xf32>
    %139 = vector.broadcast %118 : vector<1x32xf32> to vector<16x32xf32>
    %140 = arith.addf %138, %139 : vector<16x32xf32>
    %141 = vector.shape_cast %140 : vector<16x32xf32> to vector<2x8x32xf32>
    %142 = vector.shape_cast %1 : vector<2x8xf32> to vector<2x8x1xf32>
    %143 = vector.broadcast %142 : vector<2x8x1xf32> to vector<2x8x32xf32>
    %144 = arith.mulf %141, %143 : vector<2x8x32xf32>
    %c0_57 = arith.constant 0 : index
    %c0_58 = arith.constant 0 : index
    %c0_59 = arith.constant 0 : index
    %145 = vector.load %arg14[%c0_57, %c0_58, %c0_59] : memref<2x8x32xf32, #tpu.memory_space<vmem>>, vector<2x8x32xf32>
    tpu.vector_store %arg14[%c0_57, %c0_58, %c0_59], %144 {strides = array<i32>} : memref<2x8x32xf32, #tpu.memory_space<vmem>>, vector<2x8x32xf32>,
    return
  }
}

module attributes {stable_mosaic.version = 11 : i64} {
  func.func @_duration_kernel(%arg0: memref<2x8x32xf32, #tpu.memory_space<vmem>>, %arg1: memref<2x8xf32, #tpu.memory_space<vmem>>, %arg2: memref<96x16xf32, #tpu.memory_space<vmem>>, %arg3: memref<1x16xf32, #tpu.memory_space<vmem>>, %arg4: memref<1x16xf32, #tpu.memory_space<vmem>>, %arg5: memref<1x16xf32, #tpu.memory_space<vmem>>, %arg6: memref<48x16xf32, #tpu.memory_space<vmem>>, %arg7: memref<1x16xf32, #tpu.memory_space<vmem>>, %arg8: memref<1x16xf32, #tpu.memory_space<vmem>>, %arg9: memref<1x16xf32, #tpu.memory_space<vmem>>, %arg10: memref<1x1x16xf32, #tpu.memory_space<vmem>>, %arg11: memref<1x1xf32, #tpu.memory_space<vmem>>, %arg12: memref<2x8xf32, #tpu.memory_space<vmem>>) attributes {dimension_semantics = [], scalar_prefetch = 0 : i64, scratch_operands = 0 : i64, tpu.core_type = #tpu.core_type<tc>} {
    %c0 = arith.constant 0 : index
    %c0_0 = arith.constant 0 : index
    %c0_1 = arith.constant 0 : index
    %0 = vector.load %arg0[%c0, %c0_0, %c0_1] : memref<2x8x32xf32, #tpu.memory_space<vmem>>, vector<2x8x32xf32>
    %c0_2 = arith.constant 0 : index
    %c0_3 = arith.constant 0 : index
    %1 = vector.load %arg1[%c0_2, %c0_3] : memref<2x8xf32, #tpu.memory_space<vmem>>, vector<2x8xf32>
    %cst = arith.constant 0.000000e+00 : f32
    %2 = vector.broadcast %cst : f32 to vector<2x1x32xf32>
    %3 = vector.extract_strided_slice %0 {offsets = [0, 0, 0], sizes = [2, 7, 32], strides = [1, 1, 1]} : vector<2x8x32xf32> to vector<2x7x32xf32>
    %4 = tpu.concatenate %2, %3 in 1 : vector<2x1x32xf32>, vector<2x7x32xf32> -> vector<2x8x32xf32>
    %5 = vector.extract_strided_slice %0 {offsets = [0, 1, 0], sizes = [2, 7, 32], strides = [1, 1, 1]} : vector<2x8x32xf32> to vector<2x7x32xf32>
    %6 = tpu.concatenate %5, %2 in 1 : vector<2x7x32xf32>, vector<2x1x32xf32> -> vector<2x8x32xf32>
    %7 = tpu.concatenate %4, %0, %6 in 2 : vector<2x8x32xf32>, vector<2x8x32xf32>, vector<2x8x32xf32> -> vector<2x8x96xf32>
    %8 = vector.shape_cast %7 : vector<2x8x96xf32> to vector<16x96xf32>
    %c0_4 = arith.constant 0 : index
    %c0_5 = arith.constant 0 : index
    %9 = vector.load %arg2[%c0_4, %c0_5] : memref<96x16xf32, #tpu.memory_space<vmem>>, vector<96x16xf32>
    %cst_6 = arith.constant dense<0.000000e+00> : vector<16x16xf32>
    %10 = tpu.matmul %8, %9, %cst_6 {dimension_numbers = #tpu.dot_dimension_numbers<[1], [0], [0], [1], [0, 0, 1, 1], [], []>} : vector<16x96xf32>, vector<96x16xf32>, vector<16x16xf32> -> vector<16x16xf32>
    %c0_7 = arith.constant 0 : index
    %c0_8 = arith.constant 0 : index
    %11 = vector.load %arg3[%c0_7, %c0_8] : memref<1x16xf32, #tpu.memory_space<vmem>>, vector<1x16xf32>
    %12 = vector.broadcast %11 : vector<1x16xf32> to vector<16x16xf32>
    %13 = arith.addf %10, %12 : vector<16x16xf32>
    %cst_9 = arith.constant 0.000000e+00 : f32
    %14 = vector.broadcast %cst_9 : f32 to vector<16x16xf32>
    %15 = arith.maximumf %13, %14 : vector<16x16xf32>
    %c0_10 = arith.constant 0 : index
    %c0_11 = arith.constant 0 : index
    %16 = vector.load %arg4[%c0_10, %c0_11] : memref<1x16xf32, #tpu.memory_space<vmem>>, vector<1x16xf32>
    %c0_12 = arith.constant 0 : index
    %c0_13 = arith.constant 0 : index
    %17 = vector.load %arg5[%c0_12, %c0_13] : memref<1x16xf32, #tpu.memory_space<vmem>>, vector<1x16xf32>
    %cst_14 = arith.constant dense<0.000000e+00> : vector<16xf32>
    %18 = vector.multi_reduction <add>, %15, %cst_14 [1] : vector<16x16xf32> to vector<16xf32>
    %19 = vector.shape_cast %18 : vector<16xf32> to vector<16x1xf32>
    %cst_15 = arith.constant 1.600000e+01 : f32
    %20 = vector.broadcast %cst_15 : f32 to vector<16x1xf32>
    %21 = arith.divf %19, %20 : vector<16x1xf32>
    %22 = vector.broadcast %21 : vector<16x1xf32> to vector<16x16xf32>
    %23 = arith.subf %15, %22 : vector<16x16xf32>
    %24 = arith.mulf %23, %23 : vector<16x16xf32>
    %cst_16 = arith.constant dense<0.000000e+00> : vector<16xf32>
    %25 = vector.multi_reduction <add>, %24, %cst_16 [1] : vector<16x16xf32> to vector<16xf32>
    %26 = vector.shape_cast %25 : vector<16xf32> to vector<16x1xf32>
    %cst_17 = arith.constant 1.600000e+01 : f32
    %27 = vector.broadcast %cst_17 : f32 to vector<16x1xf32>
    %28 = arith.divf %26, %27 : vector<16x1xf32>
    %29 = vector.broadcast %21 : vector<16x1xf32> to vector<16x16xf32>
    %30 = arith.subf %15, %29 : vector<16x16xf32>
    %cst_18 = arith.constant 9.99999974E-6 : f32
    %31 = vector.broadcast %cst_18 : f32 to vector<16x1xf32>
    %32 = arith.addf %28, %31 : vector<16x1xf32>
    %33 = math.rsqrt %32 : vector<16x1xf32>
    %34 = vector.broadcast %33 : vector<16x1xf32> to vector<16x16xf32>
    %35 = arith.mulf %30, %34 : vector<16x16xf32>
    %36 = vector.broadcast %16 : vector<1x16xf32> to vector<16x16xf32>
    %37 = arith.mulf %35, %36 : vector<16x16xf32>
    %38 = vector.broadcast %17 : vector<1x16xf32> to vector<16x16xf32>
    %39 = arith.addf %37, %38 : vector<16x16xf32>
    %40 = vector.shape_cast %39 : vector<16x16xf32> to vector<2x8x16xf32>
    %cst_19 = arith.constant 0.000000e+00 : f32
    %41 = vector.broadcast %cst_19 : f32 to vector<2x1x16xf32>
    %42 = vector.extract_strided_slice %40 {offsets = [0, 0, 0], sizes = [2, 7, 16], strides = [1, 1, 1]} : vector<2x8x16xf32> to vector<2x7x16xf32>
    %43 = tpu.concatenate %41, %42 in 1 : vector<2x1x16xf32>, vector<2x7x16xf32> -> vector<2x8x16xf32>
    %44 = vector.extract_strided_slice %40 {offsets = [0, 1, 0], sizes = [2, 7, 16], strides = [1, 1, 1]} : vector<2x8x16xf32> to vector<2x7x16xf32>
    %45 = tpu.concatenate %44, %41 in 1 : vector<2x7x16xf32>, vector<2x1x16xf32> -> vector<2x8x16xf32>
    %46 = tpu.concatenate %43, %40, %45 in 2 : vector<2x8x16xf32>, vector<2x8x16xf32>, vector<2x8x16xf32> -> vector<2x8x48xf32>
    %47 = vector.shape_cast %46 : vector<2x8x48xf32> to vector<16x48xf32>
    %c0_20 = arith.constant 0 : index
    %c0_21 = arith.constant 0 : index
    %48 = vector.load %arg6[%c0_20, %c0_21] : memref<48x16xf32, #tpu.memory_space<vmem>>, vector<48x16xf32>
    %cst_22 = arith.constant dense<0.000000e+00> : vector<16x16xf32>
    %49 = tpu.matmul %47, %48, %cst_22 {dimension_numbers = #tpu.dot_dimension_numbers<[1], [0], [0], [1], [0, 0, 1, 1], [], []>} : vector<16x48xf32>, vector<48x16xf32>, vector<16x16xf32> -> vector<16x16xf32>
    %c0_23 = arith.constant 0 : index
    %c0_24 = arith.constant 0 : index
    %50 = vector.load %arg7[%c0_23, %c0_24] : memref<1x16xf32, #tpu.memory_space<vmem>>, vector<1x16xf32>
    %51 = vector.broadcast %50 : vector<1x16xf32> to vector<16x16xf32>
    %52 = arith.addf %49, %51 : vector<16x16xf32>
    %cst_25 = arith.constant 0.000000e+00 : f32
    %53 = vector.broadcast %cst_25 : f32 to vector<16x16xf32>
    %54 = arith.maximumf %52, %53 : vector<16x16xf32>
    %c0_26 = arith.constant 0 : index
    %c0_27 = arith.constant 0 : index
    %55 = vector.load %arg8[%c0_26, %c0_27] : memref<1x16xf32, #tpu.memory_space<vmem>>, vector<1x16xf32>
    %c0_28 = arith.constant 0 : index
    %c0_29 = arith.constant 0 : index
    %56 = vector.load %arg9[%c0_28, %c0_29] : memref<1x16xf32, #tpu.memory_space<vmem>>, vector<1x16xf32>
    %cst_30 = arith.constant dense<0.000000e+00> : vector<16xf32>
    %57 = vector.multi_reduction <add>, %54, %cst_30 [1] : vector<16x16xf32> to vector<16xf32>
    %58 = vector.shape_cast %57 : vector<16xf32> to vector<16x1xf32>
    %cst_31 = arith.constant 1.600000e+01 : f32
    %59 = vector.broadcast %cst_31 : f32 to vector<16x1xf32>
    %60 = arith.divf %58, %59 : vector<16x1xf32>
    %61 = vector.broadcast %60 : vector<16x1xf32> to vector<16x16xf32>
    %62 = arith.subf %54, %61 : vector<16x16xf32>
    %63 = arith.mulf %62, %62 : vector<16x16xf32>
    %cst_32 = arith.constant dense<0.000000e+00> : vector<16xf32>
    %64 = vector.multi_reduction <add>, %63, %cst_32 [1] : vector<16x16xf32> to vector<16xf32>
    %65 = vector.shape_cast %64 : vector<16xf32> to vector<16x1xf32>
    %cst_33 = arith.constant 1.600000e+01 : f32
    %66 = vector.broadcast %cst_33 : f32 to vector<16x1xf32>
    %67 = arith.divf %65, %66 : vector<16x1xf32>
    %68 = vector.broadcast %60 : vector<16x1xf32> to vector<16x16xf32>
    %69 = arith.subf %54, %68 : vector<16x16xf32>
    %cst_34 = arith.constant 9.99999974E-6 : f32
    %70 = vector.broadcast %cst_34 : f32 to vector<16x1xf32>
    %71 = arith.addf %67, %70 : vector<16x1xf32>
    %72 = math.rsqrt %71 : vector<16x1xf32>
    %73 = vector.broadcast %72 : vector<16x1xf32> to vector<16x16xf32>
    %74 = arith.mulf %69, %73 : vector<16x16xf32>
    %75 = vector.broadcast %55 : vector<1x16xf32> to vector<16x16xf32>
    %76 = arith.mulf %74, %75 : vector<16x16xf32>
    %77 = vector.broadcast %56 : vector<1x16xf32> to vector<16x16xf32>
    %78 = arith.addf %76, %77 : vector<16x16xf32>
    %79 = vector.shape_cast %78 : vector<16x16xf32> to vector<2x8x16xf32>
    %c0_35 = arith.constant 0 : index
    %c0_36 = arith.constant 0 : index
    %c0_37 = arith.constant 0 : index
    %80 = vector.load %arg10[%c0_35, %c0_36, %c0_37] : memref<1x1x16xf32, #tpu.memory_space<vmem>>, vector<1x1x16xf32>
    %81 = vector.broadcast %80 : vector<1x1x16xf32> to vector<2x8x16xf32>
    %82 = arith.mulf %79, %81 : vector<2x8x16xf32>
    %cst_38 = arith.constant dense<0.000000e+00> : vector<2x8xf32>
    %83 = vector.multi_reduction <add>, %82, %cst_38 [2] : vector<2x8x16xf32> to vector<2x8xf32>
    %c0_39 = arith.constant 0 : index
    %c0_40 = arith.constant 0 : index
    %84 = vector.load %arg11[%c0_39, %c0_40] : memref<1x1xf32, #tpu.memory_space<vmem>>, vector<1x1xf32>
    %85 = vector.broadcast %84 : vector<1x1xf32> to vector<2x8xf32>
    %86 = arith.addf %83, %85 : vector<2x8xf32>
    %87 = arith.mulf %86, %1 : vector<2x8xf32>
    %c0_41 = arith.constant 0 : index
    %c0_42 = arith.constant 0 : index
    %88 = vector.load %arg12[%c0_41, %c0_42] : memref<2x8xf32, #tpu.memory_space<vmem>>, vector<2x8xf32>
    tpu.vector_store %arg12[%c0_41, %c0_42], %87 {strides = array<i32>} : memref<2x8xf32, #tpu.memory_space<vmem>>, vector<2x8xf32>,
    return
  }
}

module attributes {stable_mosaic.version = 11 : i64} {
  func.func @_linear_kernel(%arg0: memref<48x32xf32, #tpu.memory_space<vmem>>, %arg1: memref<32x16xf32, #tpu.memory_space<vmem>>, %arg2: memref<1x16xf32, #tpu.memory_space<vmem>>, %arg3: memref<48x16xf32, #tpu.memory_space<vmem>>) attributes {dimension_semantics = [], scalar_prefetch = 0 : i64, scratch_operands = 0 : i64, tpu.core_type = #tpu.core_type<tc>} {
    %c0 = arith.constant 0 : index
    %c0_0 = arith.constant 0 : index
    %0 = vector.load %arg0[%c0, %c0_0] : memref<48x32xf32, #tpu.memory_space<vmem>>, vector<48x32xf32>
    %c0_1 = arith.constant 0 : index
    %c0_2 = arith.constant 0 : index
    %1 = vector.load %arg1[%c0_1, %c0_2] : memref<32x16xf32, #tpu.memory_space<vmem>>, vector<32x16xf32>
    %cst = arith.constant dense<0.000000e+00> : vector<48x16xf32>
    %2 = tpu.matmul %0, %1, %cst {dimension_numbers = #tpu.dot_dimension_numbers<[1], [0], [0], [1], [0, 0, 1, 1], [], []>} : vector<48x32xf32>, vector<32x16xf32>, vector<48x16xf32> -> vector<48x16xf32>
    %c0_3 = arith.constant 0 : index
    %c0_4 = arith.constant 0 : index
    %3 = vector.load %arg2[%c0_3, %c0_4] : memref<1x16xf32, #tpu.memory_space<vmem>>, vector<1x16xf32>
    %4 = vector.broadcast %3 : vector<1x16xf32> to vector<48x16xf32>
    %5 = arith.addf %2, %4 : vector<48x16xf32>
    %c0_5 = arith.constant 0 : index
    %c0_6 = arith.constant 0 : index
    %6 = vector.load %arg3[%c0_5, %c0_6] : memref<48x16xf32, #tpu.memory_space<vmem>>, vector<48x16xf32>
    tpu.vector_store %arg3[%c0_5, %c0_6], %5 {strides = array<i32>} : memref<48x16xf32, #tpu.memory_space<vmem>>, vector<48x16xf32>,
    return
  }
}

</mosaic_0001>

<llo_original>
// kernel: fastspeech_forward.11
$region0: #{fastspeech_forward.11}
  #allocation0 [shape = 'u32[]', space=smem, size = 0x4, offset = 0x4, fixed_abs, tag = 'smem constant byte address 0x4 - core index']
  #allocation1 [shape = 'u32[144,128]{1,0:T(1,128)}', space=vmem, size = 0x12000, scoped, tag = 'internal scratch']
  %s0 = inlined_call_operand.vmem [shape: f32[48,32], index: 0, kind: input, shape index: {}]
  %s1 = inlined_call_operand.vmem [shape: f32[32,16], index: 1, kind: input, shape index: {}]
  %s2 = inlined_call_operand.vmem [shape: f32[1,16], index: 2, kind: input, shape index: {}]
  %s3 = inlined_call_operand.vmem [shape: f32[48,16], index: 3, kind: output, shape index: {}]
  %s4 = sld [smem:[#allocation0]]
  $region22: #{fastspeech_forward.11} parent=0
    _
  %s6 = ssub.s32 1, %s4
  %s7 = scalar_select 0, %s6, %s4
  // Predicated region
  $region2: #{fastspeech_forward.11} parent=0 // pred_check
    _
  $region3: #{fastspeech_forward.11} parent=0 // pred_check_branch
    %9 = sbr.rel (0) target = $region5
  $region4: #{fastspeech_forward.11} parent=0 // pred_region
    _
  $region5: #{fastspeech_forward.11} parent=0 // pred_fallthru
    _
  // Predicated region
  $region6: #{fastspeech_forward.11} parent=0 // pred_check
    _
  $region7: #{fastspeech_forward.11} parent=0 // pred_check_branch
    %11 = sbr.rel (0) target = $region9
  $region8: #{fastspeech_forward.11} parent=0 // pred_region
    _
  $region9: #{fastspeech_forward.11} parent=0 // pred_fallthru
    _
  // Predicated region
  $region10: #{fastspeech_forward.11} parent=0 // pred_check
    _
  $region11: #{fastspeech_forward.11} parent=0 // pred_check_branch
    %13 = sbr.rel (0) target = $region13
  $region12: #{fastspeech_forward.11} parent=0 // pred_region
    _
  $region13: #{fastspeech_forward.11} parent=0 // pred_fallthru
    _
  %v14 = vld [vmem:[%s0] sm:$0xff]
  %v15 = vld [vmem:[%s0 + $0x8] sm:$0xff]
  %v16 = vld [vmem:[%s0 + $0x10] sm:$0xff]
  %v17 = vld [vmem:[%s0 + $0x18] sm:$0xff]
  %v18 = vld [vmem:[%s0 + $0x20] sm:$0xff]
  %v19 = vld [vmem:[%s0 + $0x28] sm:$0xff]
  %v20 = vld [vmem:[%s1] sm:$0xff]
  %v21 = vld [vmem:[%s1 + $0x8] sm:$0xff]
  %v22 = vld [vmem:[%s1 + $0x10] sm:$0xff]
  %v23 = vld [vmem:[%s1 + $0x18] sm:$0xff]
  %v24 = vld [vmem:[%s2] sm:$0x1]
  %v26 = vlaneseq
  %v27 = vshrl.u32 %v26, 7
  %v28 = vsub.s32 0, %v27
  %v29 = vrot.slane %v24, %v28
  %vm31 = vcmask 261120
  %v33 = vsel %vm31, %v14, 0
  %v36 = vsel %vm31, %v15, 0
  %v39 = vsel %vm31, %v16, 0
  %v42 = vsel %vm31, %v17, 0
  %v45 = vsel %vm31, %v18, 0
  %v48 = vsel %vm31, %v19, 0
  %50 = vmatprep.subr.mxu0 0.0
  %51 = vmatpush1.msra.mxu0 0.0
  %52 = vmatprep.subr.mxu0 0.0
  %53 = vmatpush1.msra.mxu0 0.0
  %54 = vmatprep.subr.mxu0 0.0
  %55 = vmatpush1.msra.mxu0 0.0
  %56 = vmatprep.subr.mxu0 0.0
  %57 = vmatpush1.msra.mxu0 0.0
  %58 = vmatprep.subr.mxu0 0.0
  %59 = vmatpush1.msra.mxu0 0.0
  %60 = vmatprep.subr.mxu0 0.0
  %61 = vmatpush1.msra.mxu0 0.0
  %62 = vmatprep.subr.mxu0 0.0
  %63 = vmatpush1.msra.mxu0 0.0
  %64 = vmatprep.subr.mxu0 0.0
  %65 = vmatpush1.msra.mxu0 0.0
  %66 = vmatprep.subr.mxu0 0.0
  %67 = vmatpush1.msra.mxu0 0.0
  %68 = vmatprep.subr.mxu0 0.0
  %69 = vmatpush1.msra.mxu0 0.0
  %70 = vmatprep.subr.mxu0 0.0
  %71 = vmatpush1.msra.mxu0 0.0
  %72 = vmatprep.subr.mxu0 0.0
  %73 = vmatpush1.msra.mxu0 0.0
  %74 = vmatprep.subr.mxu0 0.0
  %75 = vmatpush1.msra.mxu0 %v23
  %76 = vmatprep.subr.mxu0 0.0
  %77 = vmatpush1.msra.mxu0 %v22
  %78 = vmatprep.subr.mxu0 0.0
  %79 = vmatpush1.msra.mxu0 %v21
  %80 = vmatprep.subr.mxu0 0.0
  %81 = vmatpush1.msra.mxu0 %v20
  %82 = vmatprep.subr.mxu0 0.0
  %83 = vmatpush2.msra.mxu0 0.0
  %84 = vmatprep.subr.mxu0 0.0
  %85 = vmatpush2.msra.mxu0 0.0
  %86 = vmatprep.subr.mxu0 0.0
  %87 = vmatpush2.msra.mxu0 0.0
  %88 = vmatprep.subr.mxu0 0.0
  %89 = vmatpush2.msra.mxu0 0.0
  %90 = vmatprep.subr.mxu0 0.0
  %91 = vmatpush2.msra.mxu0 0.0
  %92 = vmatprep.subr.mxu0 0.0
  %93 = vmatpush2.msra.mxu0 0.0
  %94 = vmatprep.subr.mxu0 0.0
  %95 = vmatpush2.msra.mxu0 0.0
  %96 = vmatprep.subr.mxu0 0.0
  %97 = vmatpush2.msra.mxu0 0.0
  %98 = vmatprep.subr.mxu0 0.0
  %99 = vmatpush2.msra.mxu0 0.0
  %100 = vmatprep.subr.mxu0 0.0
  %101 = vmatpush2.msra.mxu0 0.0
  %102 = vmatprep.subr.mxu0 0.0
  %103 = vmatpush2.msra.mxu0 0.0
  %104 = vmatprep.subr.mxu0 0.0
  %105 = vmatpush2.msra.mxu0 0.0
  %106 = vmatprep.subr.mxu0 0.0
  %107 = vmatpush2.msra.mxu0 0.0
  %108 = vmatprep.subr.mxu0 0.0
  %109 = vmatpush2.msra.mxu0 0.0
  %110 = vmatprep.subr.mxu0 0.0
  %111 = vmatpush2.msra.mxu0 0.0
  %112 = vmatprep.subr.mxu0 0.0
  %113 = vmatpush2.msra.mxu0 0.0
  %114 = vmatprep.mubr.f32.mxu0 0.0
  %115 = vmatmul.mubr.f32.gmra.mxu0 %v33
  %v116 = vpop.f32.mrf.mxu0
  %v117 = vadd.f32 %v29, %v116
  %v118 = vpop.f32.mrf.mxu0
  %119 = vmatprep.mubr.f32.mxu0 0.0
  %120 = vmatmul.mubr.f32.gmra.mxu0 %v36
  %v121 = vpop.f32.mrf.mxu0
  %v122 = vadd.f32 %v29, %v121
  %v123 = vpop.f32.mrf.mxu0
  %124 = vmatprep.mubr.f32.mxu0 0.0
  %125 = vmatmul.mubr.f32.gmra.mxu0 %v39
  %v126 = vpop.f32.mrf.mxu0
  %v127 = vadd.f32 %v29, %v126
  %v128 = vpop.f32.mrf.mxu0
  %129 = vmatprep.mubr.f32.mxu0 0.0
  %130 = vmatmul.mubr.f32.gmra.mxu0 %v42
  %v131 = vpop.f32.mrf.mxu0
  %v132 = vadd.f32 %v29, %v131
  %v133 = vpop.f32.mrf.mxu0
  %134 = vmatprep.mubr.f32.mxu0 0.0
  %135 = vmatmul.mubr.f32.gmra.mxu0 %v45
  %v136 = vpop.f32.mrf.mxu0
  %v137 = vadd.f32 %v29, %v136
  %v138 = vpop.f32.mrf.mxu0
  %139 = vmatprep.mubr.f32.mxu0 0.0
  %140 = vmatmul.mubr.f32.gmra.mxu0 %v48
  %v141 = vpop.f32.mrf.mxu0
  %v142 = vadd.f32 %v29, %v141
  %v143 = vpop.f32.mrf.mxu0
  %144 = vdwg.mxu0
  %vm145 = vcmask 130048
  %146 = vst.msk [vmem:[%s3] sm:$0xff] %vm145, %v117
  %147 = vst.msk [vmem:[%s3 + $0x8] sm:$0xff] %vm145, %v122
  %148 = vst.msk [vmem:[%s3 + $0x10] sm:$0xff] %vm145, %v127
  %149 = vst.msk [vmem:[%s3 + $0x18] sm:$0xff] %vm145, %v132
  %150 = vst.msk [vmem:[%s3 + $0x20] sm:$0xff] %vm145, %v137
  %151 = vst.msk [vmem:[%s3 + $0x28] sm:$0xff] %vm145, %v142
  // Predicated region
  $region14: #{fastspeech_forward.11} parent=0 // pred_check
    _
  $region15: #{fastspeech_forward.11} parent=0 // pred_check_branch
    %153 = sbr.rel (0) target = $region17
  $region16: #{fastspeech_forward.11} parent=0 // pred_region
    _
  $region17: #{fastspeech_forward.11} parent=0 // pred_fallthru
    _
  // Predicated region
  $region18: #{fastspeech_forward.11} parent=0 // pred_check
    _
  $region19: #{fastspeech_forward.11} parent=0 // pred_check_branch
    %155 = sbr.rel (0) target = $region21
  $region20: #{fastspeech_forward.11} parent=0 // pred_region
    _
  $region21: #{fastspeech_forward.11} parent=0 // pred_fallthru
    _

// kernel: fastspeech_forward.8
$region0: #{fastspeech_forward.8}
  #allocation0 [shape = 'u32[]', space=smem, size = 0x4, offset = 0x4, fixed_abs, tag = 'smem constant byte address 0x4 - core index']
  #allocation1 [shape = 'u32[144,128]{1,0:T(1,128)}', space=vmem, size = 0x12000, scoped, tag = 'internal scratch']
  #allocation2 [shape = 'f32[1,1]{1,0:T(1,128)S(1)}', space=vmem, size = 0x200, scoped, tag = 'scoped memory for fastspeech_forward.8']
  %s0 = inlined_call_operand.vmem [shape: f32[2,8,32], index: 0, kind: input, shape index: {}]
  %s1 = inlined_call_operand.vmem [shape: f32[2,8], index: 1, kind: input, shape index: {}]
  %s2 = inlined_call_operand.vmem [shape: f32[96,16], index: 2, kind: input, shape index: {}]
  %s3 = inlined_call_operand.vmem [shape: f32[1,16], index: 3, kind: input, shape index: {}]
  %s4 = inlined_call_operand.vmem [shape: f32[1,16], index: 4, kind: input, shape index: {}]
  %s5 = inlined_call_operand.vmem [shape: f32[1,16], index: 5, kind: input, shape index: {}]
  %s6 = inlined_call_operand.vmem [shape: f32[48,16], index: 6, kind: input, shape index: {}]
  %s7 = inlined_call_operand.vmem [shape: f32[1,16], index: 7, kind: input, shape index: {}]
  %s8 = inlined_call_operand.vmem [shape: f32[1,16], index: 8, kind: input, shape index: {}]
  %s9 = inlined_call_operand.vmem [shape: f32[1,16], index: 9, kind: input, shape index: {}]
  %s10 = inlined_call_operand.vmem [shape: f32[1,1,16], index: 10, kind: input, shape index: {}]
  %s11 = inlined_call_operand.<no memory space> [shape: f32[1,1], index: 11, kind: input, shape index: {}]
  %s12 = inlined_call_operand.hbm [shape: f32[2,8], index: 12, kind: output, shape index: {}]
  %s13 = sld [smem:[#allocation0]]
  $region58: #{fastspeech_forward.8} parent=0
    _
  %s15 = ssub.s32 1, %s13
  %s16 = scalar_select 0, %s15, %s13
  %v17 = vstv %s11
  %18 = vst [vmem:[#allocation2] sm:$0x1] %v17
  $region1: #{fastspeech_forward.8} parent=0
    #allocation3 [shape = 'u8[1024]{0}', space=vmem, size = 0x400, scoped, tag = 'output window, operand 0, single buffered']
    #allocation4 [shape = 's32[1]{0}', space=sflag, size = 0x4, scoped, tag = 'scoped memory for fastspeech_forward.8']
    %19 = vsyncpa [#allocation4], 0
    // Predicated region
    $region2: #{fastspeech_forward.8} parent=1 // pred_check
      _
    $region3: #{fastspeech_forward.8} parent=1 // pred_check_branch
      %21 = sbr.rel (0) target = $region5
    $region4: #{fastspeech_forward.8} parent=1 // pred_region
      _
    $region5: #{fastspeech_forward.8} parent=1 // pred_fallthru
      _
    // Predicated region
    $region6: #{fastspeech_forward.8} parent=1 // pred_check
      _
    $region7: #{fastspeech_forward.8} parent=1 // pred_check_branch
      %23 = sbr.rel (0) target = $region9
    $region8: #{fastspeech_forward.8} parent=1 // pred_region
      _
    $region9: #{fastspeech_forward.8} parent=1 // pred_fallthru
      _
    // Predicated region
    $region10: #{fastspeech_forward.8} parent=1 // pred_check
      _
    $region11: #{fastspeech_forward.8} parent=1 // pred_check_branch
      %25 = sbr.rel (0) target = $region13
    $region12: #{fastspeech_forward.8} parent=1 // pred_region
      _
    $region13: #{fastspeech_forward.8} parent=1 // pred_fallthru
      _
    // Predicated region
    $region14: #{fastspeech_forward.8} parent=1 // pred_check
      _
    $region15: #{fastspeech_forward.8} parent=1 // pred_check_branch
      %27 = sbr.rel (0) target = $region17
    $region16: #{fastspeech_forward.8} parent=1 // pred_region
      _
    $region17: #{fastspeech_forward.8} parent=1 // pred_fallthru
      _
    // Predicated region
    $region18: #{fastspeech_forward.8} parent=1 // pred_check
      _
    $region19: #{fastspeech_forward.8} parent=1 // pred_check_branch
      %29 = sbr.rel (0) target = $region21
    $region20: #{fastspeech_forward.8} parent=1 // pred_region
      _
    $region21: #{fastspeech_forward.8} parent=1 // pred_fallthru
      _
    // Predicated region
    $region22: #{fastspeech_forward.8} parent=1 // pred_check
      _
    $region23: #{fastspeech_forward.8} parent=1 // pred_check_branch
      %31 = sbr.rel (0) target = $region25
    $region24: #{fastspeech_forward.8} parent=1 // pred_region
      _
    $region25: #{fastspeech_forward.8} parent=1 // pred_fallthru
      _
    // Predicated region
    $region26: #{fastspeech_forward.8} parent=1 // pred_check
      _
    $region27: #{fastspeech_forward.8} parent=1 // pred_check_branch
      %33 = sbr.rel (0) target = $region29
    $region28: #{fastspeech_forward.8} parent=1 // pred_region
      _
    $region29: #{fastspeech_forward.8} parent=1 // pred_fallthru
      _
    // Predicated region
    $region30: #{fastspeech_forward.8} parent=1 // pred_check
      _
    $region31: #{fastspeech_forward.8} parent=1 // pred_check_branch
      %35 = sbr.rel (0) target = $region33
    $region32: #{fastspeech_forward.8} parent=1 // pred_region
      _
    $region33: #{fastspeech_forward.8} parent=1 // pred_fallthru
      _
    // Predicated region
    $region34: #{fastspeech_forward.8} parent=1 // pred_check
      _
    $region35: #{fastspeech_forward.8} parent=1 // pred_check_branch
      %37 = sbr.rel (0) target = $region37
    $region36: #{fastspeech_forward.8} parent=1 // pred_region
      _
    $region37: #{fastspeech_forward.8} parent=1 // pred_fallthru
      _
    // Predicated region
    $region38: #{fastspeech_forward.8} parent=1 // pred_check
      _
    $region39: #{fastspeech_forward.8} parent=1 // pred_check_branch
      %39 = sbr.rel (0) target = $region41
    $region40: #{fastspeech_forward.8} parent=1 // pred_region
      _
    $region41: #{fastspeech_forward.8} parent=1 // pred_fallthru
      _
    // Predicated region
    $region42: #{fastspeech_forward.8} parent=1 // pred_check
      _
    $region43: #{fastspeech_forward.8} parent=1 // pred_check_branch
      %41 = sbr.rel (0) target = $region45
    $region44: #{fastspeech_forward.8} parent=1 // pred_region
      _
    $region45: #{fastspeech_forward.8} parent=1 // pred_fallthru
      _
    // Predicated region
    $region46: #{fastspeech_forward.8} parent=1 // pred_check
      _
    $region47: #{fastspeech_forward.8} parent=1 // pred_check_branch
      %43 = sbr.rel (0) target = $region49
    $region48: #{fastspeech_forward.8} parent=1 // pred_region
      _
    $region49: #{fastspeech_forward.8} parent=1 // pred_fallthru
      _
    %v44 = vld [vmem:[%s0] sm:$0xff]
    %v45 = vld [vmem:[%s0 + $0x8] sm:$0xff]
    %v46 = vld [vmem:[%s1] sm:$0x3]
    %v49 = vrot.slane %v44, 7
    %v50 = vrot.slane %v45, 7
    %vm53 = vcmask 1040384
    %v54 = vsel %vm53, 0.0, %v49
    %v55 = vsel %vm53, 0.0, %v50
    %v56 = vrot.slane %v44, 1
    %v57 = vrot.slane %v45, 1
    %vm60 = vcmask 1046528
    %v61 = vsel %vm60, %v56, 0.0
    %v62 = vsel %vm60, %v57, 0.0
    %63 = vrot.lane.b32.xlu0 %v44, 32
    %v64 = vpop.permute.xlu0 %63
    %65 = vrot.lane.b32.xlu0 %v45, 32
    %v66 = vpop.permute.xlu0 %65
    %71 = vrot.lane.b32.xlu0 %v61, 64
    %v72 = vpop.permute.xlu0 %71
    %73 = vrot.lane.b32.xlu0 %v62, 64
    %v74 = vpop.permute.xlu0 %73
    %vm77 = vcmask 261120
    %v78 = vsel %vm77, %v54, %v64
    %v79 = vsel %vm77, %v55, %v66
    %vm80 = vcmask 523264
    %v81 = vsel %vm80, %v78, %v72
    %v82 = vsel %vm80, %v79, %v74
    %v83 = vld [vmem:[%s2] sm:$0xff]
    %v84 = vld [vmem:[%s2 + $0x8] sm:$0xff]
    %v85 = vld [vmem:[%s2 + $0x10] sm:$0xff]
    %v86 = vld [vmem:[%s2 + $0x18] sm:$0xff]
    %v87 = vld [vmem:[%s2 + $0x20] sm:$0xff]
    %v88 = vld [vmem:[%s2 + $0x28] sm:$0xff]
    %v89 = vld [vmem:[%s2 + $0x30] sm:$0xff]
    %v90 = vld [vmem:[%s2 + $0x38] sm:$0xff]
    %v91 = vld [vmem:[%s2 + $0x40] sm:$0xff]
    %v92 = vld [vmem:[%s2 + $0x48] sm:$0xff]
    %v93 = vld [vmem:[%s2 + $0x50] sm:$0xff]
    %v94 = vld [vmem:[%s2 + $0x58] sm:$0xff]
    %v95 = vld [vmem:[%s3] sm:$0x1]
    %v97 = vlaneseq
    %v98 = vshrl.u32 %v97, 7
    %v99 = vsub.s32 0, %v98
    %v100 = vrot.slane %v95, %v99
    %vm102 = vcmask 785408
    %v104 = vsel %vm102, %v81, 0
    %v107 = vsel %vm102, %v82, 0
    %109 = vmatprep.subr.mxu0 0.0
    %110 = vmatpush1.msra.mxu0 0.0
    %111 = vmatprep.subr.mxu0 0.0
    %112 = vmatpush1.msra.mxu0 0.0
    %113 = vmatprep.subr.mxu0 0.0
    %114 = vmatpush1.msra.mxu0 0.0
    %115 = vmatprep.subr.mxu0 0.0
    %116 = vmatpush1.msra.mxu0 0.0
    %117 = vmatprep.subr.mxu0 0.0
    %118 = vmatpush1.msra.mxu0 %v94
    %119 = vmatprep.subr.mxu0 0.0
    %120 = vmatpush1.msra.mxu0 %v93
    %121 = vmatprep.subr.mxu0 0.0
    %122 = vmatpush1.msra.mxu0 %v92
    %123 = vmatprep.subr.mxu0 0.0
    %124 = vmatpush1.msra.mxu0 %v91
    %125 = vmatprep.subr.mxu0 0.0
    %126 = vmatpush1.msra.mxu0 %v90
    %127 = vmatprep.subr.mxu0 0.0
    %128 = vmatpush1.msra.mxu0 %v89
    %129 = vmatprep.subr.mxu0 0.0
    %130 = vmatpush1.msra.mxu0 %v88
    %131 = vmatprep.subr.mxu0 0.0
    %132 = vmatpush1.msra.mxu0 %v87
    %133 = vmatprep.subr.mxu0 0.0
    %134 = vmatpush1.msra.mxu0 %v86
    %135 = vmatprep.subr.mxu0 0.0
    %136 = vmatpush1.msra.mxu0 %v85
    %137 = vmatprep.subr.mxu0 0.0
    %138 = vmatpush1.msra.mxu0 %v84
    %139 = vmatprep.subr.mxu0 0.0
    %140 = vmatpush1.msra.mxu0 %v83
    %141 = vmatprep.subr.mxu0 0.0
    %142 = vmatpush2.msra.mxu0 0.0
    %143 = vmatprep.subr.mxu0 0.0
    %144 = vmatpush2.msra.mxu0 0.0
    %145 = vmatprep.subr.mxu0 0.0
    %146 = vmatpush2.msra.mxu0 0.0
    %147 = vmatprep.subr.mxu0 0.0
    %148 = vmatpush2.msra.mxu0 0.0
    %149 = vmatprep.subr.mxu0 0.0
    %150 = vmatpush2.msra.mxu0 0.0
    %151 = vmatprep.subr.mxu0 0.0
    %152 = vmatpush2.msra.mxu0 0.0
    %153 = vmatprep.subr.mxu0 0.0
    %154 = vmatpush2.msra.mxu0 0.0
    %155 = vmatprep.subr.mxu0 0.0
    %156 = vmatpush2.msra.mxu0 0.0
    %157 = vmatprep.subr.mxu0 0.0
    %158 = vmatpush2.msra.mxu0 0.0
    %159 = vmatprep.subr.mxu0 0.0
    %160 = vmatpush2.msra.mxu0 0.0
    %161 = vmatprep.subr.mxu0 0.0
    %162 = vmatpush2.msra.mxu0 0.0
    %163 = vmatprep.subr.mxu0 0.0
    %164 = vmatpush2.msra.mxu0 0.0
    %165 = vmatprep.subr.mxu0 0.0
    %166 = vmatpush2.msra.mxu0 0.0
    %167 = vmatprep.subr.mxu0 0.0
    %168 = vmatpush2.msra.mxu0 0.0
    %169 = vmatprep.subr.mxu0 0.0
    %170 = vmatpush2.msra.mxu0 0.0
    %171 = vmatprep.subr.mxu0 0.0
    %172 = vmatpush2.msra.mxu0 0.0
    %173 = vmatprep.mubr.f32.mxu0 0.0
    %174 = vmatmul.mubr.f32.gmra.mxu0 %v104
    %v175 = vpop.f32.mrf.mxu0
    %v176 = vadd.f32 %v100, %v175
    %v177 = vpop.f32.mrf.mxu0
    %178 = vmatprep.mubr.f32.mxu0 0.0
    %179 = vmatmul.mubr.f32.gmra.mxu0 %v107
    %v180 = vpop.f32.mrf.mxu0
    %v181 = vadd.f32 %v100, %v180
    %v182 = vpop.f32.mrf.mxu0
    %183 = vdwg.mxu0
    %v184 = vmax.f32 %v176, 0.0
    %v185 = vmax.f32 %v181, 0.0
    %v186 = vld [vmem:[%s4] sm:$0x1]
    %v187 = vld [vmem:[%s5] sm:$0x1]
    %vm188 = vcmask 130048
    %v189 = vsel %vm188, %v184, 0.0
    %190 = vadd.xlane.f32.xlu0 %v189
    %v191 = vpop.xlane.xlu0 %190
    %v192 = vsel %vm188, %v185, 0.0
    %193 = vadd.xlane.f32.xlu0 %v192
    %v194 = vpop.xlane.xlu0 %193
    %v195 = vrcp.pop 16.0
    %v196 = vmul.f32 %v191, %v195
    %v197 = vmul.f32 %v194, %v195
    %v198 = vsub.f32 %v184, %v196
    %v199 = vsub.f32 %v185, %v197
    %v200 = vmul.f32 %v198, %v198
    %v201 = vmul.f32 %v199, %v199
    %v202 = vsel %vm188, %v200, 0.0
    %203 = vadd.xlane.f32.xlu0 %v202
    %v204 = vpop.xlane.xlu0 %203
    %v205 = vsel %vm188, %v201, 0.0
    %206 = vadd.xlane.f32.xlu0 %v205
    %v207 = vpop.xlane.xlu0 %206
    %v208 = vmul.f32 %v204, %v195
    %v209 = vmul.f32 %v207, %v195
    %v210 = vadd.f32 %v208, 1e-05
    %v211 = vadd.f32 %v209, 1e-05
    %v212 = vrsqrt.pop %v210
    %v213 = vrsqrt.pop %v211
    %v214 = vmul.f32 %v198, %v212
    %v215 = vmul.f32 %v199, %v213
    %v217 = vlaneseq
    %v218 = vshrl.u32 %v217, 7
    %v219 = vsub.s32 0, %v218
    %v220 = vrot.slane %v186, %v219
    %v222 = vmul.f32 %v214, %v220
    %v223 = vmul.f32 %v215, %v220
    %v225 = vlaneseq
    %v226 = vshrl.u32 %v225, 7
    %v227 = vsub.s32 0, %v226
    %v228 = vrot.slane %v187, %v227
    %v230 = vadd.f32 %v222, %v228
    %v231 = vadd.f32 %v223, %v228
    %v234 = vrot.slane %v230, 7
    %v235 = vrot.slane %v231, 7
    %v238 = vsel %vm53, 0.0, %v234
    %v239 = vsel %vm53, 0.0, %v235
    %v240 = vrot.slane %v230, 1
    %v241 = vrot.slane %v231, 1
    %v244 = vsel %vm60, %v240, 0.0
    %v245 = vsel %vm60, %v241, 0.0
    %246 = vrot.lane.b32.xlu0 %v230, 16
    %v247 = vpop.permute.xlu0 %246
    %248 = vrot.lane.b32.xlu0 %v231, 16
    %v249 = vpop.permute.xlu0 %248
    %254 = vrot.lane.b32.xlu0 %v244, 32
    %v255 = vpop.permute.xlu0 %254
    %256 = vrot.lane.b32.xlu0 %v245, 32
    %v257 = vpop.permute.xlu0 %256
    %v260 = vsel %vm188, %v238, %v247
    %v261 = vsel %vm188, %v239, %v249
    %v262 = vsel %vm77, %v260, %v255
    %v263 = vsel %vm77, %v261, %v257
    %v264 = vld [vmem:[%s6] sm:$0xff]
    %v265 = vld [vmem:[%s6 + $0x8] sm:$0xff]
    %v266 = vld [vmem:[%s6 + $0x10] sm:$0xff]
    %v267 = vld [vmem:[%s6 + $0x18] sm:$0xff]
    %v268 = vld [vmem:[%s6 + $0x20] sm:$0xff]
    %v269 = vld [vmem:[%s6 + $0x28] sm:$0xff]
    %v270 = vld [vmem:[%s7] sm:$0x1]
    %v272 = vlaneseq
    %v273 = vshrl.u32 %v272, 7
    %v274 = vsub.s32 0, %v273
    %v275 = vrot.slane %v270, %v274
    %vm277 = vcmask 392192
    %v279 = vsel %vm277, %v262, 0
    %v282 = vsel %vm277, %v263, 0
    %284 = vmatprep.subr.mxu0 0.0
    %285 = vmatpush1.msra.mxu0 0.0
    %286 = vmatprep.subr.mxu0 0.0
    %287 = vmatpush1.msra.mxu0 0.0
    %288 = vmatprep.subr.mxu0 0.0
    %289 = vmatpush1.msra.mxu0 0.0
    %290 = vmatprep.subr.mxu0 0.0
    %291 = vmatpush1.msra.mxu0 0.0
    %292 = vmatprep.subr.mxu0 0.0
    %293 = vmatpush1.msra.mxu0 0.0
    %294 = vmatprep.subr.mxu0 0.0
    %295 = vmatpush1.msra.mxu0 0.0
    %296 = vmatprep.subr.mxu0 0.0
    %297 = vmatpush1.msra.mxu0 0.0
    %298 = vmatprep.subr.mxu0 0.0
    %299 = vmatpush1.msra.mxu0 0.0
    %300 = vmatprep.subr.mxu0 0.0
    %301 = vmatpush1.msra.mxu0 0.0
    %302 = vmatprep.subr.mxu0 0.0
    %303 = vmatpush1.msra.mxu0 0.0
    %304 = vmatprep.subr.mxu0 0.0
    %305 = vmatpush1.msra.mxu0 %v269
    %306 = vmatprep.subr.mxu0 0.0
    %307 = vmatpush1.msra.mxu0 %v268
    %308 = vmatprep.subr.mxu0 0.0
    %309 = vmatpush1.msra.mxu0 %v267
    %310 = vmatprep.subr.mxu0 0.0
    %311 = vmatpush1.msra.mxu0 %v266
    %312 = vmatprep.subr.mxu0 0.0
    %313 = vmatpush1.msra.mxu0 %v265
    %314 = vmatprep.subr.mxu0 0.0
    %315 = vmatpush1.msra.mxu0 %v264
    %316 = vmatprep.subr.mxu0 0.0
    %317 = vmatpush2.msra.mxu0 0.0
    %318 = vmatprep.subr.mxu0 0.0
    %319 = vmatpush2.msra.mxu0 0.0
    %320 = vmatprep.subr.mxu0 0.0
    %321 = vmatpush2.msra.mxu0 0.0
    %322 = vmatprep.subr.mxu0 0.0
    %323 = vmatpush2.msra.mxu0 0.0
    %324 = vmatprep.subr.mxu0 0.0
    %325 = vmatpush2.msra.mxu0 0.0
    %326 = vmatprep.subr.mxu0 0.0
    %327 = vmatpush2.msra.mxu0 0.0
    %328 = vmatprep.subr.mxu0 0.0
    %329 = vmatpush2.msra.mxu0 0.0
    %330 = vmatprep.subr.mxu0 0.0
    %331 = vmatpush2.msra.mxu0 0.0
    %332 = vmatprep.subr.mxu0 0.0
    %333 = vmatpush2.msra.mxu0 0.0
    %334 = vmatprep.subr.mxu0 0.0
    %335 = vmatpush2.msra.mxu0 0.0
    %336 = vmatprep.subr.mxu0 0.0
    %337 = vmatpush2.msra.mxu0 0.0
    %338 = vmatprep.subr.mxu0 0.0
    %339 = vmatpush2.msra.mxu0 0.0
    %340 = vmatprep.subr.mxu0 0.0
    %341 = vmatpush2.msra.mxu0 0.0
    %342 = vmatprep.subr.mxu0 0.0
    %343 = vmatpush2.msra.mxu0 0.0
    %344 = vmatprep.subr.mxu0 0.0
    %345 = vmatpush2.msra.mxu0 0.0
    %346 = vmatprep.subr.mxu0 0.0
    %347 = vmatpush2.msra.mxu0 0.0
    %348 = vmatprep.mubr.f32.mxu0 0.0
    %349 = vmatmul.mubr.f32.gmra.mxu0 %v279
    %v350 = vpop.f32.mrf.mxu0
    %v351 = vadd.f32 %v275, %v350
    %v352 = vpop.f32.mrf.mxu0
    %353 = vmatprep.mubr.f32.mxu0 0.0
    %354 = vmatmul.mubr.f32.gmra.mxu0 %v282
    %v355 = vpop.f32.mrf.mxu0
    %v356 = vadd.f32 %v275, %v355
    %v357 = vpop.f32.mrf.mxu0
    %358 = vdwg.mxu0
    %v359 = vmax.f32 %v351, 0.0
    %v360 = vmax.f32 %v356, 0.0
    %v361 = vld [vmem:[%s8] sm:$0x1]
    %v362 = vld [vmem:[%s9] sm:$0x1]
    %v363 = vsel %vm188, %v359, 0.0
    %364 = vadd.xlane.f32.xlu0 %v363
    %v365 = vpop.xlane.xlu0 %364
    %v366 = vsel %vm188, %v360, 0.0
    %367 = vadd.xlane.f32.xlu0 %v366
    %v368 = vpop.xlane.xlu0 %367
    %v369 = vmul.f32 %v365, %v195
    %v370 = vmul.f32 %v368, %v195
    %v371 = vsub.f32 %v359, %v369
    %v372 = vsub.f32 %v360, %v370
    %v373 = vmul.f32 %v371, %v371
    %v374 = vmul.f32 %v372, %v372
    %v375 = vsel %vm188, %v373, 0.0
    %376 = vadd.xlane.f32.xlu0 %v375
    %v377 = vpop.xlane.xlu0 %376
    %v378 = vsel %vm188, %v374, 0.0
    %379 = vadd.xlane.f32.xlu0 %v378
    %v380 = vpop.xlane.xlu0 %379
    %v381 = vmul.f32 %v377, %v195
    %v382 = vmul.f32 %v380, %v195
    %v383 = vadd.f32 %v381, 1e-05
    %v384 = vadd.f32 %v382, 1e-05
    %v385 = vrsqrt.pop %v383
    %v386 = vrsqrt.pop %v384
    %v387 = vmul.f32 %v371, %v385
    %v388 = vmul.f32 %v372, %v386
    %v390 = vlaneseq
    %v391 = vshrl.u32 %v390, 7
    %v392 = vsub.s32 0, %v391
    %v393 = vrot.slane %v361, %v392
    %v395 = vmul.f32 %v387, %v393
    %v396 = vmul.f32 %v388, %v393
    %v398 = vlaneseq
    %v399 = vshrl.u32 %v398, 7
    %v400 = vsub.s32 0, %v399
    %v401 = vrot.slane %v362, %v400
    %v403 = vadd.f32 %v395, %v401
    %v404 = vadd.f32 %v396, %v401
    %v405 = vld [vmem:[%s10] sm:$0x1]
    %v407 = vlaneseq
    %v408 = vshrl.u32 %v407, 7
    %v409 = vsub.s32 0, %v408
    %v410 = vrot.slane %v405, %v409
    %v412 = vmul.f32 %v403, %v410
    %v413 = vmul.f32 %v404, %v410
    %v414 = vsel %vm188, %v412, 0.0
    %415 = vadd.xlane.f32.xlu0 %v414
    %v416 = vpop.xlane.xlu0 %415
    %v417 = vsel %vm188, %v413, 0.0
    %418 = vadd.xlane.f32.xlu0 %v417
    %v419 = vpop.xlane.xlu0 %418
    %v420 = vld [vmem:[#allocation2] sm:$0x1]
    %v422 = vlaneseq
    %v423 = vshrl.u32 %v422, 7
    %v424 = vsub.s32 0, %v423
    %v425 = vrot.slane %v420, %v424
    %426 = vset.pattern.permute.xlu0 0
    %427 = vperm.xlu0 %426, %v425
    %v428 = vpop.permute.xlu0 %427
    %v430 = vadd.f32 %v416, %v428
    %v431 = vadd.f32 %v419, %v428
    %v433 = vlaneseq
    %v434 = vshrl.u32 %v433, 7
    %v435 = vsub.s32 0, %v434
    %v436 = vrot.slane %v46, %v435
    %438 = vbcast.lane.b32.xlu0 %v436, 256
    %v439 = vpop.permute.xlu0 %438
    %v440 = vlaneseq
    %v441 = vshrl.u32 %v440, 7
    %v442 = vsub.s32 1, %v441
    %v443 = vrot.slane %v46, %v442
    %445 = vbcast.lane.b32.xlu0 %v443, 256
    %v446 = vpop.permute.xlu0 %445
    %v449 = vmul.f32 %v430, %v439
    %v450 = vmul.f32 %v431, %v446
    %453 = vset.pattern.permute.xlu0 0
    %454 = vperm.xlu0 %453, %v449
    %v455 = vpop.permute.xlu0 %454
    %456 = vset.pattern.permute.xlu0 0
    %457 = vperm.xlu0 %456, %v450
    %v458 = vpop.permute.xlu0 %457
    %v459 = vlaneseq
    %v460 = vand.u32 %v459, 127
    %v461 = vlaneseq
    %v462 = vshrl.u32 %v461, 7
    %v463 = vsub.s32 %v460, %v462
    %v464 = vrot.slane %v455, %v463
    %v465 = vlaneseq
    %v466 = vshrl.u32 %v465, 7
    %v467 = vsub.s32 %v460, %v466
    %v468 = vrot.slane %v458, %v467
    %vm469 = vcmask 1041409
    %v470 = vsel %vm469, %v468, %v464
    %vm472 = vcmask 58368
    %473 = vst.msk [vmem:[#allocation3] sm:$0x3] %vm472, %v470
    // Predicated region
    $region50: #{fastspeech_forward.8} parent=1 // pred_check
      _
    $region51: #{fastspeech_forward.8} parent=1 // pred_check_branch
      %475 = sbr.rel (0) target = $region53
    $region52: #{fastspeech_forward.8} parent=1 // pred_region
      %s477 = ssub.s32 32, 32
      %478 = vsyncadd [#allocation4], %s477
      %s480 = sshll.u32 [#allocation3], 4
      %s481 = int_to_ptr.vmem [resolvable:$true] %s480
      %483 = dma.vmem_to_hbm [thread:$0]  %s481, 32, %s12, [#allocation4]
    $region53: #{fastspeech_forward.8} parent=1 // pred_fallthru
      _
    // Predicated region
    $region54: #{fastspeech_forward.8} parent=1 // pred_check
      _
    $region55: #{fastspeech_forward.8} parent=1 // pred_check_branch
      %485 = sbr.rel (0) target = $region57
    $region56: #{fastspeech_forward.8} parent=1 // pred_region
      %486 = dma.done [#allocation4], 32
    $region57: #{fastspeech_forward.8} parent=1 // pred_fallthru
      _
    %487 = vsyncpa [#allocation4], 1

// kernel: fastspeech_forward.6
$region0: #{fastspeech_forward.6}
  #allocation0 [shape = 'u32[]', space=smem, size = 0x4, offset = 0x4, fixed_abs, tag = 'smem constant byte address 0x4 - core index']
  #allocation1 [shape = 'u32[144,128]{1,0:T(1,128)}', space=vmem, size = 0x12000, scoped, tag = 'internal scratch']
  %s0 = inlined_call_operand.vmem [shape: f32[2,8,32], index: 0, kind: input, shape index: {}]
  %s1 = inlined_call_operand.vmem [shape: f32[2,8], index: 1, kind: input, shape index: {}]
  %s2 = inlined_call_operand.vmem [shape: f32[32,96], index: 2, kind: input, shape index: {}]
  %s3 = inlined_call_operand.vmem [shape: f32[1,96], index: 3, kind: input, shape index: {}]
  %s4 = inlined_call_operand.vmem [shape: f32[32,32], index: 4, kind: input, shape index: {}]
  %s5 = inlined_call_operand.vmem [shape: f32[1,32], index: 5, kind: input, shape index: {}]
  %s6 = inlined_call_operand.vmem [shape: f32[1,32], index: 6, kind: input, shape index: {}]
  %s7 = inlined_call_operand.vmem [shape: f32[1,32], index: 7, kind: input, shape index: {}]
  %s8 = inlined_call_operand.vmem [shape: f32[96,64], index: 8, kind: input, shape index: {}]
  %s9 = inlined_call_operand.vmem [shape: f32[1,64], index: 9, kind: input, shape index: {}]
  %s10 = inlined_call_operand.vmem [shape: f32[192,32], index: 10, kind: input, shape index: {}]
  %s11 = inlined_call_operand.vmem [shape: f32[1,32], index: 11, kind: input, shape index: {}]
  %s12 = inlined_call_operand.vmem [shape: f32[1,32], index: 12, kind: input, shape index: {}]
  %s13 = inlined_call_operand.vmem [shape: f32[1,32], index: 13, kind: input, shape index: {}]
  %s14 = inlined_call_operand.vmem [shape: f32[2,8,32], index: 14, kind: output, shape index: {}]
  %s15 = sld [smem:[#allocation0]]
  $region66: #{fastspeech_forward.6} parent=0
    _
  %s17 = ssub.s32 1, %s15
  %s18 = scalar_select 0, %s17, %s15
  // Predicated region
  $region2: #{fastspeech_forward.6} parent=0 // pred_check
    _
  $region3: #{fastspeech_forward.6} parent=0 // pred_check_branch
    %20 = sbr.rel (0) target = $region5
  $region4: #{fastspeech_forward.6} parent=0 // pred_region
    _
  $region5: #{fastspeech_forward.6} parent=0 // pred_fallthru
    _
  // Predicated region
  $region6: #{fastspeech_forward.6} parent=0 // pred_check
    _
  $region7: #{fastspeech_forward.6} parent=0 // pred_check_branch
    %22 = sbr.rel (0) target = $region9
  $region8: #{fastspeech_forward.6} parent=0 // pred_region
    _
  $region9: #{fastspeech_forward.6} parent=0 // pred_fallthru
    _
  // Predicated region
  $region10: #{fastspeech_forward.6} parent=0 // pred_check
    _
  $region11: #{fastspeech_forward.6} parent=0 // pred_check_branch
    %24 = sbr.rel (0) target = $region13
  $region12: #{fastspeech_forward.6} parent=0 // pred_region
    _
  $region13: #{fastspeech_forward.6} parent=0 // pred_fallthru
    _
  // Predicated region
  $region14: #{fastspeech_forward.6} parent=0 // pred_check
    _
  $region15: #{fastspeech_forward.6} parent=0 // pred_check_branch
    %26 = sbr.rel (0) target = $region17
  $region16: #{fastspeech_forward.6} parent=0 // pred_region
    _
  $region17: #{fastspeech_forward.6} parent=0 // pred_fallthru
    _
  // Predicated region
  $region18: #{fastspeech_forward.6} parent=0 // pred_check
    _
  $region19: #{fastspeech_forward.6} parent=0 // pred_check_branch
    %28 = sbr.rel (0) target = $region21
  $region20: #{fastspeech_forward.6} parent=0 // pred_region
    _
  $region21: #{fastspeech_forward.6} parent=0 // pred_fallthru
    _
  // Predicated region
  $region22: #{fastspeech_forward.6} parent=0 // pred_check
    _
  $region23: #{fastspeech_forward.6} parent=0 // pred_check_branch
    %30 = sbr.rel (0) target = $region25
  $region24: #{fastspeech_forward.6} parent=0 // pred_region
    _
  $region25: #{fastspeech_forward.6} parent=0 // pred_fallthru
    _
  // Predicated region
  $region26: #{fastspeech_forward.6} parent=0 // pred_check
    _
  $region27: #{fastspeech_forward.6} parent=0 // pred_check_branch
    %32 = sbr.rel (0) target = $region29
  $region28: #{fastspeech_forward.6} parent=0 // pred_region
    _
  $region29: #{fastspeech_forward.6} parent=0 // pred_fallthru
    _
  // Predicated region
  $region30: #{fastspeech_forward.6} parent=0 // pred_check
    _
  $region31: #{fastspeech_forward.6} parent=0 // pred_check_branch
    %34 = sbr.rel (0) target = $region33
  $region32: #{fastspeech_forward.6} parent=0 // pred_region
    _
  $region33: #{fastspeech_forward.6} parent=0 // pred_fallthru
    _
  // Predicated region
  $region34: #{fastspeech_forward.6} parent=0 // pred_check
    _
  $region35: #{fastspeech_forward.6} parent=0 // pred_check_branch
    %36 = sbr.rel (0) target = $region37
  $region36: #{fastspeech_forward.6} parent=0 // pred_region
    _
  $region37: #{fastspeech_forward.6} parent=0 // pred_fallthru
    _
  // Predicated region
  $region38: #{fastspeech_forward.6} parent=0 // pred_check
    _
  $region39: #{fastspeech_forward.6} parent=0 // pred_check_branch
    %38 = sbr.rel (0) target = $region41
  $region40: #{fastspeech_forward.6} parent=0 // pred_region
    _
  $region41: #{fastspeech_forward.6} parent=0 // pred_fallthru
    _
  // Predicated region
  $region42: #{fastspeech_forward.6} parent=0 // pred_check
    _
  $region43: #{fastspeech_forward.6} parent=0 // pred_check_branch
    %40 = sbr.rel (0) target = $region45
  $region44: #{fastspeech_forward.6} parent=0 // pred_region
    _
  $region45: #{fastspeech_forward.6} parent=0 // pred_fallthru
    _
  // Predicated region
  $region46: #{fastspeech_forward.6} parent=0 // pred_check
    _
  $region47: #{fastspeech_forward.6} parent=0 // pred_check_branch
    %42 = sbr.rel (0) target = $region49
  $region48: #{fastspeech_forward.6} parent=0 // pred_region
    _
  $region49: #{fastspeech_forward.6} parent=0 // pred_fallthru
    _
  // Predicated region
  $region50: #{fastspeech_forward.6} parent=0 // pred_check
    _
  $region51: #{fastspeech_forward.6} parent=0 // pred_check_branch
    %44 = sbr.rel (0) target = $region53
  $region52: #{fastspeech_forward.6} parent=0 // pred_region
    _
  $region53: #{fastspeech_forward.6} parent=0 // pred_fallthru
    _
  // Predicated region
  $region54: #{fastspeech_forward.6} parent=0 // pred_check
    _
  $region55: #{fastspeech_forward.6} parent=0 // pred_check_branch
    %46 = sbr.rel (0) target = $region57
  $region56: #{fastspeech_forward.6} parent=0 // pred_region
    _
  $region57: #{fastspeech_forward.6} parent=0 // pred_fallthru
    _
  %v47 = vld [vmem:[%s0] sm:$0xff]
  %v48 = vld [vmem:[%s0 + $0x8] sm:$0xff]
  %v49 = vld [vmem:[%s1] sm:$0x3]
  %v50 = vld [vmem:[%s2] sm:$0xff]
  %v51 = vld [vmem:[%s2 + $0x8] sm:$0xff]
  %v52 = vld [vmem:[%s2 + $0x10] sm:$0xff]
  %v53 = vld [vmem:[%s2 + $0x18] sm:$0xff]
  %v54 = vld [vmem:[%s3] sm:$0x1]
  %v56 = vlaneseq
  %v57 = vshrl.u32 %v56, 7
  %v58 = vsub.s32 0, %v57
  %v59 = vrot.slane %v54, %v58
  %vm61 = vcmask 261120
  %v63 = vsel %vm61, %v47, 0
  %v66 = vsel %vm61, %v48, 0
  %68 = vmatprep.subr.mxu0 0.0
  %69 = vmatpush1.msra.mxu0 0.0
  %70 = vmatprep.subr.mxu0 0.0
  %71 = vmatpush1.msra.mxu0 0.0
  %72 = vmatprep.subr.mxu0 0.0
  %73 = vmatpush1.msra.mxu0 0.0
  %74 = vmatprep.subr.mxu0 0.0
  %75 = vmatpush1.msra.mxu0 0.0
  %76 = vmatprep.subr.mxu0 0.0
  %77 = vmatpush1.msra.mxu0 0.0
  %78 = vmatprep.subr.mxu0 0.0
  %79 = vmatpush1.msra.mxu0 0.0
  %80 = vmatprep.subr.mxu0 0.0
  %81 = vmatpush1.msra.mxu0 0.0
  %82 = vmatprep.subr.mxu0 0.0
  %83 = vmatpush1.msra.mxu0 0.0
  %84 = vmatprep.subr.mxu0 0.0
  %85 = vmatpush1.msra.mxu0 0.0
  %86 = vmatprep.subr.mxu0 0.0
  %87 = vmatpush1.msra.mxu0 0.0
  %88 = vmatprep.subr.mxu0 0.0
  %89 = vmatpush1.msra.mxu0 0.0
  %90 = vmatprep.subr.mxu0 0.0
  %91 = vmatpush1.msra.mxu0 0.0
  %92 = vmatprep.subr.mxu0 0.0
  %93 = vmatpush1.msra.mxu0 %v53
  %94 = vmatprep.subr.mxu0 0.0
  %95 = vmatpush1.msra.mxu0 %v52
  %96 = vmatprep.subr.mxu0 0.0
  %97 = vmatpush1.msra.mxu0 %v51
  %98 = vmatprep.subr.mxu0 0.0
  %99 = vmatpush1.msra.mxu0 %v50
  %100 = vmatprep.subr.mxu0 0.0
  %101 = vmatpush2.msra.mxu0 0.0
  %102 = vmatprep.subr.mxu0 0.0
  %103 = vmatpush2.msra.mxu0 0.0
  %104 = vmatprep.subr.mxu0 0.0
  %105 = vmatpush2.msra.mxu0 0.0
  %106 = vmatprep.subr.mxu0 0.0
  %107 = vmatpush2.msra.mxu0 0.0
  %108 = vmatprep.subr.mxu0 0.0
  %109 = vmatpush2.msra.mxu0 0.0
  %110 = vmatprep.subr.mxu0 0.0
  %111 = vmatpush2.msra.mxu0 0.0
  %112 = vmatprep.subr.mxu0 0.0
  %113 = vmatpush2.msra.mxu0 0.0
  %114 = vmatprep.subr.mxu0 0.0
  %115 = vmatpush2.msra.mxu0 0.0
  %116 = vmatprep.subr.mxu0 0.0
  %117 = vmatpush2.msra.mxu0 0.0
  %118 = vmatprep.subr.mxu0 0.0
  %119 = vmatpush2.msra.mxu0 0.0
  %120 = vmatprep.subr.mxu0 0.0
  %121 = vmatpush2.msra.mxu0 0.0
  %122 = vmatprep.subr.mxu0 0.0
  %123 = vmatpush2.msra.mxu0 0.0
  %124 = vmatprep.subr.mxu0 0.0
  %125 = vmatpush2.msra.mxu0 0.0
  %126 = vmatprep.subr.mxu0 0.0
  %127 = vmatpush2.msra.mxu0 0.0
  %128 = vmatprep.subr.mxu0 0.0
  %129 = vmatpush2.msra.mxu0 0.0
  %130 = vmatprep.subr.mxu0 0.0
  %131 = vmatpush2.msra.mxu0 0.0
  %132 = vmatprep.mubr.f32.mxu0 0.0
  %133 = vmatmul.mubr.f32.gmra.mxu0 %v63
  %v134 = vpop.f32.mrf.mxu0
  %v135 = vadd.f32 %v59, %v134
  %v136 = vpop.f32.mrf.mxu0
  %137 = vmatprep.mubr.f32.mxu0 0.0
  %138 = vmatmul.mubr.f32.gmra.mxu0 %v66
  %v139 = vpop.f32.mrf.mxu0
  %v140 = vadd.f32 %v59, %v139
  %v141 = vpop.f32.mrf.mxu0
  %142 = vdwg.mxu0
  %v145 = vunpack.c.l.s4 1966171168
  %v146 = vunpack.c.0.s8 %v145
  %v147 = vlaneseq
  %v148 = vshrl.u32 %v147, 7
  %v149 = vsub.s32 %v146, %v148
  %v150 = vrot.slane %v49, %v149
  %v151 = vcombine.high %v150, %v150
  %v153 = vunpack.c.l.s4 1966171168
  %v154 = vunpack.c.0.s8 %v153
  %v155 = vlaneseq
  %v156 = vshrl.u32 %v155, 7
  %v157 = vsub.s32 %v154, %v156
  %v158 = vrot.slane %v150, %v157
  %v160 = vunpack.c.l.s4 1966171168
  %v161 = vunpack.c.0.s8 %v160
  %v162 = vlaneseq
  %v163 = vshrl.u32 %v162, 7
  %v164 = vsub.s32 %v161, %v163
  %v165 = vrot.slane %v151, %v164
  %vm168 = vcmp.gt.f32.partialorder %v158, 0.5
  %vm169 = vcmp.gt.f32.partialorder %v165, 0.5
  %171 = vrot.lane.b32.xlu0 %v135, 96
  %v172 = vpop.permute.xlu0 %171
  %vm173 = vcmask 130048
  %v174 = vsel %vm173, %v135, 0
  %v176 = vsel %vm173, %v172, 0
  %178 = vmatprep.subr.mxu0 0.0
  %179 = vmatpush1.xpose.msra.mxu0 0.0
  %180 = vmatprep.subr.mxu0 0.0
  %181 = vmatpush1.xpose.msra.mxu0 0.0
  %182 = vmatprep.subr.mxu0 0.0
  %183 = vmatpush1.xpose.msra.mxu0 0.0
  %184 = vmatprep.subr.mxu0 0.0
  %185 = vmatpush1.xpose.msra.mxu0 0.0
  %186 = vmatprep.subr.mxu0 0.0
  %187 = vmatpush1.xpose.msra.mxu0 0.0
  %188 = vmatprep.subr.mxu0 0.0
  %189 = vmatpush1.xpose.msra.mxu0 0.0
  %190 = vmatprep.subr.mxu0 0.0
  %191 = vmatpush1.xpose.msra.mxu0 0.0
  %192 = vmatprep.subr.mxu0 0.0
  %193 = vmatpush1.xpose.msra.mxu0 0.0
  %194 = vmatprep.subr.mxu0 0.0
  %195 = vmatpush1.xpose.msra.mxu0 0.0
  %196 = vmatprep.subr.mxu0 0.0
  %197 = vmatpush1.xpose.msra.mxu0 0.0
  %198 = vmatprep.subr.mxu0 0.0
  %199 = vmatpush1.xpose.msra.mxu0 0.0
  %200 = vmatprep.subr.mxu0 0.0
  %201 = vmatpush1.xpose.msra.mxu0 0.0
  %202 = vmatprep.subr.mxu0 0.0
  %203 = vmatpush1.xpose.msra.mxu0 0.0
  %204 = vmatprep.subr.mxu0 0.0
  %205 = vmatpush1.xpose.msra.mxu0 0.0
  %206 = vmatprep.subr.mxu0 0.0
  %207 = vmatpush1.xpose.msra.mxu0 0.0
  %208 = vmatprep.subr.mxu0 0.0
  %209 = vmatpush1.xpose.msra.mxu0 %v176
  %210 = vmatprep.subr.mxu0 0.0
  %211 = vmatpush2.xpose.msra.mxu0 0.0
  %212 = vmatprep.subr.mxu0 0.0
  %213 = vmatpush2.xpose.msra.mxu0 0.0
  %214 = vmatprep.subr.mxu0 0.0
  %215 = vmatpush2.xpose.msra.mxu0 0.0
  %216 = vmatprep.subr.mxu0 0.0
  %217 = vmatpush2.xpose.msra.mxu0 0.0
  %218 = vmatprep.subr.mxu0 0.0
  %219 = vmatpush2.xpose.msra.mxu0 0.0
  %220 = vmatprep.subr.mxu0 0.0
  %221 = vmatpush2.xpose.msra.mxu0 0.0
  %222 = vmatprep.subr.mxu0 0.0
  %223 = vmatpush2.xpose.msra.mxu0 0.0
  %224 = vmatprep.subr.mxu0 0.0
  %225 = vmatpush2.xpose.msra.mxu0 0.0
  %226 = vmatprep.subr.mxu0 0.0
  %227 = vmatpush2.xpose.msra.mxu0 0.0
  %228 = vmatprep.subr.mxu0 0.0
  %229 = vmatpush2.xpose.msra.mxu0 0.0
  %230 = vmatprep.subr.mxu0 0.0
  %231 = vmatpush2.xpose.msra.mxu0 0.0
  %232 = vmatprep.subr.mxu0 0.0
  %233 = vmatpush2.xpose.msra.mxu0 0.0
  %234 = vmatprep.subr.mxu0 0.0
  %235 = vmatpush2.xpose.msra.mxu0 0.0
  %236 = vmatprep.subr.mxu0 0.0
  %237 = vmatpush2.xpose.msra.mxu0 0.0
  %238 = vmatprep.subr.mxu0 0.0
  %239 = vmatpush2.xpose.msra.mxu0 0.0
  %240 = vmatprep.subr.mxu0 0.0
  %241 = vmatpush2.xpose.msra.mxu0 0.0
  %242 = vmatprep.mubr.f32.mxu0 0.0
  %243 = vmatmul.mubr.f32.gmra.mxu0 %v174
  %v244 = vpop.f32.mrf.mxu0
  %v245 = vadd.f32 0.0, %v244
  %v246 = vpop.f32.mrf.mxu0
  %247 = vdwg.mxu0
  %249 = vrot.lane.b32.xlu0 %v140, 96
  %v250 = vpop.permute.xlu0 %249
  %v251 = vsel %vm173, %v140, 0
  %v253 = vsel %vm173, %v250, 0
  %255 = vmatprep.subr.mxu0 0.0
  %256 = vmatpush1.xpose.msra.mxu0 0.0
  %257 = vmatprep.subr.mxu0 0.0
  %258 = vmatpush1.xpose.msra.mxu0 0.0
  %259 = vmatprep.subr.mxu0 0.0
  %260 = vmatpush1.xpose.msra.mxu0 0.0
  %261 = vmatprep.subr.mxu0 0.0
  %262 = vmatpush1.xpose.msra.mxu0 0.0
  %263 = vmatprep.subr.mxu0 0.0
  %264 = vmatpush1.xpose.msra.mxu0 0.0
  %265 = vmatprep.subr.mxu0 0.0
  %266 = vmatpush1.xpose.msra.mxu0 0.0
  %267 = vmatprep.subr.mxu0 0.0
  %268 = vmatpush1.xpose.msra.mxu0 0.0
  %269 = vmatprep.subr.mxu0 0.0
  %270 = vmatpush1.xpose.msra.mxu0 0.0
  %271 = vmatprep.subr.mxu0 0.0
  %272 = vmatpush1.xpose.msra.mxu0 0.0
  %273 = vmatprep.subr.mxu0 0.0
  %274 = vmatpush1.xpose.msra.mxu0 0.0
  %275 = vmatprep.subr.mxu0 0.0
  %276 = vmatpush1.xpose.msra.mxu0 0.0
  %277 = vmatprep.subr.mxu0 0.0
  %278 = vmatpush1.xpose.msra.mxu0 0.0
  %279 = vmatprep.subr.mxu0 0.0
  %280 = vmatpush1.xpose.msra.mxu0 0.0
  %281 = vmatprep.subr.mxu0 0.0
  %282 = vmatpush1.xpose.msra.mxu0 0.0
  %283 = vmatprep.subr.mxu0 0.0
  %284 = vmatpush1.xpose.msra.mxu0 0.0
  %285 = vmatprep.subr.mxu0 0.0
  %286 = vmatpush1.xpose.msra.mxu0 %v253
  %287 = vmatprep.subr.mxu0 0.0
  %288 = vmatpush2.xpose.msra.mxu0 0.0
  %289 = vmatprep.subr.mxu0 0.0
  %290 = vmatpush2.xpose.msra.mxu0 0.0
  %291 = vmatprep.subr.mxu0 0.0
  %292 = vmatpush2.xpose.msra.mxu0 0.0
  %293 = vmatprep.subr.mxu0 0.0
  %294 = vmatpush2.xpose.msra.mxu0 0.0
  %295 = vmatprep.subr.mxu0 0.0
  %296 = vmatpush2.xpose.msra.mxu0 0.0
  %297 = vmatprep.subr.mxu0 0.0
  %298 = vmatpush2.xpose.msra.mxu0 0.0
  %299 = vmatprep.subr.mxu0 0.0
  %300 = vmatpush2.xpose.msra.mxu0 0.0
  %301 = vmatprep.subr.mxu0 0.0
  %302 = vmatpush2.xpose.msra.mxu0 0.0
  %303 = vmatprep.subr.mxu0 0.0
  %304 = vmatpush2.xpose.msra.mxu0 0.0
  %305 = vmatprep.subr.mxu0 0.0
  %306 = vmatpush2.xpose.msra.mxu0 0.0
  %307 = vmatprep.subr.mxu0 0.0
  %308 = vmatpush2.xpose.msra.mxu0 0.0
  %309 = vmatprep.subr.mxu0 0.0
  %310 = vmatpush2.xpose.msra.mxu0 0.0
  %311 = vmatprep.subr.mxu0 0.0
  %312 = vmatpush2.xpose.msra.mxu0 0.0
  %313 = vmatprep.subr.mxu0 0.0
  %314 = vmatpush2.xpose.msra.mxu0 0.0
  %315 = vmatprep.subr.mxu0 0.0
  %316 = vmatpush2.xpose.msra.mxu0 0.0
  %317 = vmatprep.subr.mxu0 0.0
  %318 = vmatpush2.xpose.msra.mxu0 0.0
  %319 = vmatprep.mubr.f32.mxu0 0.0
  %320 = vmatmul.mubr.f32.gmra.mxu0 %v251
  %v321 = vpop.f32.mrf.mxu0
  %v322 = vadd.f32 0.0, %v321
  %v323 = vpop.f32.mrf.mxu0
  %324 = vdwg.mxu0
  %v325 = vmul.f32 %v245, 0.25
  %v326 = vmul.f32 %v322, 0.25
  %v327 = vsel %vm168, 1, 0
  %v328 = vsel %vm169, 1, 0
  %v329 = vlaneseq
  %v330 = vshrl.u32 %v329, 7
  %v331 = vsub.s32 0, %v330
  %v332 = vrot.slane %v327, %v331
  %v333 = vlaneseq
  %v334 = vshrl.u32 %v333, 7
  %v335 = vsub.s32 0, %v334
  %v336 = vrot.slane %v328, %v335
  %vm337 = vcmp.eq.s32.totalorder %v332, 1
  %vm338 = vcmp.eq.s32.totalorder %v336, 1
  %v339 = vsel %vm337, %v325, -1e+09
  %v340 = vsel %vm338, %v326, -1e+09
  %vm341 = vcmask 64512
  %v342 = vsel %vm341, %v339, -inf
  %343 = vmax.xlane.f32.xlu0 %v342
  %v344 = vpop.xlane.xlu0 %343
  %v345 = vsel %vm341, %v340, -inf
  %346 = vmax.xlane.f32.xlu0 %v345
  %v347 = vpop.xlane.xlu0 %346
  %v348 = vsub.f32 %v339, %v344
  %v349 = vsub.f32 %v340, %v347
  %v350 = vmul.f32 %v348, 1.442695
  %v351 = vpow.pop %v350
  %v352 = vmul.f32 %v349, 1.442695
  %v353 = vpow.pop %v352
  %v354 = vsel %vm341, %v351, 0.0
  %355 = vadd.xlane.f32.xlu0 %v354
  %v356 = vpop.xlane.xlu0 %355
  %v357 = vsel %vm341, %v353, 0.0
  %358 = vadd.xlane.f32.xlu0 %v357
  %v359 = vpop.xlane.xlu0 %358
  %v360 = vrcp.pop %v356
  %v361 = vmul.f32 %v351, %v360
  %v362 = vrcp.pop %v359
  %v363 = vmul.f32 %v353, %v362
  %364 = vrot.lane.b32.xlu0 %v135, 64
  %v365 = vpop.permute.xlu0 %364
  %v368 = vsel %vm341, %v361, 0
  %370 = vmatprep.subr.mxu0 0.0
  %371 = vmatpush1.msra.mxu0 0.0
  %372 = vmatprep.subr.mxu0 0.0
  %373 = vmatpush1.msra.mxu0 0.0
  %374 = vmatprep.subr.mxu0 0.0
  %375 = vmatpush1.msra.mxu0 0.0
  %376 = vmatprep.subr.mxu0 0.0
  %377 = vmatpush1.msra.mxu0 0.0
  %378 = vmatprep.subr.mxu0 0.0
  %379 = vmatpush1.msra.mxu0 0.0
  %380 = vmatprep.subr.mxu0 0.0
  %381 = vmatpush1.msra.mxu0 0.0
  %382 = vmatprep.subr.mxu0 0.0
  %383 = vmatpush1.msra.mxu0 0.0
  %384 = vmatprep.subr.mxu0 0.0
  %385 = vmatpush1.msra.mxu0 0.0
  %386 = vmatprep.subr.mxu0 0.0
  %387 = vmatpush1.msra.mxu0 0.0
  %388 = vmatprep.subr.mxu0 0.0
  %389 = vmatpush1.msra.mxu0 0.0
  %390 = vmatprep.subr.mxu0 0.0
  %391 = vmatpush1.msra.mxu0 0.0
  %392 = vmatprep.subr.mxu0 0.0
  %393 = vmatpush1.msra.mxu0 0.0
  %394 = vmatprep.subr.mxu0 0.0
  %395 = vmatpush1.msra.mxu0 0.0
  %396 = vmatprep.subr.mxu0 0.0
  %397 = vmatpush1.msra.mxu0 0.0
  %398 = vmatprep.subr.mxu0 0.0
  %399 = vmatpush1.msra.mxu0 0.0
  %400 = vmatprep.subr.mxu0 0.0
  %401 = vmatpush1.msra.mxu0 %v365
  %402 = vmatprep.subr.mxu0 0.0
  %403 = vmatpush2.msra.mxu0 0.0
  %404 = vmatprep.subr.mxu0 0.0
  %405 = vmatpush2.msra.mxu0 0.0
  %406 = vmatprep.subr.mxu0 0.0
  %407 = vmatpush2.msra.mxu0 0.0
  %408 = vmatprep.subr.mxu0 0.0
  %409 = vmatpush2.msra.mxu0 0.0
  %410 = vmatprep.subr.mxu0 0.0
  %411 = vmatpush2.msra.mxu0 0.0
  %412 = vmatprep.subr.mxu0 0.0
  %413 = vmatpush2.msra.mxu0 0.0
  %414 = vmatprep.subr.mxu0 0.0
  %415 = vmatpush2.msra.mxu0 0.0
  %416 = vmatprep.subr.mxu0 0.0
  %417 = vmatpush2.msra.mxu0 0.0
  %418 = vmatprep.subr.mxu0 0.0
  %419 = vmatpush2.msra.mxu0 0.0
  %420 = vmatprep.subr.mxu0 0.0
  %421 = vmatpush2.msra.mxu0 0.0
  %422 = vmatprep.subr.mxu0 0.0
  %423 = vmatpush2.msra.mxu0 0.0
  %424 = vmatprep.subr.mxu0 0.0
  %425 = vmatpush2.msra.mxu0 0.0
  %426 = vmatprep.subr.mxu0 0.0
  %427 = vmatpush2.msra.mxu0 0.0
  %428 = vmatprep.subr.mxu0 0.0
  %429 = vmatpush2.msra.mxu0 0.0
  %430 = vmatprep.subr.mxu0 0.0
  %431 = vmatpush2.msra.mxu0 0.0
  %432 = vmatprep.subr.mxu0 0.0
  %433 = vmatpush2.msra.mxu0 0.0
  %434 = vmatprep.mubr.f32.mxu0 0.0
  %435 = vmatmul.mubr.f32.gmra.mxu0 %v368
  %v436 = vpop.f32.mrf.mxu0
  %v437 = vadd.f32 0.0, %v436
  %v438 = vpop.f32.mrf.mxu0
  %439 = vdwg.mxu0
  %440 = vrot.lane.b32.xlu0 %v140, 64
  %v441 = vpop.permute.xlu0 %440
  %v444 = vsel %vm341, %v363, 0
  %446 = vmatprep.subr.mxu0 0.0
  %447 = vmatpush1.msra.mxu0 0.0
  %448 = vmatprep.subr.mxu0 0.0
  %449 = vmatpush1.msra.mxu0 0.0
  %450 = vmatprep.subr.mxu0 0.0
  %451 = vmatpush1.msra.mxu0 0.0
  %452 = vmatprep.subr.mxu0 0.0
  %453 = vmatpush1.msra.mxu0 0.0
  %454 = vmatprep.subr.mxu0 0.0
  %455 = vmatpush1.msra.mxu0 0.0
  %456 = vmatprep.subr.mxu0 0.0
  %457 = vmatpush1.msra.mxu0 0.0
  %458 = vmatprep.subr.mxu0 0.0
  %459 = vmatpush1.msra.mxu0 0.0
  %460 = vmatprep.subr.mxu0 0.0
  %461 = vmatpush1.msra.mxu0 0.0
  %462 = vmatprep.subr.mxu0 0.0
  %463 = vmatpush1.msra.mxu0 0.0
  %464 = vmatprep.subr.mxu0 0.0
  %465 = vmatpush1.msra.mxu0 0.0
  %466 = vmatprep.subr.mxu0 0.0
  %467 = vmatpush1.msra.mxu0 0.0
  %468 = vmatprep.subr.mxu0 0.0
  %469 = vmatpush1.msra.mxu0 0.0
  %470 = vmatprep.subr.mxu0 0.0
  %471 = vmatpush1.msra.mxu0 0.0
  %472 = vmatprep.subr.mxu0 0.0
  %473 = vmatpush1.msra.mxu0 0.0
  %474 = vmatprep.subr.mxu0 0.0
  %475 = vmatpush1.msra.mxu0 0.0
  %476 = vmatprep.subr.mxu0 0.0
  %477 = vmatpush1.msra.mxu0 %v441
  %478 = vmatprep.subr.mxu0 0.0
  %479 = vmatpush2.msra.mxu0 0.0
  %480 = vmatprep.subr.mxu0 0.0
  %481 = vmatpush2.msra.mxu0 0.0
  %482 = vmatprep.subr.mxu0 0.0
  %483 = vmatpush2.msra.mxu0 0.0
  %484 = vmatprep.subr.mxu0 0.0
  %485 = vmatpush2.msra.mxu0 0.0
  %486 = vmatprep.subr.mxu0 0.0
  %487 = vmatpush2.msra.mxu0 0.0
  %488 = vmatprep.subr.mxu0 0.0
  %489 = vmatpush2.msra.mxu0 0.0
  %490 = vmatprep.subr.mxu0 0.0
  %491 = vmatpush2.msra.mxu0 0.0
  %492 = vmatprep.subr.mxu0 0.0
  %493 = vmatpush2.msra.mxu0 0.0
  %494 = vmatprep.subr.mxu0 0.0
  %495 = vmatpush2.msra.mxu0 0.0
  %496 = vmatprep.subr.mxu0 0.0
  %497 = vmatpush2.msra.mxu0 0.0
  %498 = vmatprep.subr.mxu0 0.0
  %499 = vmatpush2.msra.mxu0 0.0
  %500 = vmatprep.subr.mxu0 0.0
  %501 = vmatpush2.msra.mxu0 0.0
  %502 = vmatprep.subr.mxu0 0.0
  %503 = vmatpush2.msra.mxu0 0.0
  %504 = vmatprep.subr.mxu0 0.0
  %505 = vmatpush2.msra.mxu0 0.0
  %506 = vmatprep.subr.mxu0 0.0
  %507 = vmatpush2.msra.mxu0 0.0
  %508 = vmatprep.subr.mxu0 0.0
  %509 = vmatpush2.msra.mxu0 0.0
  %510 = vmatprep.mubr.f32.mxu0 0.0
  %511 = vmatmul.mubr.f32.gmra.mxu0 %v444
  %v512 = vpop.f32.mrf.mxu0
  %v513 = vadd.f32 0.0, %v512
  %v514 = vpop.f32.mrf.mxu0
  %515 = vdwg.mxu0
  %516 = vrot.lane.b32.xlu0 %v135, 112
  %v517 = vpop.permute.xlu0 %516
  %518 = vrot.lane.b32.xlu0 %v135, 80
  %v519 = vpop.permute.xlu0 %518
  %v520 = vsel %vm173, %v517, 0
  %v522 = vsel %vm173, %v519, 0
  %524 = vmatprep.subr.mxu0 0.0
  %525 = vmatpush1.xpose.msra.mxu0 0.0
  %526 = vmatprep.subr.mxu0 0.0
  %527 = vmatpush1.xpose.msra.mxu0 0.0
  %528 = vmatprep.subr.mxu0 0.0
  %529 = vmatpush1.xpose.msra.mxu0 0.0
  %530 = vmatprep.subr.mxu0 0.0
  %531 = vmatpush1.xpose.msra.mxu0 0.0
  %532 = vmatprep.subr.mxu0 0.0
  %533 = vmatpush1.xpose.msra.mxu0 0.0
  %534 = vmatprep.subr.mxu0 0.0
  %535 = vmatpush1.xpose.msra.mxu0 0.0
  %536 = vmatprep.subr.mxu0 0.0
  %537 = vmatpush1.xpose.msra.mxu0 0.0
  %538 = vmatprep.subr.mxu0 0.0
  %539 = vmatpush1.xpose.msra.mxu0 0.0
  %540 = vmatprep.subr.mxu0 0.0
  %541 = vmatpush1.xpose.msra.mxu0 0.0
  %542 = vmatprep.subr.mxu0 0.0
  %543 = vmatpush1.xpose.msra.mxu0 0.0
  %544 = vmatprep.subr.mxu0 0.0
  %545 = vmatpush1.xpose.msra.mxu0 0.0
  %546 = vmatprep.subr.mxu0 0.0
  %547 = vmatpush1.xpose.msra.mxu0 0.0
  %548 = vmatprep.subr.mxu0 0.0
  %549 = vmatpush1.xpose.msra.mxu0 0.0
  %550 = vmatprep.subr.mxu0 0.0
  %551 = vmatpush1.xpose.msra.mxu0 0.0
  %552 = vmatprep.subr.mxu0 0.0
  %553 = vmatpush1.xpose.msra.mxu0 0.0
  %554 = vmatprep.subr.mxu0 0.0
  %555 = vmatpush1.xpose.msra.mxu0 %v522
  %556 = vmatprep.subr.mxu0 0.0
  %557 = vmatpush2.xpose.msra.mxu0 0.0
  %558 = vmatprep.subr.mxu0 0.0
  %559 = vmatpush2.xpose.msra.mxu0 0.0
  %560 = vmatprep.subr.mxu0 0.0
  %561 = vmatpush2.xpose.msra.mxu0 0.0
  %562 = vmatprep.subr.mxu0 0.0
  %563 = vmatpush2.xpose.msra.mxu0 0.0
  %564 = vmatprep.subr.mxu0 0.0
  %565 = vmatpush2.xpose.msra.mxu0 0.0
  %566 = vmatprep.subr.mxu0 0.0
  %567 = vmatpush2.xpose.msra.mxu0 0.0
  %568 = vmatprep.subr.mxu0 0.0
  %569 = vmatpush2.xpose.msra.mxu0 0.0
  %570 = vmatprep.subr.mxu0 0.0
  %571 = vmatpush2.xpose.msra.mxu0 0.0
  %572 = vmatprep.subr.mxu0 0.0
  %573 = vmatpush2.xpose.msra.mxu0 0.0
  %574 = vmatprep.subr.mxu0 0.0
  %575 = vmatpush2.xpose.msra.mxu0 0.0
  %576 = vmatprep.subr.mxu0 0.0
  %577 = vmatpush2.xpose.msra.mxu0 0.0
  %578 = vmatprep.subr.mxu0 0.0
  %579 = vmatpush2.xpose.msra.mxu0 0.0
  %580 = vmatprep.subr.mxu0 0.0
  %581 = vmatpush2.xpose.msra.mxu0 0.0
  %582 = vmatprep.subr.mxu0 0.0
  %583 = vmatpush2.xpose.msra.mxu0 0.0
  %584 = vmatprep.subr.mxu0 0.0
  %585 = vmatpush2.xpose.msra.mxu0 0.0
  %586 = vmatprep.subr.mxu0 0.0
  %587 = vmatpush2.xpose.msra.mxu0 0.0
  %588 = vmatprep.mubr.f32.mxu0 0.0
  %589 = vmatmul.mubr.f32.gmra.mxu0 %v520
  %v590 = vpop.f32.mrf.mxu0
  %v591 = vadd.f32 0.0, %v590
  %v592 = vpop.f32.mrf.mxu0
  %593 = vdwg.mxu0
  %594 = vrot.lane.b32.xlu0 %v140, 112
  %v595 = vpop.permute.xlu0 %594
  %596 = vrot.lane.b32.xlu0 %v140, 80
  %v597 = vpop.permute.xlu0 %596
  %v598 = vsel %vm173, %v595, 0
  %v600 = vsel %vm173, %v597, 0
  %602 = vmatprep.subr.mxu0 0.0
  %603 = vmatpush1.xpose.msra.mxu0 0.0
  %604 = vmatprep.subr.mxu0 0.0
  %605 = vmatpush1.xpose.msra.mxu0 0.0
  %606 = vmatprep.subr.mxu0 0.0
  %607 = vmatpush1.xpose.msra.mxu0 0.0
  %608 = vmatprep.subr.mxu0 0.0
  %609 = vmatpush1.xpose.msra.mxu0 0.0
  %610 = vmatprep.subr.mxu0 0.0
  %611 = vmatpush1.xpose.msra.mxu0 0.0
  %612 = vmatprep.subr.mxu0 0.0
  %613 = vmatpush1.xpose.msra.mxu0 0.0
  %614 = vmatprep.subr.mxu0 0.0
  %615 = vmatpush1.xpose.msra.mxu0 0.0
  %616 = vmatprep.subr.mxu0 0.0
  %617 = vmatpush1.xpose.msra.mxu0 0.0
  %618 = vmatprep.subr.mxu0 0.0
  %619 = vmatpush1.xpose.msra.mxu0 0.0
  %620 = vmatprep.subr.mxu0 0.0
  %621 = vmatpush1.xpose.msra.mxu0 0.0
  %622 = vmatprep.subr.mxu0 0.0
  %623 = vmatpush1.xpose.msra.mxu0 0.0
  %624 = vmatprep.subr.mxu0 0.0
  %625 = vmatpush1.xpose.msra.mxu0 0.0
  %626 = vmatprep.subr.mxu0 0.0
  %627 = vmatpush1.xpose.msra.mxu0 0.0
  %628 = vmatprep.subr.mxu0 0.0
  %629 = vmatpush1.xpose.msra.mxu0 0.0
  %630 = vmatprep.subr.mxu0 0.0
  %631 = vmatpush1.xpose.msra.mxu0 0.0
  %632 = vmatprep.subr.mxu0 0.0
  %633 = vmatpush1.xpose.msra.mxu0 %v600
  %634 = vmatprep.subr.mxu0 0.0
  %635 = vmatpush2.xpose.msra.mxu0 0.0
  %636 = vmatprep.subr.mxu0 0.0
  %637 = vmatpush2.xpose.msra.mxu0 0.0
  %638 = vmatprep.subr.mxu0 0.0
  %639 = vmatpush2.xpose.msra.mxu0 0.0
  %640 = vmatprep.subr.mxu0 0.0
  %641 = vmatpush2.xpose.msra.mxu0 0.0
  %642 = vmatprep.subr.mxu0 0.0
  %643 = vmatpush2.xpose.msra.mxu0 0.0
  %644 = vmatprep.subr.mxu0 0.0
  %645 = vmatpush2.xpose.msra.mxu0 0.0
  %646 = vmatprep.subr.mxu0 0.0
  %647 = vmatpush2.xpose.msra.mxu0 0.0
  %648 = vmatprep.subr.mxu0 0.0
  %649 = vmatpush2.xpose.msra.mxu0 0.0
  %650 = vmatprep.subr.mxu0 0.0
  %651 = vmatpush2.xpose.msra.mxu0 0.0
  %652 = vmatprep.subr.mxu0 0.0
  %653 = vmatpush2.xpose.msra.mxu0 0.0
  %654 = vmatprep.subr.mxu0 0.0
  %655 = vmatpush2.xpose.msra.mxu0 0.0
  %656 = vmatprep.subr.mxu0 0.0
  %657 = vmatpush2.xpose.msra.mxu0 0.0
  %658 = vmatprep.subr.mxu0 0.0
  %659 = vmatpush2.xpose.msra.mxu0 0.0
  %660 = vmatprep.subr.mxu0 0.0
  %661 = vmatpush2.xpose.msra.mxu0 0.0
  %662 = vmatprep.subr.mxu0 0.0
  %663 = vmatpush2.xpose.msra.mxu0 0.0
  %664 = vmatprep.subr.mxu0 0.0
  %665 = vmatpush2.xpose.msra.mxu0 0.0
  %666 = vmatprep.mubr.f32.mxu0 0.0
  %667 = vmatmul.mubr.f32.gmra.mxu0 %v598
  %v668 = vpop.f32.mrf.mxu0
  %v669 = vadd.f32 0.0, %v668
  %v670 = vpop.f32.mrf.mxu0
  %671 = vdwg.mxu0
  %v672 = vmul.f32 %v591, 0.25
  %v673 = vmul.f32 %v669, 0.25
  %v674 = vsel %vm337, %v672, -1e+09
  %v675 = vsel %vm338, %v673, -1e+09
  %v676 = vsel %vm341, %v674, -inf
  %677 = vmax.xlane.f32.xlu0 %v676
  %v678 = vpop.xlane.xlu0 %677
  %v679 = vsel %vm341, %v675, -inf
  %680 = vmax.xlane.f32.xlu0 %v679
  %v681 = vpop.xlane.xlu0 %680
  %v682 = vsub.f32 %v674, %v678
  %v683 = vsub.f32 %v675, %v681
  %v684 = vmul.f32 %v682, 1.442695
  %v685 = vpow.pop %v684
  %v686 = vmul.f32 %v683, 1.442695
  %v687 = vpow.pop %v686
  %v688 = vsel %vm341, %v685, 0.0
  %689 = vadd.xlane.f32.xlu0 %v688
  %v690 = vpop.xlane.xlu0 %689
  %v691 = vsel %vm341, %v687, 0.0
  %692 = vadd.xlane.f32.xlu0 %v691
  %v693 = vpop.xlane.xlu0 %692
  %v694 = vrcp.pop %v690
  %v695 = vmul.f32 %v685, %v694
  %v696 = vrcp.pop %v693
  %v697 = vmul.f32 %v687, %v696
  %698 = vrot.lane.b32.xlu0 %v135, 48
  %v699 = vpop.permute.xlu0 %698
  %v702 = vsel %vm341, %v695, 0
  %704 = vmatprep.subr.mxu0 0.0
  %705 = vmatpush1.msra.mxu0 0.0
  %706 = vmatprep.subr.mxu0 0.0
  %707 = vmatpush1.msra.mxu0 0.0
  %708 = vmatprep.subr.mxu0 0.0
  %709 = vmatpush1.msra.mxu0 0.0
  %710 = vmatprep.subr.mxu0 0.0
  %711 = vmatpush1.msra.mxu0 0.0
  %712 = vmatprep.subr.mxu0 0.0
  %713 = vmatpush1.msra.mxu0 0.0
  %714 = vmatprep.subr.mxu0 0.0
  %715 = vmatpush1.msra.mxu0 0.0
  %716 = vmatprep.subr.mxu0 0.0
  %717 = vmatpush1.msra.mxu0 0.0
  %718 = vmatprep.subr.mxu0 0.0
  %719 = vmatpush1.msra.mxu0 0.0
  %720 = vmatprep.subr.mxu0 0.0
  %721 = vmatpush1.msra.mxu0 0.0
  %722 = vmatprep.subr.mxu0 0.0
  %723 = vmatpush1.msra.mxu0 0.0
  %724 = vmatprep.subr.mxu0 0.0
  %725 = vmatpush1.msra.mxu0 0.0
  %726 = vmatprep.subr.mxu0 0.0
  %727 = vmatpush1.msra.mxu0 0.0
  %728 = vmatprep.subr.mxu0 0.0
  %729 = vmatpush1.msra.mxu0 0.0
  %730 = vmatprep.subr.mxu0 0.0
  %731 = vmatpush1.msra.mxu0 0.0
  %732 = vmatprep.subr.mxu0 0.0
  %733 = vmatpush1.msra.mxu0 0.0
  %734 = vmatprep.subr.mxu0 0.0
  %735 = vmatpush1.msra.mxu0 %v699
  %736 = vmatprep.subr.mxu0 0.0
  %737 = vmatpush2.msra.mxu0 0.0
  %738 = vmatprep.subr.mxu0 0.0
  %739 = vmatpush2.msra.mxu0 0.0
  %740 = vmatprep.subr.mxu0 0.0
  %741 = vmatpush2.msra.mxu0 0.0
  %742 = vmatprep.subr.mxu0 0.0
  %743 = vmatpush2.msra.mxu0 0.0
  %744 = vmatprep.subr.mxu0 0.0
  %745 = vmatpush2.msra.mxu0 0.0
  %746 = vmatprep.subr.mxu0 0.0
  %747 = vmatpush2.msra.mxu0 0.0
  %748 = vmatprep.subr.mxu0 0.0
  %749 = vmatpush2.msra.mxu0 0.0
  %750 = vmatprep.subr.mxu0 0.0
  %751 = vmatpush2.msra.mxu0 0.0
  %752 = vmatprep.subr.mxu0 0.0
  %753 = vmatpush2.msra.mxu0 0.0
  %754 = vmatprep.subr.mxu0 0.0
  %755 = vmatpush2.msra.mxu0 0.0
  %756 = vmatprep.subr.mxu0 0.0
  %757 = vmatpush2.msra.mxu0 0.0
  %758 = vmatprep.subr.mxu0 0.0
  %759 = vmatpush2.msra.mxu0 0.0
  %760 = vmatprep.subr.mxu0 0.0
  %761 = vmatpush2.msra.mxu0 0.0
  %762 = vmatprep.subr.mxu0 0.0
  %763 = vmatpush2.msra.mxu0 0.0
  %764 = vmatprep.subr.mxu0 0.0
  %765 = vmatpush2.msra.mxu0 0.0
  %766 = vmatprep.subr.mxu0 0.0
  %767 = vmatpush2.msra.mxu0 0.0
  %768 = vmatprep.mubr.f32.mxu0 0.0
  %769 = vmatmul.mubr.f32.gmra.mxu0 %v702
  %v770 = vpop.f32.mrf.mxu0
  %v771 = vadd.f32 0.0, %v770
  %v772 = vpop.f32.mrf.mxu0
  %773 = vdwg.mxu0
  %774 = vrot.lane.b32.xlu0 %v140, 48
  %v775 = vpop.permute.xlu0 %774
  %v778 = vsel %vm341, %v697, 0
  %780 = vmatprep.subr.mxu0 0.0
  %781 = vmatpush1.msra.mxu0 0.0
  %782 = vmatprep.subr.mxu0 0.0
  %783 = vmatpush1.msra.mxu0 0.0
  %784 = vmatprep.subr.mxu0 0.0
  %785 = vmatpush1.msra.mxu0 0.0
  %786 = vmatprep.subr.mxu0 0.0
  %787 = vmatpush1.msra.mxu0 0.0
  %788 = vmatprep.subr.mxu0 0.0
  %789 = vmatpush1.msra.mxu0 0.0
  %790 = vmatprep.subr.mxu0 0.0
  %791 = vmatpush1.msra.mxu0 0.0
  %792 = vmatprep.subr.mxu0 0.0
  %793 = vmatpush1.msra.mxu0 0.0
  %794 = vmatprep.subr.mxu0 0.0
  %795 = vmatpush1.msra.mxu0 0.0
  %796 = vmatprep.subr.mxu0 0.0
  %797 = vmatpush1.msra.mxu0 0.0
  %798 = vmatprep.subr.mxu0 0.0
  %799 = vmatpush1.msra.mxu0 0.0
  %800 = vmatprep.subr.mxu0 0.0
  %801 = vmatpush1.msra.mxu0 0.0
  %802 = vmatprep.subr.mxu0 0.0
  %803 = vmatpush1.msra.mxu0 0.0
  %804 = vmatprep.subr.mxu0 0.0
  %805 = vmatpush1.msra.mxu0 0.0
  %806 = vmatprep.subr.mxu0 0.0
  %807 = vmatpush1.msra.mxu0 0.0
  %808 = vmatprep.subr.mxu0 0.0
  %809 = vmatpush1.msra.mxu0 0.0
  %810 = vmatprep.subr.mxu0 0.0
  %811 = vmatpush1.msra.mxu0 %v775
  %812 = vmatprep.subr.mxu0 0.0
  %813 = vmatpush2.msra.mxu0 0.0
  %814 = vmatprep.subr.mxu0 0.0
  %815 = vmatpush2.msra.mxu0 0.0
  %816 = vmatprep.subr.mxu0 0.0
  %817 = vmatpush2.msra.mxu0 0.0
  %818 = vmatprep.subr.mxu0 0.0
  %819 = vmatpush2.msra.mxu0 0.0
  %820 = vmatprep.subr.mxu0 0.0
  %821 = vmatpush2.msra.mxu0 0.0
  %822 = vmatprep.subr.mxu0 0.0
  %823 = vmatpush2.msra.mxu0 0.0
  %824 = vmatprep.subr.mxu0 0.0
  %825 = vmatpush2.msra.mxu0 0.0
  %826 = vmatprep.subr.mxu0 0.0
  %827 = vmatpush2.msra.mxu0 0.0
  %828 = vmatprep.subr.mxu0 0.0
  %829 = vmatpush2.msra.mxu0 0.0
  %830 = vmatprep.subr.mxu0 0.0
  %831 = vmatpush2.msra.mxu0 0.0
  %832 = vmatprep.subr.mxu0 0.0
  %833 = vmatpush2.msra.mxu0 0.0
  %834 = vmatprep.subr.mxu0 0.0
  %835 = vmatpush2.msra.mxu0 0.0
  %836 = vmatprep.subr.mxu0 0.0
  %837 = vmatpush2.msra.mxu0 0.0
  %838 = vmatprep.subr.mxu0 0.0
  %839 = vmatpush2.msra.mxu0 0.0
  %840 = vmatprep.subr.mxu0 0.0
  %841 = vmatpush2.msra.mxu0 0.0
  %842 = vmatprep.subr.mxu0 0.0
  %843 = vmatpush2.msra.mxu0 0.0
  %844 = vmatprep.mubr.f32.mxu0 0.0
  %845 = vmatmul.mubr.f32.gmra.mxu0 %v778
  %v846 = vpop.f32.mrf.mxu0
  %v847 = vadd.f32 0.0, %v846
  %v848 = vpop.f32.mrf.mxu0
  %849 = vdwg.mxu0
  %852 = vrot.lane.b32.xlu0 %v771, 16
  %v853 = vpop.permute.xlu0 %852
  %854 = vrot.lane.b32.xlu0 %v847, 16
  %v855 = vpop.permute.xlu0 %854
  %v858 = vsel %vm173, %v437, %v853
  %v859 = vsel %vm173, %v513, %v855
  %v860 = vld [vmem:[%s4] sm:$0xff]
  %v861 = vld [vmem:[%s4 + $0x8] sm:$0xff]
  %v862 = vld [vmem:[%s4 + $0x10] sm:$0xff]
  %v863 = vld [vmem:[%s4 + $0x18] sm:$0xff]
  %v864 = vld [vmem:[%s5] sm:$0x1]
  %v866 = vlaneseq
  %v867 = vshrl.u32 %v866, 7
  %v868 = vsub.s32 0, %v867
  %v869 = vrot.slane %v864, %v868
  %v872 = vsel %vm61, %v858, 0
  %v875 = vsel %vm61, %v859, 0
  %877 = vmatprep.subr.mxu0 0.0
  %878 = vmatpush1.msra.mxu0 0.0
  %879 = vmatprep.subr.mxu0 0.0
  %880 = vmatpush1.msra.mxu0 0.0
  %881 = vmatprep.subr.mxu0 0.0
  %882 = vmatpush1.msra.mxu0 0.0
  %883 = vmatprep.subr.mxu0 0.0
  %884 = vmatpush1.msra.mxu0 0.0
  %885 = vmatprep.subr.mxu0 0.0
  %886 = vmatpush1.msra.mxu0 0.0
  %887 = vmatprep.subr.mxu0 0.0
  %888 = vmatpush1.msra.mxu0 0.0
  %889 = vmatprep.subr.mxu0 0.0
  %890 = vmatpush1.msra.mxu0 0.0
  %891 = vmatprep.subr.mxu0 0.0
  %892 = vmatpush1.msra.mxu0 0.0
  %893 = vmatprep.subr.mxu0 0.0
  %894 = vmatpush1.msra.mxu0 0.0
  %895 = vmatprep.subr.mxu0 0.0
  %896 = vmatpush1.msra.mxu0 0.0
  %897 = vmatprep.subr.mxu0 0.0
  %898 = vmatpush1.msra.mxu0 0.0
  %899 = vmatprep.subr.mxu0 0.0
  %900 = vmatpush1.msra.mxu0 0.0
  %901 = vmatprep.subr.mxu0 0.0
  %902 = vmatpush1.msra.mxu0 %v863
  %903 = vmatprep.subr.mxu0 0.0
  %904 = vmatpush1.msra.mxu0 %v862
  %905 = vmatprep.subr.mxu0 0.0
  %906 = vmatpush1.msra.mxu0 %v861
  %907 = vmatprep.subr.mxu0 0.0
  %908 = vmatpush1.msra.mxu0 %v860
  %909 = vmatprep.subr.mxu0 0.0
  %910 = vmatpush2.msra.mxu0 0.0
  %911 = vmatprep.subr.mxu0 0.0
  %912 = vmatpush2.msra.mxu0 0.0
  %913 = vmatprep.subr.mxu0 0.0
  %914 = vmatpush2.msra.mxu0 0.0
  %915 = vmatprep.subr.mxu0 0.0
  %916 = vmatpush2.msra.mxu0 0.0
  %917 = vmatprep.subr.mxu0 0.0
  %918 = vmatpush2.msra.mxu0 0.0
  %919 = vmatprep.subr.mxu0 0.0
  %920 = vmatpush2.msra.mxu0 0.0
  %921 = vmatprep.subr.mxu0 0.0
  %922 = vmatpush2.msra.mxu0 0.0
  %923 = vmatprep.subr.mxu0 0.0
  %924 = vmatpush2.msra.mxu0 0.0
  %925 = vmatprep.subr.mxu0 0.0
  %926 = vmatpush2.msra.mxu0 0.0
  %927 = vmatprep.subr.mxu0 0.0
  %928 = vmatpush2.msra.mxu0 0.0
  %929 = vmatprep.subr.mxu0 0.0
  %930 = vmatpush2.msra.mxu0 0.0
  %931 = vmatprep.subr.mxu0 0.0
  %932 = vmatpush2.msra.mxu0 0.0
  %933 = vmatprep.subr.mxu0 0.0
  %934 = vmatpush2.msra.mxu0 0.0
  %935 = vmatprep.subr.mxu0 0.0
  %936 = vmatpush2.msra.mxu0 0.0
  %937 = vmatprep.subr.mxu0 0.0
  %938 = vmatpush2.msra.mxu0 0.0
  %939 = vmatprep.subr.mxu0 0.0
  %940 = vmatpush2.msra.mxu0 0.0
  %941 = vmatprep.mubr.f32.mxu0 0.0
  %942 = vmatmul.mubr.f32.gmra.mxu0 %v872
  %v943 = vpop.f32.mrf.mxu0
  %v944 = vadd.f32 %v869, %v943
  %v945 = vpop.f32.mrf.mxu0
  %946 = vmatprep.mubr.f32.mxu0 0.0
  %947 = vmatmul.mubr.f32.gmra.mxu0 %v875
  %v948 = vpop.f32.mrf.mxu0
  %v949 = vadd.f32 %v869, %v948
  %v950 = vpop.f32.mrf.mxu0
  %951 = vdwg.mxu0
  %v952 = vadd.f32 %v47, %v944
  %v953 = vadd.f32 %v48, %v949
  %v954 = vld [vmem:[%s6] sm:$0x1]
  %v955 = vld [vmem:[%s7] sm:$0x1]
  %v956 = vsel %vm61, %v952, 0.0
  %957 = vadd.xlane.f32.xlu0 %v956
  %v958 = vpop.xlane.xlu0 %957
  %v959 = vsel %vm61, %v953, 0.0
  %960 = vadd.xlane.f32.xlu0 %v959
  %v961 = vpop.xlane.xlu0 %960
  %v962 = vrcp.pop 32.0
  %v963 = vmul.f32 %v958, %v962
  %v964 = vmul.f32 %v961, %v962
  %v965 = vsub.f32 %v952, %v963
  %v966 = vsub.f32 %v953, %v964
  %v967 = vmul.f32 %v965, %v965
  %v968 = vmul.f32 %v966, %v966
  %v969 = vsel %vm61, %v967, 0.0
  %970 = vadd.xlane.f32.xlu0 %v969
  %v971 = vpop.xlane.xlu0 %970
  %v972 = vsel %vm61, %v968, 0.0
  %973 = vadd.xlane.f32.xlu0 %v972
  %v974 = vpop.xlane.xlu0 %973
  %v975 = vmul.f32 %v971, %v962
  %v976 = vmul.f32 %v974, %v962
  %v977 = vadd.f32 %v975, 1e-05
  %v978 = vadd.f32 %v976, 1e-05
  %v979 = vrsqrt.pop %v977
  %v980 = vrsqrt.pop %v978
  %v981 = vmul.f32 %v965, %v979
  %v982 = vmul.f32 %v966, %v980
  %v984 = vlaneseq
  %v985 = vshrl.u32 %v984, 7
  %v986 = vsub.s32 0, %v985
  %v987 = vrot.slane %v954, %v986
  %v989 = vmul.f32 %v981, %v987
  %v990 = vmul.f32 %v982, %v987
  %v992 = vlaneseq
  %v993 = vshrl.u32 %v992, 7
  %v994 = vsub.s32 0, %v993
  %v995 = vrot.slane %v955, %v994
  %v997 = vadd.f32 %v989, %v995
  %v998 = vadd.f32 %v990, %v995
  %v999 = vlaneseq
  %v1000 = vshrl.u32 %v999, 7
  %v1001 = vsub.s32 0, %v1000
  %v1002 = vrot.slane %v49, %v1001
  %1004 = vbcast.lane.b32.xlu0 %v1002, 256
  %v1005 = vpop.permute.xlu0 %1004
  %v1006 = vlaneseq
  %v1007 = vshrl.u32 %v1006, 7
  %v1008 = vsub.s32 1, %v1007
  %v1009 = vrot.slane %v49, %v1008
  %1011 = vbcast.lane.b32.xlu0 %v1009, 256
  %v1012 = vpop.permute.xlu0 %1011
  %v1013 = vmul.f32 %v997, %v1005
  %v1014 = vmul.f32 %v998, %v1012
  %v1017 = vrot.slane %v1013, 7
  %v1018 = vrot.slane %v1014, 7
  %vm1021 = vcmask 1040384
  %v1022 = vsel %vm1021, 0.0, %v1017
  %v1023 = vsel %vm1021, 0.0, %v1018
  %v1024 = vrot.slane %v1013, 1
  %v1025 = vrot.slane %v1014, 1
  %vm1028 = vcmask 1046528
  %v1029 = vsel %vm1028, %v1024, 0.0
  %v1030 = vsel %vm1028, %v1025, 0.0
  %1031 = vrot.lane.b32.xlu0 %v1013, 32
  %v1032 = vpop.permute.xlu0 %1031
  %1033 = vrot.lane.b32.xlu0 %v1014, 32
  %v1034 = vpop.permute.xlu0 %1033
  %1039 = vrot.lane.b32.xlu0 %v1029, 64
  %v1040 = vpop.permute.xlu0 %1039
  %1041 = vrot.lane.b32.xlu0 %v1030, 64
  %v1042 = vpop.permute.xlu0 %1041
  %v1045 = vsel %vm61, %v1022, %v1032
  %v1046 = vsel %vm61, %v1023, %v1034
  %vm1047 = vcmask 523264
  %v1048 = vsel %vm1047, %v1045, %v1040
  %v1049 = vsel %vm1047, %v1046, %v1042
  %v1050 = vld [vmem:[%s8] sm:$0xff]
  %v1051 = vld [vmem:[%s8 + $0x8] sm:$0xff]
  %v1052 = vld [vmem:[%s8 + $0x10] sm:$0xff]
  %v1053 = vld [vmem:[%s8 + $0x18] sm:$0xff]
  %v1054 = vld [vmem:[%s8 + $0x20] sm:$0xff]
  %v1055 = vld [vmem:[%s8 + $0x28] sm:$0xff]
  %v1056 = vld [vmem:[%s8 + $0x30] sm:$0xff]
  %v1057 = vld [vmem:[%s8 + $0x38] sm:$0xff]
  %v1058 = vld [vmem:[%s8 + $0x40] sm:$0xff]
  %v1059 = vld [vmem:[%s8 + $0x48] sm:$0xff]
  %v1060 = vld [vmem:[%s8 + $0x50] sm:$0xff]
  %v1061 = vld [vmem:[%s8 + $0x58] sm:$0xff]
  %v1062 = vld [vmem:[%s9] sm:$0x1]
  %v1064 = vlaneseq
  %v1065 = vshrl.u32 %v1064, 7
  %v1066 = vsub.s32 0, %v1065
  %v1067 = vrot.slane %v1062, %v1066
  %vm1069 = vcmask 785408
  %v1071 = vsel %vm1069, %v1048, 0
  %v1074 = vsel %vm1069, %v1049, 0
  %1076 = vmatprep.subr.mxu0 0.0
  %1077 = vmatpush1.msra.mxu0 0.0
  %1078 = vmatprep.subr.mxu0 0.0
  %1079 = vmatpush1.msra.mxu0 0.0
  %1080 = vmatprep.subr.mxu0 0.0
  %1081 = vmatpush1.msra.mxu0 0.0
  %1082 = vmatprep.subr.mxu0 0.0
  %1083 = vmatpush1.msra.mxu0 0.0
  %1084 = vmatprep.subr.mxu0 0.0
  %1085 = vmatpush1.msra.mxu0 %v1061
  %1086 = vmatprep.subr.mxu0 0.0
  %1087 = vmatpush1.msra.mxu0 %v1060
  %1088 = vmatprep.subr.mxu0 0.0
  %1089 = vmatpush1.msra.mxu0 %v1059
  %1090 = vmatprep.subr.mxu0 0.0
  %1091 = vmatpush1.msra.mxu0 %v1058
  %1092 = vmatprep.subr.mxu0 0.0
  %1093 = vmatpush1.msra.mxu0 %v1057
  %1094 = vmatprep.subr.mxu0 0.0
  %1095 = vmatpush1.msra.mxu0 %v1056
  %1096 = vmatprep.subr.mxu0 0.0
  %1097 = vmatpush1.msra.mxu0 %v1055
  %1098 = vmatprep.subr.mxu0 0.0
  %1099 = vmatpush1.msra.mxu0 %v1054
  %1100 = vmatprep.subr.mxu0 0.0
  %1101 = vmatpush1.msra.mxu0 %v1053
  %1102 = vmatprep.subr.mxu0 0.0
  %1103 = vmatpush1.msra.mxu0 %v1052
  %1104 = vmatprep.subr.mxu0 0.0
  %1105 = vmatpush1.msra.mxu0 %v1051
  %1106 = vmatprep.subr.mxu0 0.0
  %1107 = vmatpush1.msra.mxu0 %v1050
  %1108 = vmatprep.subr.mxu0 0.0
  %1109 = vmatpush2.msra.mxu0 0.0
  %1110 = vmatprep.subr.mxu0 0.0
  %1111 = vmatpush2.msra.mxu0 0.0
  %1112 = vmatprep.subr.mxu0 0.0
  %1113 = vmatpush2.msra.mxu0 0.0
  %1114 = vmatprep.subr.mxu0 0.0
  %1115 = vmatpush2.msra.mxu0 0.0
  %1116 = vmatprep.subr.mxu0 0.0
  %1117 = vmatpush2.msra.mxu0 0.0
  %1118 = vmatprep.subr.mxu0 0.0
  %1119 = vmatpush2.msra.mxu0 0.0
  %1120 = vmatprep.subr.mxu0 0.0
  %1121 = vmatpush2.msra.mxu0 0.0
  %1122 = vmatprep.subr.mxu0 0.0
  %1123 = vmatpush2.msra.mxu0 0.0
  %1124 = vmatprep.subr.mxu0 0.0
  %1125 = vmatpush2.msra.mxu0 0.0
  %1126 = vmatprep.subr.mxu0 0.0
  %1127 = vmatpush2.msra.mxu0 0.0
  %1128 = vmatprep.subr.mxu0 0.0
  %1129 = vmatpush2.msra.mxu0 0.0
  %1130 = vmatprep.subr.mxu0 0.0
  %1131 = vmatpush2.msra.mxu0 0.0
  %1132 = vmatprep.subr.mxu0 0.0
  %1133 = vmatpush2.msra.mxu0 0.0
  %1134 = vmatprep.subr.mxu0 0.0
  %1135 = vmatpush2.msra.mxu0 0.0
  %1136 = vmatprep.subr.mxu0 0.0
  %1137 = vmatpush2.msra.mxu0 0.0
  %1138 = vmatprep.subr.mxu0 0.0
  %1139 = vmatpush2.msra.mxu0 0.0
  %1140 = vmatprep.mubr.f32.mxu0 0.0
  %1141 = vmatmul.mubr.f32.gmra.mxu0 %v1071
  %v1142 = vpop.f32.mrf.mxu0
  %v1143 = vadd.f32 %v1067, %v1142
  %v1144 = vpop.f32.mrf.mxu0
  %1145 = vmatprep.mubr.f32.mxu0 0.0
  %1146 = vmatmul.mubr.f32.gmra.mxu0 %v1074
  %v1147 = vpop.f32.mrf.mxu0
  %v1148 = vadd.f32 %v1067, %v1147
  %v1149 = vpop.f32.mrf.mxu0
  %1150 = vdwg.mxu0
  %v1151 = vmax.f32 %v1143, 0.0
  %v1152 = vmax.f32 %v1148, 0.0
  %v1155 = vrot.slane %v1151, 7
  %v1156 = vrot.slane %v1152, 7
  %v1159 = vsel %vm1021, 0.0, %v1155
  %v1160 = vsel %vm1021, 0.0, %v1156
  %v1161 = vrot.slane %v1151, 1
  %v1162 = vrot.slane %v1152, 1
  %v1165 = vsel %vm1028, %v1161, 0.0
  %v1166 = vsel %vm1028, %v1162, 0.0
  %1167 = vrot.lane.b32.xlu0 %v1151, 64
  %v1168 = vpop.permute.xlu0 %1167
  %1169 = vrot.lane.b32.xlu0 %v1152, 64
  %v1170 = vpop.permute.xlu0 %1169
  %v1173 = vsel %vm1047, %v1159, %v1168
  %v1174 = vsel %vm1047, %v1160, %v1170
  %v1175 = vld [vmem:[%s10] sm:$0xff]
  %v1176 = vld [vmem:[%s10 + $0x8] sm:$0xff]
  %v1177 = vld [vmem:[%s10 + $0x10] sm:$0xff]
  %v1178 = vld [vmem:[%s10 + $0x18] sm:$0xff]
  %v1179 = vld [vmem:[%s10 + $0x20] sm:$0xff]
  %v1180 = vld [vmem:[%s10 + $0x28] sm:$0xff]
  %v1181 = vld [vmem:[%s10 + $0x30] sm:$0xff]
  %v1182 = vld [vmem:[%s10 + $0x38] sm:$0xff]
  %v1183 = vld [vmem:[%s10 + $0x40] sm:$0xff]
  %v1184 = vld [vmem:[%s10 + $0x48] sm:$0xff]
  %v1185 = vld [vmem:[%s10 + $0x50] sm:$0xff]
  %v1186 = vld [vmem:[%s10 + $0x58] sm:$0xff]
  %v1187 = vld [vmem:[%s10 + $0x60] sm:$0xff]
  %v1188 = vld [vmem:[%s10 + $0x68] sm:$0xff]
  %v1189 = vld [vmem:[%s10 + $0x70] sm:$0xff]
  %v1190 = vld [vmem:[%s10 + $0x78] sm:$0xff]
  %v1191 = vld [vmem:[%s10 + $0x80] sm:$0xff]
  %v1192 = vld [vmem:[%s10 + $0x88] sm:$0xff]
  %v1193 = vld [vmem:[%s10 + $0x90] sm:$0xff]
  %v1194 = vld [vmem:[%s10 + $0x98] sm:$0xff]
  %v1195 = vld [vmem:[%s10 + $0xa0] sm:$0xff]
  %v1196 = vld [vmem:[%s10 + $0xa8] sm:$0xff]
  %v1197 = vld [vmem:[%s10 + $0xb0] sm:$0xff]
  %v1198 = vld [vmem:[%s10 + $0xb8] sm:$0xff]
  %v1199 = vld [vmem:[%s11] sm:$0x1]
  %v1201 = vlaneseq
  %v1202 = vshrl.u32 %v1201, 7
  %v1203 = vsub.s32 0, %v1202
  %v1204 = vrot.slane %v1199, %v1203
  %v1207 = vsel %vm1047, %v1165, 0
  %v1210 = vsel %vm1047, %v1166, 0
  %1212 = vmatprep.subr.mxu0 0.0
  %1213 = vmatpush1.msra.mxu0 %v1190
  %1214 = vmatprep.subr.mxu0 0.0
  %1215 = vmatpush1.msra.mxu0 %v1189
  %1216 = vmatprep.subr.mxu0 0.0
  %1217 = vmatpush1.msra.mxu0 %v1188
  %1218 = vmatprep.subr.mxu0 0.0
  %1219 = vmatpush1.msra.mxu0 %v1187
  %1220 = vmatprep.subr.mxu0 0.0
  %1221 = vmatpush1.msra.mxu0 %v1186
  %1222 = vmatprep.subr.mxu0 0.0
  %1223 = vmatpush1.msra.mxu0 %v1185
  %1224 = vmatprep.subr.mxu0 0.0
  %1225 = vmatpush1.msra.mxu0 %v1184
  %1226 = vmatprep.subr.mxu0 0.0
  %1227 = vmatpush1.msra.mxu0 %v1183
  %1228 = vmatprep.subr.mxu0 0.0
  %1229 = vmatpush1.msra.mxu0 %v1182
  %1230 = vmatprep.subr.mxu0 0.0
  %1231 = vmatpush1.msra.mxu0 %v1181
  %1232 = vmatprep.subr.mxu0 0.0
  %1233 = vmatpush1.msra.mxu0 %v1180
  %1234 = vmatprep.subr.mxu0 0.0
  %1235 = vmatpush1.msra.mxu0 %v1179
  %1236 = vmatprep.subr.mxu0 0.0
  %1237 = vmatpush1.msra.mxu0 %v1178
  %1238 = vmatprep.subr.mxu0 0.0
  %1239 = vmatpush1.msra.mxu0 %v1177
  %1240 = vmatprep.subr.mxu0 0.0
  %1241 = vmatpush1.msra.mxu0 %v1176
  %1242 = vmatprep.subr.mxu0 0.0
  %1243 = vmatpush1.msra.mxu0 %v1175
  %1244 = vmatprep.subr.mxu0 0.0
  %1245 = vmatpush2.msra.mxu0 0.0
  %1246 = vmatprep.subr.mxu0 0.0
  %1247 = vmatpush2.msra.mxu0 0.0
  %1248 = vmatprep.subr.mxu0 0.0
  %1249 = vmatpush2.msra.mxu0 0.0
  %1250 = vmatprep.subr.mxu0 0.0
  %1251 = vmatpush2.msra.mxu0 0.0
  %1252 = vmatprep.subr.mxu0 0.0
  %1253 = vmatpush2.msra.mxu0 0.0
  %1254 = vmatprep.subr.mxu0 0.0
  %1255 = vmatpush2.msra.mxu0 0.0
  %1256 = vmatprep.subr.mxu0 0.0
  %1257 = vmatpush2.msra.mxu0 0.0
  %1258 = vmatprep.subr.mxu0 0.0
  %1259 = vmatpush2.msra.mxu0 0.0
  %1260 = vmatprep.subr.mxu0 0.0
  %1261 = vmatpush2.msra.mxu0 %v1198
  %1262 = vmatprep.subr.mxu0 0.0
  %1263 = vmatpush2.msra.mxu0 %v1197
  %1264 = vmatprep.subr.mxu0 0.0
  %1265 = vmatpush2.msra.mxu0 %v1196
  %1266 = vmatprep.subr.mxu0 0.0
  %1267 = vmatpush2.msra.mxu0 %v1195
  %1268 = vmatprep.subr.mxu0 0.0
  %1269 = vmatpush2.msra.mxu0 %v1194
  %1270 = vmatprep.subr.mxu0 0.0
  %1271 = vmatpush2.msra.mxu0 %v1193
  %1272 = vmatprep.subr.mxu0 0.0
  %1273 = vmatpush2.msra.mxu0 %v1192
  %1274 = vmatprep.subr.mxu0 0.0
  %1275 = vmatpush2.msra.mxu0 %v1191
  %1276 = vmatprep.mubr.f32.mxu0 %v1207
  %1277 = vmatmul.mubr.f32.gmra.mxu0 %v1173
  %v1278 = vpop.f32.mrf.mxu0
  %v1279 = vadd.f32 %v1204, %v1278
  %v1280 = vpop.f32.mrf.mxu0
  %1281 = vmatprep.mubr.f32.mxu0 %v1210
  %1282 = vmatmul.mubr.f32.gmra.mxu0 %v1174
  %v1283 = vpop.f32.mrf.mxu0
  %v1284 = vadd.f32 %v1204, %v1283
  %v1285 = vpop.f32.mrf.mxu0
  %1286 = vdwg.mxu0
  %v1287 = vadd.f32 %v1013, %v1279
  %v1288 = vadd.f32 %v1014, %v1284
  %v1289 = vld [vmem:[%s12] sm:$0x1]
  %v1290 = vld [vmem:[%s13] sm:$0x1]
  %v1291 = vsel %vm61, %v1287, 0.0
  %1292 = vadd.xlane.f32.xlu0 %v1291
  %v1293 = vpop.xlane.xlu0 %1292
  %v1294 = vsel %vm61, %v1288, 0.0
  %1295 = vadd.xlane.f32.xlu0 %v1294
  %v1296 = vpop.xlane.xlu0 %1295
  %v1297 = vmul.f32 %v1293, %v962
  %v1298 = vmul.f32 %v1296, %v962
  %v1299 = vsub.f32 %v1287, %v1297
  %v1300 = vsub.f32 %v1288, %v1298
  %v1301 = vmul.f32 %v1299, %v1299
  %v1302 = vmul.f32 %v1300, %v1300
  %v1303 = vsel %vm61, %v1301, 0.0
  %1304 = vadd.xlane.f32.xlu0 %v1303
  %v1305 = vpop.xlane.xlu0 %1304
  %v1306 = vsel %vm61, %v1302, 0.0
  %1307 = vadd.xlane.f32.xlu0 %v1306
  %v1308 = vpop.xlane.xlu0 %1307
  %v1309 = vmul.f32 %v1305, %v962
  %v1310 = vmul.f32 %v1308, %v962
  %v1311 = vadd.f32 %v1309, 1e-05
  %v1312 = vadd.f32 %v1310, 1e-05
  %v1313 = vrsqrt.pop %v1311
  %v1314 = vrsqrt.pop %v1312
  %v1315 = vmul.f32 %v1299, %v1313
  %v1316 = vmul.f32 %v1300, %v1314
  %v1318 = vlaneseq
  %v1319 = vshrl.u32 %v1318, 7
  %v1320 = vsub.s32 0, %v1319
  %v1321 = vrot.slane %v1289, %v1320
  %v1323 = vmul.f32 %v1315, %v1321
  %v1324 = vmul.f32 %v1316, %v1321
  %v1326 = vlaneseq
  %v1327 = vshrl.u32 %v1326, 7
  %v1328 = vsub.s32 0, %v1327
  %v1329 = vrot.slane %v1290, %v1328
  %v1331 = vadd.f32 %v1323, %v1329
  %v1332 = vadd.f32 %v1324, %v1329
  %v1333 = vmul.f32 %v1331, %v1005
  %v1334 = vmul.f32 %v1332, %v1012
  %1335 = vst.msk [vmem:[%s14] sm:$0xff] %vm61, %v1333
  %1336 = vst.msk [vmem:[%s14 + $0x8] sm:$0xff] %vm61, %v1334
  // Predicated region
  $region58: #{fastspeech_forward.6} parent=0 // pred_check
    _
  $region59: #{fastspeech_forward.6} parent=0 // pred_check_branch
    %1338 = sbr.rel (0) target = $region61
  $region60: #{fastspeech_forward.6} parent=0 // pred_region
    _
  $region61: #{fastspeech_forward.6} parent=0 // pred_fallthru
    _
  // Predicated region
  $region62: #{fastspeech_forward.6} parent=0 // pred_check
    _
  $region63: #{fastspeech_forward.6} parent=0 // pred_check_branch
    %1340 = sbr.rel (0) target = $region65
  $region64: #{fastspeech_forward.6} parent=0 // pred_region
    _
  $region65: #{fastspeech_forward.6} parent=0 // pred_fallthru
    _

// kernel: fastspeech_forward.9
$region0: #{fastspeech_forward.9}
  #allocation0 [shape = 'u32[]', space=smem, size = 0x4, offset = 0x4, fixed_abs, tag = 'smem constant byte address 0x4 - core index']
  #allocation1 [shape = 'u32[144,128]{1,0:T(1,128)}', space=vmem, size = 0x12000, scoped, tag = 'internal scratch']
  %s0 = inlined_call_operand.vmem [shape: f32[2,24,32], index: 0, kind: input, shape index: {}]
  %s1 = inlined_call_operand.vmem [shape: f32[2,24], index: 1, kind: input, shape index: {}]
  %s2 = inlined_call_operand.vmem [shape: f32[32,96], index: 2, kind: input, shape index: {}]
  %s3 = inlined_call_operand.vmem [shape: f32[1,96], index: 3, kind: input, shape index: {}]
  %s4 = inlined_call_operand.vmem [shape: f32[32,32], index: 4, kind: input, shape index: {}]
  %s5 = inlined_call_operand.vmem [shape: f32[1,32], index: 5, kind: input, shape index: {}]
  %s6 = inlined_call_operand.vmem [shape: f32[1,32], index: 6, kind: input, shape index: {}]
  %s7 = inlined_call_operand.vmem [shape: f32[1,32], index: 7, kind: input, shape index: {}]
  %s8 = inlined_call_operand.vmem [shape: f32[96,64], index: 8, kind: input, shape index: {}]
  %s9 = inlined_call_operand.vmem [shape: f32[1,64], index: 9, kind: input, shape index: {}]
  %s10 = inlined_call_operand.vmem [shape: f32[192,32], index: 10, kind: input, shape index: {}]
  %s11 = inlined_call_operand.vmem [shape: f32[1,32], index: 11, kind: input, shape index: {}]
  %s12 = inlined_call_operand.vmem [shape: f32[1,32], index: 12, kind: input, shape index: {}]
  %s13 = inlined_call_operand.vmem [shape: f32[1,32], index: 13, kind: input, shape index: {}]
  %s14 = inlined_call_operand.vmem [shape: f32[2,24,32], index: 14, kind: output, shape index: {}]
  %s15 = sld [smem:[#allocation0]]
  $region66: #{fastspeech_forward.9} parent=0
    _
  %s17 = ssub.s32 1, %s15
  %s18 = scalar_select 0, %s17, %s15
  // Predicated region
  $region2: #{fastspeech_forward.9} parent=0 // pred_check
    _
  $region3: #{fastspeech_forward.9} parent=0 // pred_check_branch
    %20 = sbr.rel (0) target = $region5
  $region4: #{fastspeech_forward.9} parent=0 // pred_region
    _
  $region5: #{fastspeech_forward.9} parent=0 // pred_fallthru
    _
  // Predicated region
  $region6: #{fastspeech_forward.9} parent=0 // pred_check
    _
  $region7: #{fastspeech_forward.9} parent=0 // pred_check_branch
    %22 = sbr.rel (0) target = $region9
  $region8: #{fastspeech_forward.9} parent=0 // pred_region
    _
  $region9: #{fastspeech_forward.9} parent=0 // pred_fallthru
    _
  // Predicated region
  $region10: #{fastspeech_forward.9} parent=0 // pred_check
    _
  $region11: #{fastspeech_forward.9} parent=0 // pred_check_branch
    %24 = sbr.rel (0) target = $region13
  $region12: #{fastspeech_forward.9} parent=0 // pred_region
    _
  $region13: #{fastspeech_forward.9} parent=0 // pred_fallthru
    _
  // Predicated region
  $region14: #{fastspeech_forward.9} parent=0 // pred_check
    _
  $region15: #{fastspeech_forward.9} parent=0 // pred_check_branch
    %26 = sbr.rel (0) target = $region17
  $region16: #{fastspeech_forward.9} parent=0 // pred_region
    _
  $region17: #{fastspeech_forward.9} parent=0 // pred_fallthru
    _
  // Predicated region
  $region18: #{fastspeech_forward.9} parent=0 // pred_check
    _
  $region19: #{fastspeech_forward.9} parent=0 // pred_check_branch
    %28 = sbr.rel (0) target = $region21
  $region20: #{fastspeech_forward.9} parent=0 // pred_region
    _
  $region21: #{fastspeech_forward.9} parent=0 // pred_fallthru
    _
  // Predicated region
  $region22: #{fastspeech_forward.9} parent=0 // pred_check
    _
  $region23: #{fastspeech_forward.9} parent=0 // pred_check_branch
    %30 = sbr.rel (0) target = $region25
  $region24: #{fastspeech_forward.9} parent=0 // pred_region
    _
  $region25: #{fastspeech_forward.9} parent=0 // pred_fallthru
    _
  // Predicated region
  $region26: #{fastspeech_forward.9} parent=0 // pred_check
    _
  $region27: #{fastspeech_forward.9} parent=0 // pred_check_branch
    %32 = sbr.rel (0) target = $region29
  $region28: #{fastspeech_forward.9} parent=0 // pred_region
    _
  $region29: #{fastspeech_forward.9} parent=0 // pred_fallthru
    _
  // Predicated region
  $region30: #{fastspeech_forward.9} parent=0 // pred_check
    _
  $region31: #{fastspeech_forward.9} parent=0 // pred_check_branch
    %34 = sbr.rel (0) target = $region33
  $region32: #{fastspeech_forward.9} parent=0 // pred_region
    _
  $region33: #{fastspeech_forward.9} parent=0 // pred_fallthru
    _
  // Predicated region
  $region34: #{fastspeech_forward.9} parent=0 // pred_check
    _
  $region35: #{fastspeech_forward.9} parent=0 // pred_check_branch
    %36 = sbr.rel (0) target = $region37
  $region36: #{fastspeech_forward.9} parent=0 // pred_region
    _
  $region37: #{fastspeech_forward.9} parent=0 // pred_fallthru
    _
  // Predicated region
  $region38: #{fastspeech_forward.9} parent=0 // pred_check
    _
  $region39: #{fastspeech_forward.9} parent=0 // pred_check_branch
    %38 = sbr.rel (0) target = $region41
  $region40: #{fastspeech_forward.9} parent=0 // pred_region
    _
  $region41: #{fastspeech_forward.9} parent=0 // pred_fallthru
    _
  // Predicated region
  $region42: #{fastspeech_forward.9} parent=0 // pred_check
    _
  $region43: #{fastspeech_forward.9} parent=0 // pred_check_branch
    %40 = sbr.rel (0) target = $region45
  $region44: #{fastspeech_forward.9} parent=0 // pred_region
    _
  $region45: #{fastspeech_forward.9} parent=0 // pred_fallthru
    _
  // Predicated region
  $region46: #{fastspeech_forward.9} parent=0 // pred_check
    _
  $region47: #{fastspeech_forward.9} parent=0 // pred_check_branch
    %42 = sbr.rel (0) target = $region49
  $region48: #{fastspeech_forward.9} parent=0 // pred_region
    _
  $region49: #{fastspeech_forward.9} parent=0 // pred_fallthru
    _
  // Predicated region
  $region50: #{fastspeech_forward.9} parent=0 // pred_check
    _
  $region51: #{fastspeech_forward.9} parent=0 // pred_check_branch
    %44 = sbr.rel (0) target = $region53
  $region52: #{fastspeech_forward.9} parent=0 // pred_region
    _
  $region53: #{fastspeech_forward.9} parent=0 // pred_fallthru
    _
  // Predicated region
  $region54: #{fastspeech_forward.9} parent=0 // pred_check
    _
  $region55: #{fastspeech_forward.9} parent=0 // pred_check_branch
    %46 = sbr.rel (0) target = $region57
  $region56: #{fastspeech_forward.9} parent=0 // pred_region
    _
  $region57: #{fastspeech_forward.9} parent=0 // pred_fallthru
    _
  %v47 = vld [vmem:[%s0] sm:$0xff]
  %v48 = vld [vmem:[%s0 + $0x8] sm:$0xff]
  %v49 = vld [vmem:[%s0 + $0x10] sm:$0xff]
  %v50 = vld [vmem:[%s0 + $0x18] sm:$0xff]
  %v51 = vld [vmem:[%s0 + $0x20] sm:$0xff]
  %v52 = vld [vmem:[%s0 + $0x28] sm:$0xff]
  %v53 = vld [vmem:[%s1] sm:$0x3]
  %v54 = vld [vmem:[%s2] sm:$0xff]
  %v55 = vld [vmem:[%s2 + $0x8] sm:$0xff]
  %v56 = vld [vmem:[%s2 + $0x10] sm:$0xff]
  %v57 = vld [vmem:[%s2 + $0x18] sm:$0xff]
  %v58 = vld [vmem:[%s3] sm:$0x1]
  %v60 = vlaneseq
  %v61 = vshrl.u32 %v60, 7
  %v62 = vsub.s32 0, %v61
  %v63 = vrot.slane %v58, %v62
  %vm65 = vcmask 261120
  %v67 = vsel %vm65, %v47, 0
  %v70 = vsel %vm65, %v48, 0
  %v73 = vsel %vm65, %v49, 0
  %v76 = vsel %vm65, %v50, 0
  %v79 = vsel %vm65, %v51, 0
  %v82 = vsel %vm65, %v52, 0
  %84 = vmatprep.subr.mxu0 0.0
  %85 = vmatpush1.msra.mxu0 0.0
  %86 = vmatprep.subr.mxu0 0.0
  %87 = vmatpush1.msra.mxu0 0.0
  %88 = vmatprep.subr.mxu0 0.0
  %89 = vmatpush1.msra.mxu0 0.0
  %90 = vmatprep.subr.mxu0 0.0
  %91 = vmatpush1.msra.mxu0 0.0
  %92 = vmatprep.subr.mxu0 0.0
  %93 = vmatpush1.msra.mxu0 0.0
  %94 = vmatprep.subr.mxu0 0.0
  %95 = vmatpush1.msra.mxu0 0.0
  %96 = vmatprep.subr.mxu0 0.0
  %97 = vmatpush1.msra.mxu0 0.0
  %98 = vmatprep.subr.mxu0 0.0
  %99 = vmatpush1.msra.mxu0 0.0
  %100 = vmatprep.subr.mxu0 0.0
  %101 = vmatpush1.msra.mxu0 0.0
  %102 = vmatprep.subr.mxu0 0.0
  %103 = vmatpush1.msra.mxu0 0.0
  %104 = vmatprep.subr.mxu0 0.0
  %105 = vmatpush1.msra.mxu0 0.0
  %106 = vmatprep.subr.mxu0 0.0
  %107 = vmatpush1.msra.mxu0 0.0
  %108 = vmatprep.subr.mxu0 0.0
  %109 = vmatpush1.msra.mxu0 %v57
  %110 = vmatprep.subr.mxu0 0.0
  %111 = vmatpush1.msra.mxu0 %v56
  %112 = vmatprep.subr.mxu0 0.0
  %113 = vmatpush1.msra.mxu0 %v55
  %114 = vmatprep.subr.mxu0 0.0
  %115 = vmatpush1.msra.mxu0 %v54
  %116 = vmatprep.subr.mxu0 0.0
  %117 = vmatpush2.msra.mxu0 0.0
  %118 = vmatprep.subr.mxu0 0.0
  %119 = vmatpush2.msra.mxu0 0.0
  %120 = vmatprep.subr.mxu0 0.0
  %121 = vmatpush2.msra.mxu0 0.0
  %122 = vmatprep.subr.mxu0 0.0
  %123 = vmatpush2.msra.mxu0 0.0
  %124 = vmatprep.subr.mxu0 0.0
  %125 = vmatpush2.msra.mxu0 0.0
  %126 = vmatprep.subr.mxu0 0.0
  %127 = vmatpush2.msra.mxu0 0.0
  %128 = vmatprep.subr.mxu0 0.0
  %129 = vmatpush2.msra.mxu0 0.0
  %130 = vmatprep.subr.mxu0 0.0
  %131 = vmatpush2.msra.mxu0 0.0
  %132 = vmatprep.subr.mxu0 0.0
  %133 = vmatpush2.msra.mxu0 0.0
  %134 = vmatprep.subr.mxu0 0.0
  %135 = vmatpush2.msra.mxu0 0.0
  %136 = vmatprep.subr.mxu0 0.0
  %137 = vmatpush2.msra.mxu0 0.0
  %138 = vmatprep.subr.mxu0 0.0
  %139 = vmatpush2.msra.mxu0 0.0
  %140 = vmatprep.subr.mxu0 0.0
  %141 = vmatpush2.msra.mxu0 0.0
  %142 = vmatprep.subr.mxu0 0.0
  %143 = vmatpush2.msra.mxu0 0.0
  %144 = vmatprep.subr.mxu0 0.0
  %145 = vmatpush2.msra.mxu0 0.0
  %146 = vmatprep.subr.mxu0 0.0
  %147 = vmatpush2.msra.mxu0 0.0
  %148 = vmatprep.mubr.f32.mxu0 0.0
  %149 = vmatmul.mubr.f32.gmra.mxu0 %v67
  %v150 = vpop.f32.mrf.mxu0
  %v151 = vadd.f32 %v63, %v150
  %v152 = vpop.f32.mrf.mxu0
  %153 = vmatprep.mubr.f32.mxu0 0.0
  %154 = vmatmul.mubr.f32.gmra.mxu0 %v70
  %v155 = vpop.f32.mrf.mxu0
  %v156 = vadd.f32 %v63, %v155
  %v157 = vpop.f32.mrf.mxu0
  %158 = vmatprep.mubr.f32.mxu0 0.0
  %159 = vmatmul.mubr.f32.gmra.mxu0 %v73
  %v160 = vpop.f32.mrf.mxu0
  %v161 = vadd.f32 %v63, %v160
  %v162 = vpop.f32.mrf.mxu0
  %163 = vmatprep.mubr.f32.mxu0 0.0
  %164 = vmatmul.mubr.f32.gmra.mxu0 %v76
  %v165 = vpop.f32.mrf.mxu0
  %v166 = vadd.f32 %v63, %v165
  %v167 = vpop.f32.mrf.mxu0
  %168 = vmatprep.mubr.f32.mxu0 0.0
  %169 = vmatmul.mubr.f32.gmra.mxu0 %v79
  %v170 = vpop.f32.mrf.mxu0
  %v171 = vadd.f32 %v63, %v170
  %v172 = vpop.f32.mrf.mxu0
  %173 = vmatprep.mubr.f32.mxu0 0.0
  %174 = vmatmul.mubr.f32.gmra.mxu0 %v82
  %v175 = vpop.f32.mrf.mxu0
  %v176 = vadd.f32 %v63, %v175
  %v177 = vpop.f32.mrf.mxu0
  %178 = vdwg.mxu0
  %v181 = vunpack.c.l.s4 1966171168
  %v182 = vunpack.c.0.s8 %v181
  %v183 = vlaneseq
  %v184 = vshrl.u32 %v183, 7
  %v185 = vsub.s32 %v182, %v184
  %v186 = vrot.slane %v53, %v185
  %v187 = vcombine.high %v186, %v186
  %v189 = vunpack.c.l.s4 1966171168
  %v190 = vunpack.c.0.s8 %v189
  %v191 = vlaneseq
  %v192 = vshrl.u32 %v191, 7
  %v193 = vsub.s32 %v190, %v192
  %v194 = vrot.slane %v186, %v193
  %v196 = vunpack.c.l.s4 1966171168
  %v197 = vunpack.c.0.s8 %v196
  %v198 = vlaneseq
  %v199 = vshrl.u32 %v198, 7
  %v200 = vsub.s32 %v197, %v199
  %v201 = vrot.slane %v187, %v200
  %vm204 = vcmp.gt.f32.partialorder %v194, 0.5
  %vm205 = vcmp.gt.f32.partialorder %v201, 0.5
  %209 = vrot.lane.b32.xlu0 %v151, 96
  %v210 = vpop.permute.xlu0 %209
  %211 = vrot.lane.b32.xlu0 %v156, 96
  %v212 = vpop.permute.xlu0 %211
  %213 = vrot.lane.b32.xlu0 %v161, 96
  %v214 = vpop.permute.xlu0 %213
  %vm215 = vcmask 130048
  %v216 = vsel %vm215, %v151, 0
  %v218 = vsel %vm215, %v156, 0
  %v220 = vsel %vm215, %v161, 0
  %v222 = vsel %vm215, %v210, 0
  %v224 = vsel %vm215, %v212, 0
  %v226 = vsel %vm215, %v214, 0
  %228 = vmatprep.subr.mxu0 0.0
  %229 = vmatpush1.xpose.msra.mxu0 0.0
  %230 = vmatprep.subr.mxu0 0.0
  %231 = vmatpush1.xpose.msra.mxu0 0.0
  %232 = vmatprep.subr.mxu0 0.0
  %233 = vmatpush1.xpose.msra.mxu0 0.0
  %234 = vmatprep.subr.mxu0 0.0
  %235 = vmatpush1.xpose.msra.mxu0 0.0
  %236 = vmatprep.subr.mxu0 0.0
  %237 = vmatpush1.xpose.msra.mxu0 0.0
  %238 = vmatprep.subr.mxu0 0.0
  %239 = vmatpush1.xpose.msra.mxu0 0.0
  %240 = vmatprep.subr.mxu0 0.0
  %241 = vmatpush1.xpose.msra.mxu0 0.0
  %242 = vmatprep.subr.mxu0 0.0
  %243 = vmatpush1.xpose.msra.mxu0 0.0
  %244 = vmatprep.subr.mxu0 0.0
  %245 = vmatpush1.xpose.msra.mxu0 0.0
  %246 = vmatprep.subr.mxu0 0.0
  %247 = vmatpush1.xpose.msra.mxu0 0.0
  %248 = vmatprep.subr.mxu0 0.0
  %249 = vmatpush1.xpose.msra.mxu0 0.0
  %250 = vmatprep.subr.mxu0 0.0
  %251 = vmatpush1.xpose.msra.mxu0 0.0
  %252 = vmatprep.subr.mxu0 0.0
  %253 = vmatpush1.xpose.msra.mxu0 0.0
  %254 = vmatprep.subr.mxu0 0.0
  %255 = vmatpush1.xpose.msra.mxu0 %v226
  %256 = vmatprep.subr.mxu0 0.0
  %257 = vmatpush1.xpose.msra.mxu0 %v224
  %258 = vmatprep.subr.mxu0 0.0
  %259 = vmatpush1.xpose.msra.mxu0 %v222
  %260 = vmatprep.subr.mxu0 0.0
  %261 = vmatpush2.xpose.msra.mxu0 0.0
  %262 = vmatprep.subr.mxu0 0.0
  %263 = vmatpush2.xpose.msra.mxu0 0.0
  %264 = vmatprep.subr.mxu0 0.0
  %265 = vmatpush2.xpose.msra.mxu0 0.0
  %266 = vmatprep.subr.mxu0 0.0
  %267 = vmatpush2.xpose.msra.mxu0 0.0
  %268 = vmatprep.subr.mxu0 0.0
  %269 = vmatpush2.xpose.msra.mxu0 0.0
  %270 = vmatprep.subr.mxu0 0.0
  %271 = vmatpush2.xpose.msra.mxu0 0.0
  %272 = vmatprep.subr.mxu0 0.0
  %273 = vmatpush2.xpose.msra.mxu0 0.0
  %274 = vmatprep.subr.mxu0 0.0
  %275 = vmatpush2.xpose.msra.mxu0 0.0
  %276 = vmatprep.subr.mxu0 0.0
  %277 = vmatpush2.xpose.msra.mxu0 0.0
  %278 = vmatprep.subr.mxu0 0.0
  %279 = vmatpush2.xpose.msra.mxu0 0.0
  %280 = vmatprep.subr.mxu0 0.0
  %281 = vmatpush2.xpose.msra.mxu0 0.0
  %282 = vmatprep.subr.mxu0 0.0
  %283 = vmatpush2.xpose.msra.mxu0 0.0
  %284 = vmatprep.subr.mxu0 0.0
  %285 = vmatpush2.xpose.msra.mxu0 0.0
  %286 = vmatprep.subr.mxu0 0.0
  %287 = vmatpush2.xpose.msra.mxu0 0.0
  %288 = vmatprep.subr.mxu0 0.0
  %289 = vmatpush2.xpose.msra.mxu0 0.0
  %290 = vmatprep.subr.mxu0 0.0
  %291 = vmatpush2.xpose.msra.mxu0 0.0
  %292 = vmatprep.mubr.f32.mxu0 0.0
  %293 = vmatmul.mubr.f32.gmra.mxu0 %v216
  %v294 = vpop.f32.mrf.mxu0
  %v295 = vadd.f32 0.0, %v294
  %v296 = vpop.f32.mrf.mxu0
  %297 = vmatprep.mubr.f32.mxu0 0.0
  %298 = vmatmul.mubr.f32.gmra.mxu0 %v218
  %v299 = vpop.f32.mrf.mxu0
  %v300 = vadd.f32 0.0, %v299
  %v301 = vpop.f32.mrf.mxu0
  %302 = vmatprep.mubr.f32.mxu0 0.0
  %303 = vmatmul.mubr.f32.gmra.mxu0 %v220
  %v304 = vpop.f32.mrf.mxu0
  %v305 = vadd.f32 0.0, %v304
  %v306 = vpop.f32.mrf.mxu0
  %307 = vdwg.mxu0
  %311 = vrot.lane.b32.xlu0 %v166, 96
  %v312 = vpop.permute.xlu0 %311
  %313 = vrot.lane.b32.xlu0 %v171, 96
  %v314 = vpop.permute.xlu0 %313
  %315 = vrot.lane.b32.xlu0 %v176, 96
  %v316 = vpop.permute.xlu0 %315
  %v317 = vsel %vm215, %v166, 0
  %v319 = vsel %vm215, %v171, 0
  %v321 = vsel %vm215, %v176, 0
  %v323 = vsel %vm215, %v312, 0
  %v325 = vsel %vm215, %v314, 0
  %v327 = vsel %vm215, %v316, 0
  %329 = vmatprep.subr.mxu0 0.0
  %330 = vmatpush1.xpose.msra.mxu0 0.0
  %331 = vmatprep.subr.mxu0 0.0
  %332 = vmatpush1.xpose.msra.mxu0 0.0
  %333 = vmatprep.subr.mxu0 0.0
  %334 = vmatpush1.xpose.msra.mxu0 0.0
  %335 = vmatprep.subr.mxu0 0.0
  %336 = vmatpush1.xpose.msra.mxu0 0.0
  %337 = vmatprep.subr.mxu0 0.0
  %338 = vmatpush1.xpose.msra.mxu0 0.0
  %339 = vmatprep.subr.mxu0 0.0
  %340 = vmatpush1.xpose.msra.mxu0 0.0
  %341 = vmatprep.subr.mxu0 0.0
  %342 = vmatpush1.xpose.msra.mxu0 0.0
  %343 = vmatprep.subr.mxu0 0.0
  %344 = vmatpush1.xpose.msra.mxu0 0.0
  %345 = vmatprep.subr.mxu0 0.0
  %346 = vmatpush1.xpose.msra.mxu0 0.0
  %347 = vmatprep.subr.mxu0 0.0
  %348 = vmatpush1.xpose.msra.mxu0 0.0
  %349 = vmatprep.subr.mxu0 0.0
  %350 = vmatpush1.xpose.msra.mxu0 0.0
  %351 = vmatprep.subr.mxu0 0.0
  %352 = vmatpush1.xpose.msra.mxu0 0.0
  %353 = vmatprep.subr.mxu0 0.0
  %354 = vmatpush1.xpose.msra.mxu0 0.0
  %355 = vmatprep.subr.mxu0 0.0
  %356 = vmatpush1.xpose.msra.mxu0 %v327
  %357 = vmatprep.subr.mxu0 0.0
  %358 = vmatpush1.xpose.msra.mxu0 %v325
  %359 = vmatprep.subr.mxu0 0.0
  %360 = vmatpush1.xpose.msra.mxu0 %v323
  %361 = vmatprep.subr.mxu0 0.0
  %362 = vmatpush2.xpose.msra.mxu0 0.0
  %363 = vmatprep.subr.mxu0 0.0
  %364 = vmatpush2.xpose.msra.mxu0 0.0
  %365 = vmatprep.subr.mxu0 0.0
  %366 = vmatpush2.xpose.msra.mxu0 0.0
  %367 = vmatprep.subr.mxu0 0.0
  %368 = vmatpush2.xpose.msra.mxu0 0.0
  %369 = vmatprep.subr.mxu0 0.0
  %370 = vmatpush2.xpose.msra.mxu0 0.0
  %371 = vmatprep.subr.mxu0 0.0
  %372 = vmatpush2.xpose.msra.mxu0 0.0
  %373 = vmatprep.subr.mxu0 0.0
  %374 = vmatpush2.xpose.msra.mxu0 0.0
  %375 = vmatprep.subr.mxu0 0.0
  %376 = vmatpush2.xpose.msra.mxu0 0.0
  %377 = vmatprep.subr.mxu0 0.0
  %378 = vmatpush2.xpose.msra.mxu0 0.0
  %379 = vmatprep.subr.mxu0 0.0
  %380 = vmatpush2.xpose.msra.mxu0 0.0
  %381 = vmatprep.subr.mxu0 0.0
  %382 = vmatpush2.xpose.msra.mxu0 0.0
  %383 = vmatprep.subr.mxu0 0.0
  %384 = vmatpush2.xpose.msra.mxu0 0.0
  %385 = vmatprep.subr.mxu0 0.0
  %386 = vmatpush2.xpose.msra.mxu0 0.0
  %387 = vmatprep.subr.mxu0 0.0
  %388 = vmatpush2.xpose.msra.mxu0 0.0
  %389 = vmatprep.subr.mxu0 0.0
  %390 = vmatpush2.xpose.msra.mxu0 0.0
  %391 = vmatprep.subr.mxu0 0.0
  %392 = vmatpush2.xpose.msra.mxu0 0.0
  %393 = vmatprep.mubr.f32.mxu0 0.0
  %394 = vmatmul.mubr.f32.gmra.mxu0 %v317
  %v395 = vpop.f32.mrf.mxu0
  %v396 = vadd.f32 0.0, %v395
  %v397 = vpop.f32.mrf.mxu0
  %398 = vmatprep.mubr.f32.mxu0 0.0
  %399 = vmatmul.mubr.f32.gmra.mxu0 %v319
  %v400 = vpop.f32.mrf.mxu0
  %v401 = vadd.f32 0.0, %v400
  %v402 = vpop.f32.mrf.mxu0
  %403 = vmatprep.mubr.f32.mxu0 0.0
  %404 = vmatmul.mubr.f32.gmra.mxu0 %v321
  %v405 = vpop.f32.mrf.mxu0
  %v406 = vadd.f32 0.0, %v405
  %v407 = vpop.f32.mrf.mxu0
  %408 = vdwg.mxu0
  %v409 = vmul.f32 %v295, 0.25
  %v410 = vmul.f32 %v300, 0.25
  %v411 = vmul.f32 %v305, 0.25
  %v412 = vmul.f32 %v396, 0.25
  %v413 = vmul.f32 %v401, 0.25
  %v414 = vmul.f32 %v406, 0.25
  %v415 = vsel %vm204, 1, 0
  %v416 = vsel %vm205, 1, 0
  %v417 = vlaneseq
  %v418 = vshrl.u32 %v417, 7
  %v419 = vsub.s32 0, %v418
  %v420 = vrot.slane %v415, %v419
  %v421 = vlaneseq
  %v422 = vshrl.u32 %v421, 7
  %v423 = vsub.s32 0, %v422
  %v424 = vrot.slane %v416, %v423
  %vm425 = vcmp.eq.s32.totalorder %v420, 1
  %vm426 = vcmp.eq.s32.totalorder %v424, 1
  %v427 = vsel %vm425, %v409, -1e+09
  %v428 = vsel %vm425, %v410, -1e+09
  %v429 = vsel %vm425, %v411, -1e+09
  %v430 = vsel %vm426, %v412, -1e+09
  %v431 = vsel %vm426, %v413, -1e+09
  %v432 = vsel %vm426, %v414, -1e+09
  %vm433 = vcmask 195584
  %v434 = vsel %vm433, %v427, -inf
  %435 = vmax.xlane.f32.xlu0 %v434
  %v436 = vpop.xlane.xlu0 %435
  %v437 = vsel %vm433, %v428, -inf
  %438 = vmax.xlane.f32.xlu0 %v437
  %v439 = vpop.xlane.xlu0 %438
  %v440 = vsel %vm433, %v429, -inf
  %441 = vmax.xlane.f32.xlu0 %v440
  %v442 = vpop.xlane.xlu0 %441
  %v443 = vsel %vm433, %v430, -inf
  %444 = vmax.xlane.f32.xlu0 %v443
  %v445 = vpop.xlane.xlu0 %444
  %v446 = vsel %vm433, %v431, -inf
  %447 = vmax.xlane.f32.xlu0 %v446
  %v448 = vpop.xlane.xlu0 %447
  %v449 = vsel %vm433, %v432, -inf
  %450 = vmax.xlane.f32.xlu0 %v449
  %v451 = vpop.xlane.xlu0 %450
  %v452 = vsub.f32 %v427, %v436
  %v453 = vsub.f32 %v428, %v439
  %v454 = vsub.f32 %v429, %v442
  %v455 = vsub.f32 %v430, %v445
  %v456 = vsub.f32 %v431, %v448
  %v457 = vsub.f32 %v432, %v451
  %v458 = vmul.f32 %v452, 1.442695
  %v459 = vpow.pop %v458
  %v460 = vmul.f32 %v453, 1.442695
  %v461 = vpow.pop %v460
  %v462 = vmul.f32 %v454, 1.442695
  %v463 = vpow.pop %v462
  %v464 = vmul.f32 %v455, 1.442695
  %v465 = vpow.pop %v464
  %v466 = vmul.f32 %v456, 1.442695
  %v467 = vpow.pop %v466
  %v468 = vmul.f32 %v457, 1.442695
  %v469 = vpow.pop %v468
  %v470 = vsel %vm433, %v459, 0.0
  %471 = vadd.xlane.f32.xlu0 %v470
  %v472 = vpop.xlane.xlu0 %471
  %v473 = vsel %vm433, %v461, 0.0
  %474 = vadd.xlane.f32.xlu0 %v473
  %v475 = vpop.xlane.xlu0 %474
  %v476 = vsel %vm433, %v463, 0.0
  %477 = vadd.xlane.f32.xlu0 %v476
  %v478 = vpop.xlane.xlu0 %477
  %v479 = vsel %vm433, %v465, 0.0
  %480 = vadd.xlane.f32.xlu0 %v479
  %v481 = vpop.xlane.xlu0 %480
  %v482 = vsel %vm433, %v467, 0.0
  %483 = vadd.xlane.f32.xlu0 %v482
  %v484 = vpop.xlane.xlu0 %483
  %v485 = vsel %vm433, %v469, 0.0
  %486 = vadd.xlane.f32.xlu0 %v485
  %v487 = vpop.xlane.xlu0 %486
  %v488 = vrcp.pop %v472
  %v489 = vmul.f32 %v459, %v488
  %v490 = vrcp.pop %v475
  %v491 = vmul.f32 %v461, %v490
  %v492 = vrcp.pop %v478
  %v493 = vmul.f32 %v463, %v492
  %v494 = vrcp.pop %v481
  %v495 = vmul.f32 %v465, %v494
  %v496 = vrcp.pop %v484
  %v497 = vmul.f32 %v467, %v496
  %v498 = vrcp.pop %v487
  %v499 = vmul.f32 %v469, %v498
  %500 = vrot.lane.b32.xlu0 %v151, 64
  %v501 = vpop.permute.xlu0 %500
  %502 = vrot.lane.b32.xlu0 %v156, 64
  %v503 = vpop.permute.xlu0 %502
  %504 = vrot.lane.b32.xlu0 %v161, 64
  %v505 = vpop.permute.xlu0 %504
  %v510 = vsel %vm433, %v489, 0
  %v513 = vsel %vm433, %v491, 0
  %v516 = vsel %vm433, %v493, 0
  %518 = vmatprep.subr.mxu0 0.0
  %519 = vmatpush1.msra.mxu0 0.0
  %520 = vmatprep.subr.mxu0 0.0
  %521 = vmatpush1.msra.mxu0 0.0
  %522 = vmatprep.subr.mxu0 0.0
  %523 = vmatpush1.msra.mxu0 0.0
  %524 = vmatprep.subr.mxu0 0.0
  %525 = vmatpush1.msra.mxu0 0.0
  %526 = vmatprep.subr.mxu0 0.0
  %527 = vmatpush1.msra.mxu0 0.0
  %528 = vmatprep.subr.mxu0 0.0
  %529 = vmatpush1.msra.mxu0 0.0
  %530 = vmatprep.subr.mxu0 0.0
  %531 = vmatpush1.msra.mxu0 0.0
  %532 = vmatprep.subr.mxu0 0.0
  %533 = vmatpush1.msra.mxu0 0.0
  %534 = vmatprep.subr.mxu0 0.0
  %535 = vmatpush1.msra.mxu0 0.0
  %536 = vmatprep.subr.mxu0 0.0
  %537 = vmatpush1.msra.mxu0 0.0
  %538 = vmatprep.subr.mxu0 0.0
  %539 = vmatpush1.msra.mxu0 0.0
  %540 = vmatprep.subr.mxu0 0.0
  %541 = vmatpush1.msra.mxu0 0.0
  %542 = vmatprep.subr.mxu0 0.0
  %543 = vmatpush1.msra.mxu0 0.0
  %544 = vmatprep.subr.mxu0 0.0
  %545 = vmatpush1.msra.mxu0 %v505
  %546 = vmatprep.subr.mxu0 0.0
  %547 = vmatpush1.msra.mxu0 %v503
  %548 = vmatprep.subr.mxu0 0.0
  %549 = vmatpush1.msra.mxu0 %v501
  %550 = vmatprep.subr.mxu0 0.0
  %551 = vmatpush2.msra.mxu0 0.0
  %552 = vmatprep.subr.mxu0 0.0
  %553 = vmatpush2.msra.mxu0 0.0
  %554 = vmatprep.subr.mxu0 0.0
  %555 = vmatpush2.msra.mxu0 0.0
  %556 = vmatprep.subr.mxu0 0.0
  %557 = vmatpush2.msra.mxu0 0.0
  %558 = vmatprep.subr.mxu0 0.0
  %559 = vmatpush2.msra.mxu0 0.0
  %560 = vmatprep.subr.mxu0 0.0
  %561 = vmatpush2.msra.mxu0 0.0
  %562 = vmatprep.subr.mxu0 0.0
  %563 = vmatpush2.msra.mxu0 0.0
  %564 = vmatprep.subr.mxu0 0.0
  %565 = vmatpush2.msra.mxu0 0.0
  %566 = vmatprep.subr.mxu0 0.0
  %567 = vmatpush2.msra.mxu0 0.0
  %568 = vmatprep.subr.mxu0 0.0
  %569 = vmatpush2.msra.mxu0 0.0
  %570 = vmatprep.subr.mxu0 0.0
  %571 = vmatpush2.msra.mxu0 0.0
  %572 = vmatprep.subr.mxu0 0.0
  %573 = vmatpush2.msra.mxu0 0.0
  %574 = vmatprep.subr.mxu0 0.0
  %575 = vmatpush2.msra.mxu0 0.0
  %576 = vmatprep.subr.mxu0 0.0
  %577 = vmatpush2.msra.mxu0 0.0
  %578 = vmatprep.subr.mxu0 0.0
  %579 = vmatpush2.msra.mxu0 0.0
  %580 = vmatprep.subr.mxu0 0.0
  %581 = vmatpush2.msra.mxu0 0.0
  %582 = vmatprep.mubr.f32.mxu0 0.0
  %583 = vmatmul.mubr.f32.gmra.mxu0 %v510
  %v584 = vpop.f32.mrf.mxu0
  %v585 = vadd.f32 0.0, %v584
  %v586 = vpop.f32.mrf.mxu0
  %587 = vmatprep.mubr.f32.mxu0 0.0
  %588 = vmatmul.mubr.f32.gmra.mxu0 %v513
  %v589 = vpop.f32.mrf.mxu0
  %v590 = vadd.f32 0.0, %v589
  %v591 = vpop.f32.mrf.mxu0
  %592 = vmatprep.mubr.f32.mxu0 0.0
  %593 = vmatmul.mubr.f32.gmra.mxu0 %v516
  %v594 = vpop.f32.mrf.mxu0
  %v595 = vadd.f32 0.0, %v594
  %v596 = vpop.f32.mrf.mxu0
  %597 = vdwg.mxu0
  %598 = vrot.lane.b32.xlu0 %v166, 64
  %v599 = vpop.permute.xlu0 %598
  %600 = vrot.lane.b32.xlu0 %v171, 64
  %v601 = vpop.permute.xlu0 %600
  %602 = vrot.lane.b32.xlu0 %v176, 64
  %v603 = vpop.permute.xlu0 %602
  %v608 = vsel %vm433, %v495, 0
  %v611 = vsel %vm433, %v497, 0
  %v614 = vsel %vm433, %v499, 0
  %616 = vmatprep.subr.mxu0 0.0
  %617 = vmatpush1.msra.mxu0 0.0
  %618 = vmatprep.subr.mxu0 0.0
  %619 = vmatpush1.msra.mxu0 0.0
  %620 = vmatprep.subr.mxu0 0.0
  %621 = vmatpush1.msra.mxu0 0.0
  %622 = vmatprep.subr.mxu0 0.0
  %623 = vmatpush1.msra.mxu0 0.0
  %624 = vmatprep.subr.mxu0 0.0
  %625 = vmatpush1.msra.mxu0 0.0
  %626 = vmatprep.subr.mxu0 0.0
  %627 = vmatpush1.msra.mxu0 0.0
  %628 = vmatprep.subr.mxu0 0.0
  %629 = vmatpush1.msra.mxu0 0.0
  %630 = vmatprep.subr.mxu0 0.0
  %631 = vmatpush1.msra.mxu0 0.0
  %632 = vmatprep.subr.mxu0 0.0
  %633 = vmatpush1.msra.mxu0 0.0
  %634 = vmatprep.subr.mxu0 0.0
  %635 = vmatpush1.msra.mxu0 0.0
  %636 = vmatprep.subr.mxu0 0.0
  %637 = vmatpush1.msra.mxu0 0.0
  %638 = vmatprep.subr.mxu0 0.0
  %639 = vmatpush1.msra.mxu0 0.0
  %640 = vmatprep.subr.mxu0 0.0
  %641 = vmatpush1.msra.mxu0 0.0
  %642 = vmatprep.subr.mxu0 0.0
  %643 = vmatpush1.msra.mxu0 %v603
  %644 = vmatprep.subr.mxu0 0.0
  %645 = vmatpush1.msra.mxu0 %v601
  %646 = vmatprep.subr.mxu0 0.0
  %647 = vmatpush1.msra.mxu0 %v599
  %648 = vmatprep.subr.mxu0 0.0
  %649 = vmatpush2.msra.mxu0 0.0
  %650 = vmatprep.subr.mxu0 0.0
  %651 = vmatpush2.msra.mxu0 0.0
  %652 = vmatprep.subr.mxu0 0.0
  %653 = vmatpush2.msra.mxu0 0.0
  %654 = vmatprep.subr.mxu0 0.0
  %655 = vmatpush2.msra.mxu0 0.0
  %656 = vmatprep.subr.mxu0 0.0
  %657 = vmatpush2.msra.mxu0 0.0
  %658 = vmatprep.subr.mxu0 0.0
  %659 = vmatpush2.msra.mxu0 0.0
  %660 = vmatprep.subr.mxu0 0.0
  %661 = vmatpush2.msra.mxu0 0.0
  %662 = vmatprep.subr.mxu0 0.0
  %663 = vmatpush2.msra.mxu0 0.0
  %664 = vmatprep.subr.mxu0 0.0
  %665 = vmatpush2.msra.mxu0 0.0
  %666 = vmatprep.subr.mxu0 0.0
  %667 = vmatpush2.msra.mxu0 0.0
  %668 = vmatprep.subr.mxu0 0.0
  %669 = vmatpush2.msra.mxu0 0.0
  %670 = vmatprep.subr.mxu0 0.0
  %671 = vmatpush2.msra.mxu0 0.0
  %672 = vmatprep.subr.mxu0 0.0
  %673 = vmatpush2.msra.mxu0 0.0
  %674 = vmatprep.subr.mxu0 0.0
  %675 = vmatpush2.msra.mxu0 0.0
  %676 = vmatprep.subr.mxu0 0.0
  %677 = vmatpush2.msra.mxu0 0.0
  %678 = vmatprep.subr.mxu0 0.0
  %679 = vmatpush2.msra.mxu0 0.0
  %680 = vmatprep.mubr.f32.mxu0 0.0
  %681 = vmatmul.mubr.f32.gmra.mxu0 %v608
  %v682 = vpop.f32.mrf.mxu0
  %v683 = vadd.f32 0.0, %v682
  %v684 = vpop.f32.mrf.mxu0
  %685 = vmatprep.mubr.f32.mxu0 0.0
  %686 = vmatmul.mubr.f32.gmra.mxu0 %v611
  %v687 = vpop.f32.mrf.mxu0
  %v688 = vadd.f32 0.0, %v687
  %v689 = vpop.f32.mrf.mxu0
  %690 = vmatprep.mubr.f32.mxu0 0.0
  %691 = vmatmul.mubr.f32.gmra.mxu0 %v614
  %v692 = vpop.f32.mrf.mxu0
  %v693 = vadd.f32 0.0, %v692
  %v694 = vpop.f32.mrf.mxu0
  %695 = vdwg.mxu0
  %696 = vrot.lane.b32.xlu0 %v151, 112
  %v697 = vpop.permute.xlu0 %696
  %698 = vrot.lane.b32.xlu0 %v156, 112
  %v699 = vpop.permute.xlu0 %698
  %700 = vrot.lane.b32.xlu0 %v161, 112
  %v701 = vpop.permute.xlu0 %700
  %702 = vrot.lane.b32.xlu0 %v151, 80
  %v703 = vpop.permute.xlu0 %702
  %704 = vrot.lane.b32.xlu0 %v156, 80
  %v705 = vpop.permute.xlu0 %704
  %706 = vrot.lane.b32.xlu0 %v161, 80
  %v707 = vpop.permute.xlu0 %706
  %v708 = vsel %vm215, %v697, 0
  %v710 = vsel %vm215, %v699, 0
  %v712 = vsel %vm215, %v701, 0
  %v714 = vsel %vm215, %v703, 0
  %v716 = vsel %vm215, %v705, 0
  %v718 = vsel %vm215, %v707, 0
  %720 = vmatprep.subr.mxu0 0.0
  %721 = vmatpush1.xpose.msra.mxu0 0.0
  %722 = vmatprep.subr.mxu0 0.0
  %723 = vmatpush1.xpose.msra.mxu0 0.0
  %724 = vmatprep.subr.mxu0 0.0
  %725 = vmatpush1.xpose.msra.mxu0 0.0
  %726 = vmatprep.subr.mxu0 0.0
  %727 = vmatpush1.xpose.msra.mxu0 0.0
  %728 = vmatprep.subr.mxu0 0.0
  %729 = vmatpush1.xpose.msra.mxu0 0.0
  %730 = vmatprep.subr.mxu0 0.0
  %731 = vmatpush1.xpose.msra.mxu0 0.0
  %732 = vmatprep.subr.mxu0 0.0
  %733 = vmatpush1.xpose.msra.mxu0 0.0
  %734 = vmatprep.subr.mxu0 0.0
  %735 = vmatpush1.xpose.msra.mxu0 0.0
  %736 = vmatprep.subr.mxu0 0.0
  %737 = vmatpush1.xpose.msra.mxu0 0.0
  %738 = vmatprep.subr.mxu0 0.0
  %739 = vmatpush1.xpose.msra.mxu0 0.0
  %740 = vmatprep.subr.mxu0 0.0
  %741 = vmatpush1.xpose.msra.mxu0 0.0
  %742 = vmatprep.subr.mxu0 0.0
  %743 = vmatpush1.xpose.msra.mxu0 0.0
  %744 = vmatprep.subr.mxu0 0.0
  %745 = vmatpush1.xpose.msra.mxu0 0.0
  %746 = vmatprep.subr.mxu0 0.0
  %747 = vmatpush1.xpose.msra.mxu0 %v718
  %748 = vmatprep.subr.mxu0 0.0
  %749 = vmatpush1.xpose.msra.mxu0 %v716
  %750 = vmatprep.subr.mxu0 0.0
  %751 = vmatpush1.xpose.msra.mxu0 %v714
  %752 = vmatprep.subr.mxu0 0.0
  %753 = vmatpush2.xpose.msra.mxu0 0.0
  %754 = vmatprep.subr.mxu0 0.0
  %755 = vmatpush2.xpose.msra.mxu0 0.0
  %756 = vmatprep.subr.mxu0 0.0
  %757 = vmatpush2.xpose.msra.mxu0 0.0
  %758 = vmatprep.subr.mxu0 0.0
  %759 = vmatpush2.xpose.msra.mxu0 0.0
  %760 = vmatprep.subr.mxu0 0.0
  %761 = vmatpush2.xpose.msra.mxu0 0.0
  %762 = vmatprep.subr.mxu0 0.0
  %763 = vmatpush2.xpose.msra.mxu0 0.0
  %764 = vmatprep.subr.mxu0 0.0
  %765 = vmatpush2.xpose.msra.mxu0 0.0
  %766 = vmatprep.subr.mxu0 0.0
  %767 = vmatpush2.xpose.msra.mxu0 0.0
  %768 = vmatprep.subr.mxu0 0.0
  %769 = vmatpush2.xpose.msra.mxu0 0.0
  %770 = vmatprep.subr.mxu0 0.0
  %771 = vmatpush2.xpose.msra.mxu0 0.0
  %772 = vmatprep.subr.mxu0 0.0
  %773 = vmatpush2.xpose.msra.mxu0 0.0
  %774 = vmatprep.subr.mxu0 0.0
  %775 = vmatpush2.xpose.msra.mxu0 0.0
  %776 = vmatprep.subr.mxu0 0.0
  %777 = vmatpush2.xpose.msra.mxu0 0.0
  %778 = vmatprep.subr.mxu0 0.0
  %779 = vmatpush2.xpose.msra.mxu0 0.0
  %780 = vmatprep.subr.mxu0 0.0
  %781 = vmatpush2.xpose.msra.mxu0 0.0
  %782 = vmatprep.subr.mxu0 0.0
  %783 = vmatpush2.xpose.msra.mxu0 0.0
  %784 = vmatprep.mubr.f32.mxu0 0.0
  %785 = vmatmul.mubr.f32.gmra.mxu0 %v708
  %v786 = vpop.f32.mrf.mxu0
  %v787 = vadd.f32 0.0, %v786
  %v788 = vpop.f32.mrf.mxu0
  %789 = vmatprep.mubr.f32.mxu0 0.0
  %790 = vmatmul.mubr.f32.gmra.mxu0 %v710
  %v791 = vpop.f32.mrf.mxu0
  %v792 = vadd.f32 0.0, %v791
  %v793 = vpop.f32.mrf.mxu0
  %794 = vmatprep.mubr.f32.mxu0 0.0
  %795 = vmatmul.mubr.f32.gmra.mxu0 %v712
  %v796 = vpop.f32.mrf.mxu0
  %v797 = vadd.f32 0.0, %v796
  %v798 = vpop.f32.mrf.mxu0
  %799 = vdwg.mxu0
  %800 = vrot.lane.b32.xlu0 %v166, 112
  %v801 = vpop.permute.xlu0 %800
  %802 = vrot.lane.b32.xlu0 %v171, 112
  %v803 = vpop.permute.xlu0 %802
  %804 = vrot.lane.b32.xlu0 %v176, 112
  %v805 = vpop.permute.xlu0 %804
  %806 = vrot.lane.b32.xlu0 %v166, 80
  %v807 = vpop.permute.xlu0 %806
  %808 = vrot.lane.b32.xlu0 %v171, 80
  %v809 = vpop.permute.xlu0 %808
  %810 = vrot.lane.b32.xlu0 %v176, 80
  %v811 = vpop.permute.xlu0 %810
  %v812 = vsel %vm215, %v801, 0
  %v814 = vsel %vm215, %v803, 0
  %v816 = vsel %vm215, %v805, 0
  %v818 = vsel %vm215, %v807, 0
  %v820 = vsel %vm215, %v809, 0
  %v822 = vsel %vm215, %v811, 0
  %824 = vmatprep.subr.mxu0 0.0
  %825 = vmatpush1.xpose.msra.mxu0 0.0
  %826 = vmatprep.subr.mxu0 0.0
  %827 = vmatpush1.xpose.msra.mxu0 0.0
  %828 = vmatprep.subr.mxu0 0.0
  %829 = vmatpush1.xpose.msra.mxu0 0.0
  %830 = vmatprep.subr.mxu0 0.0
  %831 = vmatpush1.xpose.msra.mxu0 0.0
  %832 = vmatprep.subr.mxu0 0.0
  %833 = vmatpush1.xpose.msra.mxu0 0.0
  %834 = vmatprep.subr.mxu0 0.0
  %835 = vmatpush1.xpose.msra.mxu0 0.0
  %836 = vmatprep.subr.mxu0 0.0
  %837 = vmatpush1.xpose.msra.mxu0 0.0
  %838 = vmatprep.subr.mxu0 0.0
  %839 = vmatpush1.xpose.msra.mxu0 0.0
  %840 = vmatprep.subr.mxu0 0.0
  %841 = vmatpush1.xpose.msra.mxu0 0.0
  %842 = vmatprep.subr.mxu0 0.0
  %843 = vmatpush1.xpose.msra.mxu0 0.0
  %844 = vmatprep.subr.mxu0 0.0
  %845 = vmatpush1.xpose.msra.mxu0 0.0
  %846 = vmatprep.subr.mxu0 0.0
  %847 = vmatpush1.xpose.msra.mxu0 0.0
  %848 = vmatprep.subr.mxu0 0.0
  %849 = vmatpush1.xpose.msra.mxu0 0.0
  %850 = vmatprep.subr.mxu0 0.0
  %851 = vmatpush1.xpose.msra.mxu0 %v822
  %852 = vmatprep.subr.mxu0 0.0
  %853 = vmatpush1.xpose.msra.mxu0 %v820
  %854 = vmatprep.subr.mxu0 0.0
  %855 = vmatpush1.xpose.msra.mxu0 %v818
  %856 = vmatprep.subr.mxu0 0.0
  %857 = vmatpush2.xpose.msra.mxu0 0.0
  %858 = vmatprep.subr.mxu0 0.0
  %859 = vmatpush2.xpose.msra.mxu0 0.0
  %860 = vmatprep.subr.mxu0 0.0
  %861 = vmatpush2.xpose.msra.mxu0 0.0
  %862 = vmatprep.subr.mxu0 0.0
  %863 = vmatpush2.xpose.msra.mxu0 0.0
  %864 = vmatprep.subr.mxu0 0.0
  %865 = vmatpush2.xpose.msra.mxu0 0.0
  %866 = vmatprep.subr.mxu0 0.0
  %867 = vmatpush2.xpose.msra.mxu0 0.0
  %868 = vmatprep.subr.mxu0 0.0
  %869 = vmatpush2.xpose.msra.mxu0 0.0
  %870 = vmatprep.subr.mxu0 0.0
  %871 = vmatpush2.xpose.msra.mxu0 0.0
  %872 = vmatprep.subr.mxu0 0.0
  %873 = vmatpush2.xpose.msra.mxu0 0.0
  %874 = vmatprep.subr.mxu0 0.0
  %875 = vmatpush2.xpose.msra.mxu0 0.0
  %876 = vmatprep.subr.mxu0 0.0
  %877 = vmatpush2.xpose.msra.mxu0 0.0
  %878 = vmatprep.subr.mxu0 0.0
  %879 = vmatpush2.xpose.msra.mxu0 0.0
  %880 = vmatprep.subr.mxu0 0.0
  %881 = vmatpush2.xpose.msra.mxu0 0.0
  %882 = vmatprep.subr.mxu0 0.0
  %883 = vmatpush2.xpose.msra.mxu0 0.0
  %884 = vmatprep.subr.mxu0 0.0
  %885 = vmatpush2.xpose.msra.mxu0 0.0
  %886 = vmatprep.subr.mxu0 0.0
  %887 = vmatpush2.xpose.msra.mxu0 0.0
  %888 = vmatprep.mubr.f32.mxu0 0.0
  %889 = vmatmul.mubr.f32.gmra.mxu0 %v812
  %v890 = vpop.f32.mrf.mxu0
  %v891 = vadd.f32 0.0, %v890
  %v892 = vpop.f32.mrf.mxu0
  %893 = vmatprep.mubr.f32.mxu0 0.0
  %894 = vmatmul.mubr.f32.gmra.mxu0 %v814
  %v895 = vpop.f32.mrf.mxu0
  %v896 = vadd.f32 0.0, %v895
  %v897 = vpop.f32.mrf.mxu0
  %898 = vmatprep.mubr.f32.mxu0 0.0
  %899 = vmatmul.mubr.f32.gmra.mxu0 %v816
  %v900 = vpop.f32.mrf.mxu0
  %v901 = vadd.f32 0.0, %v900
  %v902 = vpop.f32.mrf.mxu0
  %903 = vdwg.mxu0
  %v904 = vmul.f32 %v787, 0.25
  %v905 = vmul.f32 %v792, 0.25
  %v906 = vmul.f32 %v797, 0.25
  %v907 = vmul.f32 %v891, 0.25
  %v908 = vmul.f32 %v896, 0.25
  %v909 = vmul.f32 %v901, 0.25
  %v910 = vsel %vm425, %v904, -1e+09
  %v911 = vsel %vm425, %v905, -1e+09
  %v912 = vsel %vm425, %v906, -1e+09
  %v913 = vsel %vm426, %v907, -1e+09
  %v914 = vsel %vm426, %v908, -1e+09
  %v915 = vsel %vm426, %v909, -1e+09
  %v916 = vsel %vm433, %v910, -inf
  %917 = vmax.xlane.f32.xlu0 %v916
  %v918 = vpop.xlane.xlu0 %917
  %v919 = vsel %vm433, %v911, -inf
  %920 = vmax.xlane.f32.xlu0 %v919
  %v921 = vpop.xlane.xlu0 %920
  %v922 = vsel %vm433, %v912, -inf
  %923 = vmax.xlane.f32.xlu0 %v922
  %v924 = vpop.xlane.xlu0 %923
  %v925 = vsel %vm433, %v913, -inf
  %926 = vmax.xlane.f32.xlu0 %v925
  %v927 = vpop.xlane.xlu0 %926
  %v928 = vsel %vm433, %v914, -inf
  %929 = vmax.xlane.f32.xlu0 %v928
  %v930 = vpop.xlane.xlu0 %929
  %v931 = vsel %vm433, %v915, -inf
  %932 = vmax.xlane.f32.xlu0 %v931
  %v933 = vpop.xlane.xlu0 %932
  %v934 = vsub.f32 %v910, %v918
  %v935 = vsub.f32 %v911, %v921
  %v936 = vsub.f32 %v912, %v924
  %v937 = vsub.f32 %v913, %v927
  %v938 = vsub.f32 %v914, %v930
  %v939 = vsub.f32 %v915, %v933
  %v940 = vmul.f32 %v934, 1.442695
  %v941 = vpow.pop %v940
  %v942 = vmul.f32 %v935, 1.442695
  %v943 = vpow.pop %v942
  %v944 = vmul.f32 %v936, 1.442695
  %v945 = vpow.pop %v944
  %v946 = vmul.f32 %v937, 1.442695
  %v947 = vpow.pop %v946
  %v948 = vmul.f32 %v938, 1.442695
  %v949 = vpow.pop %v948
  %v950 = vmul.f32 %v939, 1.442695
  %v951 = vpow.pop %v950
  %v952 = vsel %vm433, %v941, 0.0
  %953 = vadd.xlane.f32.xlu0 %v952
  %v954 = vpop.xlane.xlu0 %953
  %v955 = vsel %vm433, %v943, 0.0
  %956 = vadd.xlane.f32.xlu0 %v955
  %v957 = vpop.xlane.xlu0 %956
  %v958 = vsel %vm433, %v945, 0.0
  %959 = vadd.xlane.f32.xlu0 %v958
  %v960 = vpop.xlane.xlu0 %959
  %v961 = vsel %vm433, %v947, 0.0
  %962 = vadd.xlane.f32.xlu0 %v961
  %v963 = vpop.xlane.xlu0 %962
  %v964 = vsel %vm433, %v949, 0.0
  %965 = vadd.xlane.f32.xlu0 %v964
  %v966 = vpop.xlane.xlu0 %965
  %v967 = vsel %vm433, %v951, 0.0
  %968 = vadd.xlane.f32.xlu0 %v967
  %v969 = vpop.xlane.xlu0 %968
  %v970 = vrcp.pop %v954
  %v971 = vmul.f32 %v941, %v970
  %v972 = vrcp.pop %v957
  %v973 = vmul.f32 %v943, %v972
  %v974 = vrcp.pop %v960
  %v975 = vmul.f32 %v945, %v974
  %v976 = vrcp.pop %v963
  %v977 = vmul.f32 %v947, %v976
  %v978 = vrcp.pop %v966
  %v979 = vmul.f32 %v949, %v978
  %v980 = vrcp.pop %v969
  %v981 = vmul.f32 %v951, %v980
  %982 = vrot.lane.b32.xlu0 %v151, 48
  %v983 = vpop.permute.xlu0 %982
  %984 = vrot.lane.b32.xlu0 %v156, 48
  %v985 = vpop.permute.xlu0 %984
  %986 = vrot.lane.b32.xlu0 %v161, 48
  %v987 = vpop.permute.xlu0 %986
  %v992 = vsel %vm433, %v971, 0
  %v995 = vsel %vm433, %v973, 0
  %v998 = vsel %vm433, %v975, 0
  %1000 = vmatprep.subr.mxu0 0.0
  %1001 = vmatpush1.msra.mxu0 0.0
  %1002 = vmatprep.subr.mxu0 0.0
  %1003 = vmatpush1.msra.mxu0 0.0
  %1004 = vmatprep.subr.mxu0 0.0
  %1005 = vmatpush1.msra.mxu0 0.0
  %1006 = vmatprep.subr.mxu0 0.0
  %1007 = vmatpush1.msra.mxu0 0.0
  %1008 = vmatprep.subr.mxu0 0.0
  %1009 = vmatpush1.msra.mxu0 0.0
  %1010 = vmatprep.subr.mxu0 0.0
  %1011 = vmatpush1.msra.mxu0 0.0
  %1012 = vmatprep.subr.mxu0 0.0
  %1013 = vmatpush1.msra.mxu0 0.0
  %1014 = vmatprep.subr.mxu0 0.0
  %1015 = vmatpush1.msra.mxu0 0.0
  %1016 = vmatprep.subr.mxu0 0.0
  %1017 = vmatpush1.msra.mxu0 0.0
  %1018 = vmatprep.subr.mxu0 0.0
  %1019 = vmatpush1.msra.mxu0 0.0
  %1020 = vmatprep.subr.mxu0 0.0
  %1021 = vmatpush1.msra.mxu0 0.0
  %1022 = vmatprep.subr.mxu0 0.0
  %1023 = vmatpush1.msra.mxu0 0.0
  %1024 = vmatprep.subr.mxu0 0.0
  %1025 = vmatpush1.msra.mxu0 0.0
  %1026 = vmatprep.subr.mxu0 0.0
  %1027 = vmatpush1.msra.mxu0 %v987
  %1028 = vmatprep.subr.mxu0 0.0
  %1029 = vmatpush1.msra.mxu0 %v985
  %1030 = vmatprep.subr.mxu0 0.0
  %1031 = vmatpush1.msra.mxu0 %v983
  %1032 = vmatprep.subr.mxu0 0.0
  %1033 = vmatpush2.msra.mxu0 0.0
  %1034 = vmatprep.subr.mxu0 0.0
  %1035 = vmatpush2.msra.mxu0 0.0
  %1036 = vmatprep.subr.mxu0 0.0
  %1037 = vmatpush2.msra.mxu0 0.0
  %1038 = vmatprep.subr.mxu0 0.0
  %1039 = vmatpush2.msra.mxu0 0.0
  %1040 = vmatprep.subr.mxu0 0.0
  %1041 = vmatpush2.msra.mxu0 0.0
  %1042 = vmatprep.subr.mxu0 0.0
  %1043 = vmatpush2.msra.mxu0 0.0
  %1044 = vmatprep.subr.mxu0 0.0
  %1045 = vmatpush2.msra.mxu0 0.0
  %1046 = vmatprep.subr.mxu0 0.0
  %1047 = vmatpush2.msra.mxu0 0.0
  %1048 = vmatprep.subr.mxu0 0.0
  %1049 = vmatpush2.msra.mxu0 0.0
  %1050 = vmatprep.subr.mxu0 0.0
  %1051 = vmatpush2.msra.mxu0 0.0
  %1052 = vmatprep.subr.mxu0 0.0
  %1053 = vmatpush2.msra.mxu0 0.0
  %1054 = vmatprep.subr.mxu0 0.0
  %1055 = vmatpush2.msra.mxu0 0.0
  %1056 = vmatprep.subr.mxu0 0.0
  %1057 = vmatpush2.msra.mxu0 0.0
  %1058 = vmatprep.subr.mxu0 0.0
  %1059 = vmatpush2.msra.mxu0 0.0
  %1060 = vmatprep.subr.mxu0 0.0
  %1061 = vmatpush2.msra.mxu0 0.0
  %1062 = vmatprep.subr.mxu0 0.0
  %1063 = vmatpush2.msra.mxu0 0.0
  %1064 = vmatprep.mubr.f32.mxu0 0.0
  %1065 = vmatmul.mubr.f32.gmra.mxu0 %v992
  %v1066 = vpop.f32.mrf.mxu0
  %v1067 = vadd.f32 0.0, %v1066
  %v1068 = vpop.f32.mrf.mxu0
  %1069 = vmatprep.mubr.f32.mxu0 0.0
  %1070 = vmatmul.mubr.f32.gmra.mxu0 %v995
  %v1071 = vpop.f32.mrf.mxu0
  %v1072 = vadd.f32 0.0, %v1071
  %v1073 = vpop.f32.mrf.mxu0
  %1074 = vmatprep.mubr.f32.mxu0 0.0
  %1075 = vmatmul.mubr.f32.gmra.mxu0 %v998
  %v1076 = vpop.f32.mrf.mxu0
  %v1077 = vadd.f32 0.0, %v1076
  %v1078 = vpop.f32.mrf.mxu0
  %1079 = vdwg.mxu0
  %1080 = vrot.lane.b32.xlu0 %v166, 48
  %v1081 = vpop.permute.xlu0 %1080
  %1082 = vrot.lane.b32.xlu0 %v171, 48
  %v1083 = vpop.permute.xlu0 %1082
  %1084 = vrot.lane.b32.xlu0 %v176, 48
  %v1085 = vpop.permute.xlu0 %1084
  %v1090 = vsel %vm433, %v977, 0
  %v1093 = vsel %vm433, %v979, 0
  %v1096 = vsel %vm433, %v981, 0
  %1098 = vmatprep.subr.mxu0 0.0
  %1099 = vmatpush1.msra.mxu0 0.0
  %1100 = vmatprep.subr.mxu0 0.0
  %1101 = vmatpush1.msra.mxu0 0.0
  %1102 = vmatprep.subr.mxu0 0.0
  %1103 = vmatpush1.msra.mxu0 0.0
  %1104 = vmatprep.subr.mxu0 0.0
  %1105 = vmatpush1.msra.mxu0 0.0
  %1106 = vmatprep.subr.mxu0 0.0
  %1107 = vmatpush1.msra.mxu0 0.0
  %1108 = vmatprep.subr.mxu0 0.0
  %1109 = vmatpush1.msra.mxu0 0.0
  %1110 = vmatprep.subr.mxu0 0.0
  %1111 = vmatpush1.msra.mxu0 0.0
  %1112 = vmatprep.subr.mxu0 0.0
  %1113 = vmatpush1.msra.mxu0 0.0
  %1114 = vmatprep.subr.mxu0 0.0
  %1115 = vmatpush1.msra.mxu0 0.0
  %1116 = vmatprep.subr.mxu0 0.0
  %1117 = vmatpush1.msra.mxu0 0.0
  %1118 = vmatprep.subr.mxu0 0.0
  %1119 = vmatpush1.msra.mxu0 0.0
  %1120 = vmatprep.subr.mxu0 0.0
  %1121 = vmatpush1.msra.mxu0 0.0
  %1122 = vmatprep.subr.mxu0 0.0
  %1123 = vmatpush1.msra.mxu0 0.0
  %1124 = vmatprep.subr.mxu0 0.0
  %1125 = vmatpush1.msra.mxu0 %v1085
  %1126 = vmatprep.subr.mxu0 0.0
  %1127 = vmatpush1.msra.mxu0 %v1083
  %1128 = vmatprep.subr.mxu0 0.0
  %1129 = vmatpush1.msra.mxu0 %v1081
  %1130 = vmatprep.subr.mxu0 0.0
  %1131 = vmatpush2.msra.mxu0 0.0
  %1132 = vmatprep.subr.mxu0 0.0
  %1133 = vmatpush2.msra.mxu0 0.0
  %1134 = vmatprep.subr.mxu0 0.0
  %1135 = vmatpush2.msra.mxu0 0.0
  %1136 = vmatprep.subr.mxu0 0.0
  %1137 = vmatpush2.msra.mxu0 0.0
  %1138 = vmatprep.subr.mxu0 0.0
  %1139 = vmatpush2.msra.mxu0 0.0
  %1140 = vmatprep.subr.mxu0 0.0
  %1141 = vmatpush2.msra.mxu0 0.0
  %1142 = vmatprep.subr.mxu0 0.0
  %1143 = vmatpush2.msra.mxu0 0.0
  %1144 = vmatprep.subr.mxu0 0.0
  %1145 = vmatpush2.msra.mxu0 0.0
  %1146 = vmatprep.subr.mxu0 0.0
  %1147 = vmatpush2.msra.mxu0 0.0
  %1148 = vmatprep.subr.mxu0 0.0
  %1149 = vmatpush2.msra.mxu0 0.0
  %1150 = vmatprep.subr.mxu0 0.0
  %1151 = vmatpush2.msra.mxu0 0.0
  %1152 = vmatprep.subr.mxu0 0.0
  %1153 = vmatpush2.msra.mxu0 0.0
  %1154 = vmatprep.subr.mxu0 0.0
  %1155 = vmatpush2.msra.mxu0 0.0
  %1156 = vmatprep.subr.mxu0 0.0
  %1157 = vmatpush2.msra.mxu0 0.0
  %1158 = vmatprep.subr.mxu0 0.0
  %1159 = vmatpush2.msra.mxu0 0.0
  %1160 = vmatprep.subr.mxu0 0.0
  %1161 = vmatpush2.msra.mxu0 0.0
  %1162 = vmatprep.mubr.f32.mxu0 0.0
  %1163 = vmatmul.mubr.f32.gmra.mxu0 %v1090
  %v1164 = vpop.f32.mrf.mxu0
  %v1165 = vadd.f32 0.0, %v1164
  %v1166 = vpop.f32.mrf.mxu0
  %1167 = vmatprep.mubr.f32.mxu0 0.0
  %1168 = vmatmul.mubr.f32.gmra.mxu0 %v1093
  %v1169 = vpop.f32.mrf.mxu0
  %v1170 = vadd.f32 0.0, %v1169
  %v1171 = vpop.f32.mrf.mxu0
  %1172 = vmatprep.mubr.f32.mxu0 0.0
  %1173 = vmatmul.mubr.f32.gmra.mxu0 %v1096
  %v1174 = vpop.f32.mrf.mxu0
  %v1175 = vadd.f32 0.0, %v1174
  %v1176 = vpop.f32.mrf.mxu0
  %1177 = vdwg.mxu0
  %1184 = vrot.lane.b32.xlu0 %v1067, 16
  %v1185 = vpop.permute.xlu0 %1184
  %1186 = vrot.lane.b32.xlu0 %v1072, 16
  %v1187 = vpop.permute.xlu0 %1186
  %1188 = vrot.lane.b32.xlu0 %v1077, 16
  %v1189 = vpop.permute.xlu0 %1188
  %1190 = vrot.lane.b32.xlu0 %v1165, 16
  %v1191 = vpop.permute.xlu0 %1190
  %1192 = vrot.lane.b32.xlu0 %v1170, 16
  %v1193 = vpop.permute.xlu0 %1192
  %1194 = vrot.lane.b32.xlu0 %v1175, 16
  %v1195 = vpop.permute.xlu0 %1194
  %v1202 = vsel %vm215, %v585, %v1185
  %v1203 = vsel %vm215, %v590, %v1187
  %v1204 = vsel %vm215, %v595, %v1189
  %v1205 = vsel %vm215, %v683, %v1191
  %v1206 = vsel %vm215, %v688, %v1193
  %v1207 = vsel %vm215, %v693, %v1195
  %v1208 = vld [vmem:[%s4] sm:$0xff]
  %v1209 = vld [vmem:[%s4 + $0x8] sm:$0xff]
  %v1210 = vld [vmem:[%s4 + $0x10] sm:$0xff]
  %v1211 = vld [vmem:[%s4 + $0x18] sm:$0xff]
  %v1212 = vld [vmem:[%s5] sm:$0x1]
  %v1214 = vlaneseq
  %v1215 = vshrl.u32 %v1214, 7
  %v1216 = vsub.s32 0, %v1215
  %v1217 = vrot.slane %v1212, %v1216
  %v1220 = vsel %vm65, %v1202, 0
  %v1223 = vsel %vm65, %v1203, 0
  %v1226 = vsel %vm65, %v1204, 0
  %v1229 = vsel %vm65, %v1205, 0
  %v1232 = vsel %vm65, %v1206, 0
  %v1235 = vsel %vm65, %v1207, 0
  %1237 = vmatprep.subr.mxu0 0.0
  %1238 = vmatpush1.msra.mxu0 0.0
  %1239 = vmatprep.subr.mxu0 0.0
  %1240 = vmatpush1.msra.mxu0 0.0
  %1241 = vmatprep.subr.mxu0 0.0
  %1242 = vmatpush1.msra.mxu0 0.0
  %1243 = vmatprep.subr.mxu0 0.0
  %1244 = vmatpush1.msra.mxu0 0.0
  %1245 = vmatprep.subr.mxu0 0.0
  %1246 = vmatpush1.msra.mxu0 0.0
  %1247 = vmatprep.subr.mxu0 0.0
  %1248 = vmatpush1.msra.mxu0 0.0
  %1249 = vmatprep.subr.mxu0 0.0
  %1250 = vmatpush1.msra.mxu0 0.0
  %1251 = vmatprep.subr.mxu0 0.0
  %1252 = vmatpush1.msra.mxu0 0.0
  %1253 = vmatprep.subr.mxu0 0.0
  %1254 = vmatpush1.msra.mxu0 0.0
  %1255 = vmatprep.subr.mxu0 0.0
  %1256 = vmatpush1.msra.mxu0 0.0
  %1257 = vmatprep.subr.mxu0 0.0
  %1258 = vmatpush1.msra.mxu0 0.0
  %1259 = vmatprep.subr.mxu0 0.0
  %1260 = vmatpush1.msra.mxu0 0.0
  %1261 = vmatprep.subr.mxu0 0.0
  %1262 = vmatpush1.msra.mxu0 %v1211
  %1263 = vmatprep.subr.mxu0 0.0
  %1264 = vmatpush1.msra.mxu0 %v1210
  %1265 = vmatprep.subr.mxu0 0.0
  %1266 = vmatpush1.msra.mxu0 %v1209
  %1267 = vmatprep.subr.mxu0 0.0
  %1268 = vmatpush1.msra.mxu0 %v1208
  %1269 = vmatprep.subr.mxu0 0.0
  %1270 = vmatpush2.msra.mxu0 0.0
  %1271 = vmatprep.subr.mxu0 0.0
  %1272 = vmatpush2.msra.mxu0 0.0
  %1273 = vmatprep.subr.mxu0 0.0
  %1274 = vmatpush2.msra.mxu0 0.0
  %1275 = vmatprep.subr.mxu0 0.0
  %1276 = vmatpush2.msra.mxu0 0.0
  %1277 = vmatprep.subr.mxu0 0.0
  %1278 = vmatpush2.msra.mxu0 0.0
  %1279 = vmatprep.subr.mxu0 0.0
  %1280 = vmatpush2.msra.mxu0 0.0
  %1281 = vmatprep.subr.mxu0 0.0
  %1282 = vmatpush2.msra.mxu0 0.0
  %1283 = vmatprep.subr.mxu0 0.0
  %1284 = vmatpush2.msra.mxu0 0.0
  %1285 = vmatprep.subr.mxu0 0.0
  %1286 = vmatpush2.msra.mxu0 0.0
  %1287 = vmatprep.subr.mxu0 0.0
  %1288 = vmatpush2.msra.mxu0 0.0
  %1289 = vmatprep.subr.mxu0 0.0
  %1290 = vmatpush2.msra.mxu0 0.0
  %1291 = vmatprep.subr.mxu0 0.0
  %1292 = vmatpush2.msra.mxu0 0.0
  %1293 = vmatprep.subr.mxu0 0.0
  %1294 = vmatpush2.msra.mxu0 0.0
  %1295 = vmatprep.subr.mxu0 0.0
  %1296 = vmatpush2.msra.mxu0 0.0
  %1297 = vmatprep.subr.mxu0 0.0
  %1298 = vmatpush2.msra.mxu0 0.0
  %1299 = vmatprep.subr.mxu0 0.0
  %1300 = vmatpush2.msra.mxu0 0.0
  %1301 = vmatprep.mubr.f32.mxu0 0.0
  %1302 = vmatmul.mubr.f32.gmra.mxu0 %v1220
  %v1303 = vpop.f32.mrf.mxu0
  %v1304 = vadd.f32 %v1217, %v1303
  %v1305 = vpop.f32.mrf.mxu0
  %1306 = vmatprep.mubr.f32.mxu0 0.0
  %1307 = vmatmul.mubr.f32.gmra.mxu0 %v1223
  %v1308 = vpop.f32.mrf.mxu0
  %v1309 = vadd.f32 %v1217, %v1308
  %v1310 = vpop.f32.mrf.mxu0
  %1311 = vmatprep.mubr.f32.mxu0 0.0
  %1312 = vmatmul.mubr.f32.gmra.mxu0 %v1226
  %v1313 = vpop.f32.mrf.mxu0
  %v1314 = vadd.f32 %v1217, %v1313
  %v1315 = vpop.f32.mrf.mxu0
  %1316 = vmatprep.mubr.f32.mxu0 0.0
  %1317 = vmatmul.mubr.f32.gmra.mxu0 %v1229
  %v1318 = vpop.f32.mrf.mxu0
  %v1319 = vadd.f32 %v1217, %v1318
  %v1320 = vpop.f32.mrf.mxu0
  %1321 = vmatprep.mubr.f32.mxu0 0.0
  %1322 = vmatmul.mubr.f32.gmra.mxu0 %v1232
  %v1323 = vpop.f32.mrf.mxu0
  %v1324 = vadd.f32 %v1217, %v1323
  %v1325 = vpop.f32.mrf.mxu0
  %1326 = vmatprep.mubr.f32.mxu0 0.0
  %1327 = vmatmul.mubr.f32.gmra.mxu0 %v1235
  %v1328 = vpop.f32.mrf.mxu0
  %v1329 = vadd.f32 %v1217, %v1328
  %v1330 = vpop.f32.mrf.mxu0
  %1331 = vdwg.mxu0
  %v1332 = vadd.f32 %v47, %v1304
  %v1333 = vadd.f32 %v48, %v1309
  %v1334 = vadd.f32 %v49, %v1314
  %v1335 = vadd.f32 %v50, %v1319
  %v1336 = vadd.f32 %v51, %v1324
  %v1337 = vadd.f32 %v52, %v1329
  %v1338 = vld [vmem:[%s6] sm:$0x1]
  %v1339 = vld [vmem:[%s7] sm:$0x1]
  %v1340 = vsel %vm65, %v1332, 0.0
  %1341 = vadd.xlane.f32.xlu0 %v1340
  %v1342 = vpop.xlane.xlu0 %1341
  %v1343 = vsel %vm65, %v1333, 0.0
  %1344 = vadd.xlane.f32.xlu0 %v1343
  %v1345 = vpop.xlane.xlu0 %1344
  %v1346 = vsel %vm65, %v1334, 0.0
  %1347 = vadd.xlane.f32.xlu0 %v1346
  %v1348 = vpop.xlane.xlu0 %1347
  %v1349 = vsel %vm65, %v1335, 0.0
  %1350 = vadd.xlane.f32.xlu0 %v1349
  %v1351 = vpop.xlane.xlu0 %1350
  %v1352 = vsel %vm65, %v1336, 0.0
  %1353 = vadd.xlane.f32.xlu0 %v1352
  %v1354 = vpop.xlane.xlu0 %1353
  %v1355 = vsel %vm65, %v1337, 0.0
  %1356 = vadd.xlane.f32.xlu0 %v1355
  %v1357 = vpop.xlane.xlu0 %1356
  %v1358 = vrcp.pop 32.0
  %v1359 = vmul.f32 %v1342, %v1358
  %v1360 = vmul.f32 %v1345, %v1358
  %v1361 = vmul.f32 %v1348, %v1358
  %v1362 = vmul.f32 %v1351, %v1358
  %v1363 = vmul.f32 %v1354, %v1358
  %v1364 = vmul.f32 %v1357, %v1358
  %v1365 = vsub.f32 %v1332, %v1359
  %v1366 = vsub.f32 %v1333, %v1360
  %v1367 = vsub.f32 %v1334, %v1361
  %v1368 = vsub.f32 %v1335, %v1362
  %v1369 = vsub.f32 %v1336, %v1363
  %v1370 = vsub.f32 %v1337, %v1364
  %v1371 = vmul.f32 %v1365, %v1365
  %v1372 = vmul.f32 %v1366, %v1366
  %v1373 = vmul.f32 %v1367, %v1367
  %v1374 = vmul.f32 %v1368, %v1368
  %v1375 = vmul.f32 %v1369, %v1369
  %v1376 = vmul.f32 %v1370, %v1370
  %v1377 = vsel %vm65, %v1371, 0.0
  %1378 = vadd.xlane.f32.xlu0 %v1377
  %v1379 = vpop.xlane.xlu0 %1378
  %v1380 = vsel %vm65, %v1372, 0.0
  %1381 = vadd.xlane.f32.xlu0 %v1380
  %v1382 = vpop.xlane.xlu0 %1381
  %v1383 = vsel %vm65, %v1373, 0.0
  %1384 = vadd.xlane.f32.xlu0 %v1383
  %v1385 = vpop.xlane.xlu0 %1384
  %v1386 = vsel %vm65, %v1374, 0.0
  %1387 = vadd.xlane.f32.xlu0 %v1386
  %v1388 = vpop.xlane.xlu0 %1387
  %v1389 = vsel %vm65, %v1375, 0.0
  %1390 = vadd.xlane.f32.xlu0 %v1389
  %v1391 = vpop.xlane.xlu0 %1390
  %v1392 = vsel %vm65, %v1376, 0.0
  %1393 = vadd.xlane.f32.xlu0 %v1392
  %v1394 = vpop.xlane.xlu0 %1393
  %v1395 = vmul.f32 %v1379, %v1358
  %v1396 = vmul.f32 %v1382, %v1358
  %v1397 = vmul.f32 %v1385, %v1358
  %v1398 = vmul.f32 %v1388, %v1358
  %v1399 = vmul.f32 %v1391, %v1358
  %v1400 = vmul.f32 %v1394, %v1358
  %v1401 = vadd.f32 %v1395, 1e-05
  %v1402 = vadd.f32 %v1396, 1e-05
  %v1403 = vadd.f32 %v1397, 1e-05
  %v1404 = vadd.f32 %v1398, 1e-05
  %v1405 = vadd.f32 %v1399, 1e-05
  %v1406 = vadd.f32 %v1400, 1e-05
  %v1407 = vrsqrt.pop %v1401
  %v1408 = vrsqrt.pop %v1402
  %v1409 = vrsqrt.pop %v1403
  %v1410 = vrsqrt.pop %v1404
  %v1411 = vrsqrt.pop %v1405
  %v1412 = vrsqrt.pop %v1406
  %v1413 = vmul.f32 %v1365, %v1407
  %v1414 = vmul.f32 %v1366, %v1408
  %v1415 = vmul.f32 %v1367, %v1409
  %v1416 = vmul.f32 %v1368, %v1410
  %v1417 = vmul.f32 %v1369, %v1411
  %v1418 = vmul.f32 %v1370, %v1412
  %v1420 = vlaneseq
  %v1421 = vshrl.u32 %v1420, 7
  %v1422 = vsub.s32 0, %v1421
  %v1423 = vrot.slane %v1338, %v1422
  %v1425 = vmul.f32 %v1413, %v1423
  %v1426 = vmul.f32 %v1414, %v1423
  %v1427 = vmul.f32 %v1415, %v1423
  %v1428 = vmul.f32 %v1416, %v1423
  %v1429 = vmul.f32 %v1417, %v1423
  %v1430 = vmul.f32 %v1418, %v1423
  %v1432 = vlaneseq
  %v1433 = vshrl.u32 %v1432, 7
  %v1434 = vsub.s32 0, %v1433
  %v1435 = vrot.slane %v1339, %v1434
  %v1437 = vadd.f32 %v1425, %v1435
  %v1438 = vadd.f32 %v1426, %v1435
  %v1439 = vadd.f32 %v1427, %v1435
  %v1440 = vadd.f32 %v1428, %v1435
  %v1441 = vadd.f32 %v1429, %v1435
  %v1442 = vadd.f32 %v1430, %v1435
  %v1443 = vlaneseq
  %v1444 = vshrl.u32 %v1443, 7
  %v1445 = vsub.s32 0, %v1444
  %v1446 = vrot.slane %v53, %v1445
  %1448 = vbcast.lane.b32.xlu0 %v1446, 256
  %v1449 = vpop.permute.xlu0 %1448
  %s1451 = sor.u32 256, 8
  %1452 = vbcast.lane.b32.xlu0 %v1446, %s1451
  %v1453 = vpop.permute.xlu0 %1452
  %s1455 = sor.u32 256, 16
  %1456 = vbcast.lane.b32.xlu0 %v1446, %s1455
  %v1457 = vpop.permute.xlu0 %1456
  %v1458 = vlaneseq
  %v1459 = vshrl.u32 %v1458, 7
  %v1460 = vsub.s32 1, %v1459
  %v1461 = vrot.slane %v53, %v1460
  %1463 = vbcast.lane.b32.xlu0 %v1461, 256
  %v1464 = vpop.permute.xlu0 %1463
  %s1466 = sor.u32 256, 8
  %1467 = vbcast.lane.b32.xlu0 %v1461, %s1466
  %v1468 = vpop.permute.xlu0 %1467
  %s1470 = sor.u32 256, 16
  %1471 = vbcast.lane.b32.xlu0 %v1461, %s1470
  %v1472 = vpop.permute.xlu0 %1471
  %v1473 = vmul.f32 %v1437, %v1449
  %v1474 = vmul.f32 %v1438, %v1453
  %v1475 = vmul.f32 %v1439, %v1457
  %v1476 = vmul.f32 %v1440, %v1464
  %v1477 = vmul.f32 %v1441, %v1468
  %v1478 = vmul.f32 %v1442, %v1472
  %vm1485 = vcmask 1040384
  %v1486 = vrot.slane %v1473, 7
  %v1487 = vrot.slane %v1474, 7
  %v1488 = vsel %vm1485, %v1486, %v1487
  %v1489 = vrot.slane %v1475, 7
  %v1490 = vsel %vm1485, %v1487, %v1489
  %v1491 = vrot.slane %v1476, 7
  %v1492 = vrot.slane %v1477, 7
  %v1493 = vsel %vm1485, %v1491, %v1492
  %v1494 = vrot.slane %v1478, 7
  %v1495 = vsel %vm1485, %v1492, %v1494
  %v1502 = vsel %vm1485, 0.0, %v1486
  %v1503 = vsel %vm1485, 0.0, %v1491
  %vm1504 = vcmask 1046528
  %v1505 = vrot.slane %v1473, 1
  %v1506 = vrot.slane %v1474, 1
  %v1507 = vsel %vm1504, %v1505, %v1506
  %v1508 = vrot.slane %v1475, 1
  %v1509 = vsel %vm1504, %v1506, %v1508
  %v1510 = vrot.slane %v1476, 1
  %v1511 = vrot.slane %v1477, 1
  %v1512 = vsel %vm1504, %v1510, %v1511
  %v1513 = vrot.slane %v1478, 1
  %v1514 = vsel %vm1504, %v1511, %v1513
  %v1517 = vsel %vm1504, %v1508, 0.0
  %v1518 = vsel %vm1504, %v1513, 0.0
  %1519 = vrot.lane.b32.xlu0 %v1473, 32
  %v1520 = vpop.permute.xlu0 %1519
  %1521 = vrot.lane.b32.xlu0 %v1474, 32
  %v1522 = vpop.permute.xlu0 %1521
  %1523 = vrot.lane.b32.xlu0 %v1475, 32
  %v1524 = vpop.permute.xlu0 %1523
  %1525 = vrot.lane.b32.xlu0 %v1476, 32
  %v1526 = vpop.permute.xlu0 %1525
  %1527 = vrot.lane.b32.xlu0 %v1477, 32
  %v1528 = vpop.permute.xlu0 %1527
  %1529 = vrot.lane.b32.xlu0 %v1478, 32
  %v1530 = vpop.permute.xlu0 %1529
  %1539 = vrot.lane.b32.xlu0 %v1507, 64
  %v1540 = vpop.permute.xlu0 %1539
  %1541 = vrot.lane.b32.xlu0 %v1509, 64
  %v1542 = vpop.permute.xlu0 %1541
  %1543 = vrot.lane.b32.xlu0 %v1517, 64
  %v1544 = vpop.permute.xlu0 %1543
  %1545 = vrot.lane.b32.xlu0 %v1512, 64
  %v1546 = vpop.permute.xlu0 %1545
  %1547 = vrot.lane.b32.xlu0 %v1514, 64
  %v1548 = vpop.permute.xlu0 %1547
  %1549 = vrot.lane.b32.xlu0 %v1518, 64
  %v1550 = vpop.permute.xlu0 %1549
  %v1557 = vsel %vm65, %v1502, %v1520
  %v1558 = vsel %vm65, %v1488, %v1522
  %v1559 = vsel %vm65, %v1490, %v1524
  %v1560 = vsel %vm65, %v1503, %v1526
  %v1561 = vsel %vm65, %v1493, %v1528
  %v1562 = vsel %vm65, %v1495, %v1530
  %vm1563 = vcmask 523264
  %v1564 = vsel %vm1563, %v1557, %v1540
  %v1565 = vsel %vm1563, %v1558, %v1542
  %v1566 = vsel %vm1563, %v1559, %v1544
  %v1567 = vsel %vm1563, %v1560, %v1546
  %v1568 = vsel %vm1563, %v1561, %v1548
  %v1569 = vsel %vm1563, %v1562, %v1550
  %v1570 = vld [vmem:[%s8] sm:$0xff]
  %v1571 = vld [vmem:[%s8 + $0x8] sm:$0xff]
  %v1572 = vld [vmem:[%s8 + $0x10] sm:$0xff]
  %v1573 = vld [vmem:[%s8 + $0x18] sm:$0xff]
  %v1574 = vld [vmem:[%s8 + $0x20] sm:$0xff]
  %v1575 = vld [vmem:[%s8 + $0x28] sm:$0xff]
  %v1576 = vld [vmem:[%s8 + $0x30] sm:$0xff]
  %v1577 = vld [vmem:[%s8 + $0x38] sm:$0xff]
  %v1578 = vld [vmem:[%s8 + $0x40] sm:$0xff]
  %v1579 = vld [vmem:[%s8 + $0x48] sm:$0xff]
  %v1580 = vld [vmem:[%s8 + $0x50] sm:$0xff]
  %v1581 = vld [vmem:[%s8 + $0x58] sm:$0xff]
  %v1582 = vld [vmem:[%s9] sm:$0x1]
  %v1584 = vlaneseq
  %v1585 = vshrl.u32 %v1584, 7
  %v1586 = vsub.s32 0, %v1585
  %v1587 = vrot.slane %v1582, %v1586
  %vm1589 = vcmask 785408
  %v1591 = vsel %vm1589, %v1564, 0
  %v1594 = vsel %vm1589, %v1565, 0
  %v1597 = vsel %vm1589, %v1566, 0
  %v1600 = vsel %vm1589, %v1567, 0
  %v1603 = vsel %vm1589, %v1568, 0
  %v1606 = vsel %vm1589, %v1569, 0
  %1608 = vmatprep.subr.mxu0 0.0
  %1609 = vmatpush1.msra.mxu0 0.0
  %1610 = vmatprep.subr.mxu0 0.0
  %1611 = vmatpush1.msra.mxu0 0.0
  %1612 = vmatprep.subr.mxu0 0.0
  %1613 = vmatpush1.msra.mxu0 0.0
  %1614 = vmatprep.subr.mxu0 0.0
  %1615 = vmatpush1.msra.mxu0 0.0
  %1616 = vmatprep.subr.mxu0 0.0
  %1617 = vmatpush1.msra.mxu0 %v1581
  %1618 = vmatprep.subr.mxu0 0.0
  %1619 = vmatpush1.msra.mxu0 %v1580
  %1620 = vmatprep.subr.mxu0 0.0
  %1621 = vmatpush1.msra.mxu0 %v1579
  %1622 = vmatprep.subr.mxu0 0.0
  %1623 = vmatpush1.msra.mxu0 %v1578
  %1624 = vmatprep.subr.mxu0 0.0
  %1625 = vmatpush1.msra.mxu0 %v1577
  %1626 = vmatprep.subr.mxu0 0.0
  %1627 = vmatpush1.msra.mxu0 %v1576
  %1628 = vmatprep.subr.mxu0 0.0
  %1629 = vmatpush1.msra.mxu0 %v1575
  %1630 = vmatprep.subr.mxu0 0.0
  %1631 = vmatpush1.msra.mxu0 %v1574
  %1632 = vmatprep.subr.mxu0 0.0
  %1633 = vmatpush1.msra.mxu0 %v1573
  %1634 = vmatprep.subr.mxu0 0.0
  %1635 = vmatpush1.msra.mxu0 %v1572
  %1636 = vmatprep.subr.mxu0 0.0
  %1637 = vmatpush1.msra.mxu0 %v1571
  %1638 = vmatprep.subr.mxu0 0.0
  %1639 = vmatpush1.msra.mxu0 %v1570
  %1640 = vmatprep.subr.mxu0 0.0
  %1641 = vmatpush2.msra.mxu0 0.0
  %1642 = vmatprep.subr.mxu0 0.0
  %1643 = vmatpush2.msra.mxu0 0.0
  %1644 = vmatprep.subr.mxu0 0.0
  %1645 = vmatpush2.msra.mxu0 0.0
  %1646 = vmatprep.subr.mxu0 0.0
  %1647 = vmatpush2.msra.mxu0 0.0
  %1648 = vmatprep.subr.mxu0 0.0
  %1649 = vmatpush2.msra.mxu0 0.0
  %1650 = vmatprep.subr.mxu0 0.0
  %1651 = vmatpush2.msra.mxu0 0.0
  %1652 = vmatprep.subr.mxu0 0.0
  %1653 = vmatpush2.msra.mxu0 0.0
  %1654 = vmatprep.subr.mxu0 0.0
  %1655 = vmatpush2.msra.mxu0 0.0
  %1656 = vmatprep.subr.mxu0 0.0
  %1657 = vmatpush2.msra.mxu0 0.0
  %1658 = vmatprep.subr.mxu0 0.0
  %1659 = vmatpush2.msra.mxu0 0.0
  %1660 = vmatprep.subr.mxu0 0.0
  %1661 = vmatpush2.msra.mxu0 0.0
  %1662 = vmatprep.subr.mxu0 0.0
  %1663 = vmatpush2.msra.mxu0 0.0
  %1664 = vmatprep.subr.mxu0 0.0
  %1665 = vmatpush2.msra.mxu0 0.0
  %1666 = vmatprep.subr.mxu0 0.0
  %1667 = vmatpush2.msra.mxu0 0.0
  %1668 = vmatprep.subr.mxu0 0.0
  %1669 = vmatpush2.msra.mxu0 0.0
  %1670 = vmatprep.subr.mxu0 0.0
  %1671 = vmatpush2.msra.mxu0 0.0
  %1672 = vmatprep.mubr.f32.mxu0 0.0
  %1673 = vmatmul.mubr.f32.gmra.mxu0 %v1591
  %v1674 = vpop.f32.mrf.mxu0
  %v1675 = vadd.f32 %v1587, %v1674
  %v1676 = vpop.f32.mrf.mxu0
  %1677 = vmatprep.mubr.f32.mxu0 0.0
  %1678 = vmatmul.mubr.f32.gmra.mxu0 %v1594
  %v1679 = vpop.f32.mrf.mxu0
  %v1680 = vadd.f32 %v1587, %v1679
  %v1681 = vpop.f32.mrf.mxu0
  %1682 = vmatprep.mubr.f32.mxu0 0.0
  %1683 = vmatmul.mubr.f32.gmra.mxu0 %v1597
  %v1684 = vpop.f32.mrf.mxu0
  %v1685 = vadd.f32 %v1587, %v1684
  %v1686 = vpop.f32.mrf.mxu0
  %1687 = vmatprep.mubr.f32.mxu0 0.0
  %1688 = vmatmul.mubr.f32.gmra.mxu0 %v1600
  %v1689 = vpop.f32.mrf.mxu0
  %v1690 = vadd.f32 %v1587, %v1689
  %v1691 = vpop.f32.mrf.mxu0
  %1692 = vmatprep.mubr.f32.mxu0 0.0
  %1693 = vmatmul.mubr.f32.gmra.mxu0 %v1603
  %v1694 = vpop.f32.mrf.mxu0
  %v1695 = vadd.f32 %v1587, %v1694
  %v1696 = vpop.f32.mrf.mxu0
  %1697 = vmatprep.mubr.f32.mxu0 0.0
  %1698 = vmatmul.mubr.f32.gmra.mxu0 %v1606
  %v1699 = vpop.f32.mrf.mxu0
  %v1700 = vadd.f32 %v1587, %v1699
  %v1701 = vpop.f32.mrf.mxu0
  %1702 = vdwg.mxu0
  %v1703 = vmax.f32 %v1675, 0.0
  %v1704 = vmax.f32 %v1680, 0.0
  %v1705 = vmax.f32 %v1685, 0.0
  %v1706 = vmax.f32 %v1690, 0.0
  %v1707 = vmax.f32 %v1695, 0.0
  %v1708 = vmax.f32 %v1700, 0.0
  %v1715 = vrot.slane %v1703, 7
  %v1716 = vrot.slane %v1704, 7
  %v1717 = vsel %vm1485, %v1715, %v1716
  %v1718 = vrot.slane %v1705, 7
  %v1719 = vsel %vm1485, %v1716, %v1718
  %v1720 = vrot.slane %v1706, 7
  %v1721 = vrot.slane %v1707, 7
  %v1722 = vsel %vm1485, %v1720, %v1721
  %v1723 = vrot.slane %v1708, 7
  %v1724 = vsel %vm1485, %v1721, %v1723
  %v1731 = vsel %vm1485, 0.0, %v1715
  %v1732 = vsel %vm1485, 0.0, %v1720
  %v1733 = vrot.slane %v1703, 1
  %v1734 = vrot.slane %v1704, 1
  %v1735 = vsel %vm1504, %v1733, %v1734
  %v1736 = vrot.slane %v1705, 1
  %v1737 = vsel %vm1504, %v1734, %v1736
  %v1738 = vrot.slane %v1706, 1
  %v1739 = vrot.slane %v1707, 1
  %v1740 = vsel %vm1504, %v1738, %v1739
  %v1741 = vrot.slane %v1708, 1
  %v1742 = vsel %vm1504, %v1739, %v1741
  %v1745 = vsel %vm1504, %v1736, 0.0
  %v1746 = vsel %vm1504, %v1741, 0.0
  %1747 = vrot.lane.b32.xlu0 %v1703, 64
  %v1748 = vpop.permute.xlu0 %1747
  %1749 = vrot.lane.b32.xlu0 %v1704, 64
  %v1750 = vpop.permute.xlu0 %1749
  %1751 = vrot.lane.b32.xlu0 %v1705, 64
  %v1752 = vpop.permute.xlu0 %1751
  %1753 = vrot.lane.b32.xlu0 %v1706, 64
  %v1754 = vpop.permute.xlu0 %1753
  %1755 = vrot.lane.b32.xlu0 %v1707, 64
  %v1756 = vpop.permute.xlu0 %1755
  %1757 = vrot.lane.b32.xlu0 %v1708, 64
  %v1758 = vpop.permute.xlu0 %1757
  %v1765 = vsel %vm1563, %v1731, %v1748
  %v1766 = vsel %vm1563, %v1717, %v1750
  %v1767 = vsel %vm1563, %v1719, %v1752
  %v1768 = vsel %vm1563, %v1732, %v1754
  %v1769 = vsel %vm1563, %v1722, %v1756
  %v1770 = vsel %vm1563, %v1724, %v1758
  %v1771 = vld [vmem:[%s10] sm:$0xff]
  %v1772 = vld [vmem:[%s10 + $0x8] sm:$0xff]
  %v1773 = vld [vmem:[%s10 + $0x10] sm:$0xff]
  %v1774 = vld [vmem:[%s10 + $0x18] sm:$0xff]
  %v1775 = vld [vmem:[%s10 + $0x20] sm:$0xff]
  %v1776 = vld [vmem:[%s10 + $0x28] sm:$0xff]
  %v1777 = vld [vmem:[%s10 + $0x30] sm:$0xff]
  %v1778 = vld [vmem:[%s10 + $0x38] sm:$0xff]
  %v1779 = vld [vmem:[%s10 + $0x40] sm:$0xff]
  %v1780 = vld [vmem:[%s10 + $0x48] sm:$0xff]
  %v1781 = vld [vmem:[%s10 + $0x50] sm:$0xff]
  %v1782 = vld [vmem:[%s10 + $0x58] sm:$0xff]
  %v1783 = vld [vmem:[%s10 + $0x60] sm:$0xff]
  %v1784 = vld [vmem:[%s10 + $0x68] sm:$0xff]
  %v1785 = vld [vmem:[%s10 + $0x70] sm:$0xff]
  %v1786 = vld [vmem:[%s10 + $0x78] sm:$0xff]
  %v1787 = vld [vmem:[%s10 + $0x80] sm:$0xff]
  %v1788 = vld [vmem:[%s10 + $0x88] sm:$0xff]
  %v1789 = vld [vmem:[%s10 + $0x90] sm:$0xff]
  %v1790 = vld [vmem:[%s10 + $0x98] sm:$0xff]
  %v1791 = vld [vmem:[%s10 + $0xa0] sm:$0xff]
  %v1792 = vld [vmem:[%s10 + $0xa8] sm:$0xff]
  %v1793 = vld [vmem:[%s10 + $0xb0] sm:$0xff]
  %v1794 = vld [vmem:[%s10 + $0xb8] sm:$0xff]
  %v1795 = vld [vmem:[%s11] sm:$0x1]
  %v1797 = vlaneseq
  %v1798 = vshrl.u32 %v1797, 7
  %v1799 = vsub.s32 0, %v1798
  %v1800 = vrot.slane %v1795, %v1799
  %v1802 = vsel %vm1563, %v1735, 0
  %v1804 = vsel %vm1563, %v1737, 0
  %v1807 = vsel %vm1563, %v1745, 0
  %v1809 = vsel %vm1563, %v1740, 0
  %v1811 = vsel %vm1563, %v1742, 0
  %v1814 = vsel %vm1563, %v1746, 0
  %1816 = vmatprep.subr.mxu0 0.0
  %1817 = vmatpush1.msra.mxu0 %v1786
  %1818 = vmatprep.subr.mxu0 0.0
  %1819 = vmatpush1.msra.mxu0 %v1785
  %1820 = vmatprep.subr.mxu0 0.0
  %1821 = vmatpush1.msra.mxu0 %v1784
  %1822 = vmatprep.subr.mxu0 0.0
  %1823 = vmatpush1.msra.mxu0 %v1783
  %1824 = vmatprep.subr.mxu0 0.0
  %1825 = vmatpush1.msra.mxu0 %v1782
  %1826 = vmatprep.subr.mxu0 0.0
  %1827 = vmatpush1.msra.mxu0 %v1781
  %1828 = vmatprep.subr.mxu0 0.0
  %1829 = vmatpush1.msra.mxu0 %v1780
  %1830 = vmatprep.subr.mxu0 0.0
  %1831 = vmatpush1.msra.mxu0 %v1779
  %1832 = vmatprep.subr.mxu0 0.0
  %1833 = vmatpush1.msra.mxu0 %v1778
  %1834 = vmatprep.subr.mxu0 0.0
  %1835 = vmatpush1.msra.mxu0 %v1777
  %1836 = vmatprep.subr.mxu0 0.0
  %1837 = vmatpush1.msra.mxu0 %v1776
  %1838 = vmatprep.subr.mxu0 0.0
  %1839 = vmatpush1.msra.mxu0 %v1775
  %1840 = vmatprep.subr.mxu0 0.0
  %1841 = vmatpush1.msra.mxu0 %v1774
  %1842 = vmatprep.subr.mxu0 0.0
  %1843 = vmatpush1.msra.mxu0 %v1773
  %1844 = vmatprep.subr.mxu0 0.0
  %1845 = vmatpush1.msra.mxu0 %v1772
  %1846 = vmatprep.subr.mxu0 0.0
  %1847 = vmatpush1.msra.mxu0 %v1771
  %1848 = vmatprep.subr.mxu0 0.0
  %1849 = vmatpush2.msra.mxu0 0.0
  %1850 = vmatprep.subr.mxu0 0.0
  %1851 = vmatpush2.msra.mxu0 0.0
  %1852 = vmatprep.subr.mxu0 0.0
  %1853 = vmatpush2.msra.mxu0 0.0
  %1854 = vmatprep.subr.mxu0 0.0
  %1855 = vmatpush2.msra.mxu0 0.0
  %1856 = vmatprep.subr.mxu0 0.0
  %1857 = vmatpush2.msra.mxu0 0.0
  %1858 = vmatprep.subr.mxu0 0.0
  %1859 = vmatpush2.msra.mxu0 0.0
  %1860 = vmatprep.subr.mxu0 0.0
  %1861 = vmatpush2.msra.mxu0 0.0
  %1862 = vmatprep.subr.mxu0 0.0
  %1863 = vmatpush2.msra.mxu0 0.0
  %1864 = vmatprep.subr.mxu0 0.0
  %1865 = vmatpush2.msra.mxu0 %v1794
  %1866 = vmatprep.subr.mxu0 0.0
  %1867 = vmatpush2.msra.mxu0 %v1793
  %1868 = vmatprep.subr.mxu0 0.0
  %1869 = vmatpush2.msra.mxu0 %v1792
  %1870 = vmatprep.subr.mxu0 0.0
  %1871 = vmatpush2.msra.mxu0 %v1791
  %1872 = vmatprep.subr.mxu0 0.0
  %1873 = vmatpush2.msra.mxu0 %v1790
  %1874 = vmatprep.subr.mxu0 0.0
  %1875 = vmatpush2.msra.mxu0 %v1789
  %1876 = vmatprep.subr.mxu0 0.0
  %1877 = vmatpush2.msra.mxu0 %v1788
  %1878 = vmatprep.subr.mxu0 0.0
  %1879 = vmatpush2.msra.mxu0 %v1787
  %1880 = vmatprep.mubr.f32.mxu0 %v1802
  %1881 = vmatmul.mubr.f32.gmra.mxu0 %v1765
  %v1882 = vpop.f32.mrf.mxu0
  %v1883 = vadd.f32 %v1800, %v1882
  %v1884 = vpop.f32.mrf.mxu0
  %1885 = vmatprep.mubr.f32.mxu0 %v1804
  %1886 = vmatmul.mubr.f32.gmra.mxu0 %v1766
  %v1887 = vpop.f32.mrf.mxu0
  %v1888 = vadd.f32 %v1800, %v1887
  %v1889 = vpop.f32.mrf.mxu0
  %1890 = vmatprep.mubr.f32.mxu0 %v1807
  %1891 = vmatmul.mubr.f32.gmra.mxu0 %v1767
  %v1892 = vpop.f32.mrf.mxu0
  %v1893 = vadd.f32 %v1800, %v1892
  %v1894 = vpop.f32.mrf.mxu0
  %1895 = vmatprep.mubr.f32.mxu0 %v1809
  %1896 = vmatmul.mubr.f32.gmra.mxu0 %v1768
  %v1897 = vpop.f32.mrf.mxu0
  %v1898 = vadd.f32 %v1800, %v1897
  %v1899 = vpop.f32.mrf.mxu0
  %1900 = vmatprep.mubr.f32.mxu0 %v1811
  %1901 = vmatmul.mubr.f32.gmra.mxu0 %v1769
  %v1902 = vpop.f32.mrf.mxu0
  %v1903 = vadd.f32 %v1800, %v1902
  %v1904 = vpop.f32.mrf.mxu0
  %1905 = vmatprep.mubr.f32.mxu0 %v1814
  %1906 = vmatmul.mubr.f32.gmra.mxu0 %v1770
  %v1907 = vpop.f32.mrf.mxu0
  %v1908 = vadd.f32 %v1800, %v1907
  %v1909 = vpop.f32.mrf.mxu0
  %1910 = vdwg.mxu0
  %v1911 = vadd.f32 %v1473, %v1883
  %v1912 = vadd.f32 %v1474, %v1888
  %v1913 = vadd.f32 %v1475, %v1893
  %v1914 = vadd.f32 %v1476, %v1898
  %v1915 = vadd.f32 %v1477, %v1903
  %v1916 = vadd.f32 %v1478, %v1908
  %v1917 = vld [vmem:[%s12] sm:$0x1]
  %v1918 = vld [vmem:[%s13] sm:$0x1]
  %v1919 = vsel %vm65, %v1911, 0.0
  %1920 = vadd.xlane.f32.xlu0 %v1919
  %v1921 = vpop.xlane.xlu0 %1920
  %v1922 = vsel %vm65, %v1912, 0.0
  %1923 = vadd.xlane.f32.xlu0 %v1922
  %v1924 = vpop.xlane.xlu0 %1923
  %v1925 = vsel %vm65, %v1913, 0.0
  %1926 = vadd.xlane.f32.xlu0 %v1925
  %v1927 = vpop.xlane.xlu0 %1926
  %v1928 = vsel %vm65, %v1914, 0.0
  %1929 = vadd.xlane.f32.xlu0 %v1928
  %v1930 = vpop.xlane.xlu0 %1929
  %v1931 = vsel %vm65, %v1915, 0.0
  %1932 = vadd.xlane.f32.xlu0 %v1931
  %v1933 = vpop.xlane.xlu0 %1932
  %v1934 = vsel %vm65, %v1916, 0.0
  %1935 = vadd.xlane.f32.xlu0 %v1934
  %v1936 = vpop.xlane.xlu0 %1935
  %v1937 = vmul.f32 %v1921, %v1358
  %v1938 = vmul.f32 %v1924, %v1358
  %v1939 = vmul.f32 %v1927, %v1358
  %v1940 = vmul.f32 %v1930, %v1358
  %v1941 = vmul.f32 %v1933, %v1358
  %v1942 = vmul.f32 %v1936, %v1358
  %v1943 = vsub.f32 %v1911, %v1937
  %v1944 = vsub.f32 %v1912, %v1938
  %v1945 = vsub.f32 %v1913, %v1939
  %v1946 = vsub.f32 %v1914, %v1940
  %v1947 = vsub.f32 %v1915, %v1941
  %v1948 = vsub.f32 %v1916, %v1942
  %v1949 = vmul.f32 %v1943, %v1943
  %v1950 = vmul.f32 %v1944, %v1944
  %v1951 = vmul.f32 %v1945, %v1945
  %v1952 = vmul.f32 %v1946, %v1946
  %v1953 = vmul.f32 %v1947, %v1947
  %v1954 = vmul.f32 %v1948, %v1948
  %v1955 = vsel %vm65, %v1949, 0.0
  %1956 = vadd.xlane.f32.xlu0 %v1955
  %v1957 = vpop.xlane.xlu0 %1956
  %v1958 = vsel %vm65, %v1950, 0.0
  %1959 = vadd.xlane.f32.xlu0 %v1958
  %v1960 = vpop.xlane.xlu0 %1959
  %v1961 = vsel %vm65, %v1951, 0.0
  %1962 = vadd.xlane.f32.xlu0 %v1961
  %v1963 = vpop.xlane.xlu0 %1962
  %v1964 = vsel %vm65, %v1952, 0.0
  %1965 = vadd.xlane.f32.xlu0 %v1964
  %v1966 = vpop.xlane.xlu0 %1965
  %v1967 = vsel %vm65, %v1953, 0.0
  %1968 = vadd.xlane.f32.xlu0 %v1967
  %v1969 = vpop.xlane.xlu0 %1968
  %v1970 = vsel %vm65, %v1954, 0.0
  %1971 = vadd.xlane.f32.xlu0 %v1970
  %v1972 = vpop.xlane.xlu0 %1971
  %v1973 = vmul.f32 %v1957, %v1358
  %v1974 = vmul.f32 %v1960, %v1358
  %v1975 = vmul.f32 %v1963, %v1358
  %v1976 = vmul.f32 %v1966, %v1358
  %v1977 = vmul.f32 %v1969, %v1358
  %v1978 = vmul.f32 %v1972, %v1358
  %v1979 = vadd.f32 %v1973, 1e-05
  %v1980 = vadd.f32 %v1974, 1e-05
  %v1981 = vadd.f32 %v1975, 1e-05
  %v1982 = vadd.f32 %v1976, 1e-05
  %v1983 = vadd.f32 %v1977, 1e-05
  %v1984 = vadd.f32 %v1978, 1e-05
  %v1985 = vrsqrt.pop %v1979
  %v1986 = vrsqrt.pop %v1980
  %v1987 = vrsqrt.pop %v1981
  %v1988 = vrsqrt.pop %v1982
  %v1989 = vrsqrt.pop %v1983
  %v1990 = vrsqrt.pop %v1984
  %v1991 = vmul.f32 %v1943, %v1985
  %v1992 = vmul.f32 %v1944, %v1986
  %v1993 = vmul.f32 %v1945, %v1987
  %v1994 = vmul.f32 %v1946, %v1988
  %v1995 = vmul.f32 %v1947, %v1989
  %v1996 = vmul.f32 %v1948, %v1990
  %v1998 = vlaneseq
  %v1999 = vshrl.u32 %v1998, 7
  %v2000 = vsub.s32 0, %v1999
  %v2001 = vrot.slane %v1917, %v2000
  %v2003 = vmul.f32 %v1991, %v2001
  %v2004 = vmul.f32 %v1992, %v2001
  %v2005 = vmul.f32 %v1993, %v2001
  %v2006 = vmul.f32 %v1994, %v2001
  %v2007 = vmul.f32 %v1995, %v2001
  %v2008 = vmul.f32 %v1996, %v2001
  %v2010 = vlaneseq
  %v2011 = vshrl.u32 %v2010, 7
  %v2012 = vsub.s32 0, %v2011
  %v2013 = vrot.slane %v1918, %v2012
  %v2015 = vadd.f32 %v2003, %v2013
  %v2016 = vadd.f32 %v2004, %v2013
  %v2017 = vadd.f32 %v2005, %v2013
  %v2018 = vadd.f32 %v2006, %v2013
  %v2019 = vadd.f32 %v2007, %v2013
  %v2020 = vadd.f32 %v2008, %v2013
  %v2021 = vmul.f32 %v2015, %v1449
  %v2022 = vmul.f32 %v2016, %v1453
  %v2023 = vmul.f32 %v2017, %v1457
  %v2024 = vmul.f32 %v2018, %v1464
  %v2025 = vmul.f32 %v2019, %v1468
  %v2026 = vmul.f32 %v2020, %v1472
  %2027 = vst.msk [vmem:[%s14] sm:$0xff] %vm65, %v2021
  %2028 = vst.msk [vmem:[%s14 + $0x8] sm:$0xff] %vm65, %v2022
  %2029 = vst.msk [vmem:[%s14 + $0x10] sm:$0xff] %vm65, %v2023
  %2030 = vst.msk [vmem:[%s14 + $0x18] sm:$0xff] %vm65, %v2024
  %2031 = vst.msk [vmem:[%s14 + $0x20] sm:$0xff] %vm65, %v2025
  %2032 = vst.msk [vmem:[%s14 + $0x28] sm:$0xff] %vm65, %v2026
  // Predicated region
  $region58: #{fastspeech_forward.9} parent=0 // pred_check
    _
  $region59: #{fastspeech_forward.9} parent=0 // pred_check_branch
    %2034 = sbr.rel (0) target = $region61
  $region60: #{fastspeech_forward.9} parent=0 // pred_region
    _
  $region61: #{fastspeech_forward.9} parent=0 // pred_fallthru
    _
  // Predicated region
  $region62: #{fastspeech_forward.9} parent=0 // pred_check
    _
  $region63: #{fastspeech_forward.9} parent=0 // pred_check_branch
    %2036 = sbr.rel (0) target = $region65
  $region64: #{fastspeech_forward.9} parent=0 // pred_region
    _
  $region65: #{fastspeech_forward.9} parent=0 // pred_fallthru
    _

</llo_original>
